<compile_context>
chip_gen: v5e
topology: v5e:2x2
jax: 0.10.0
libtpu: 0.0.40
codegen_flags: <defaults>
</compile_context>

<pallas_src>
import functools

import jax
import jax.numpy as jnp
from jax.experimental import pallas as pl
from jax.experimental.pallas import tpu as pltpu

RADIX = 2
CARDINALITY = 1  # TODO(synk): rSoftMax kernel assumes cardinality == 1 (the configured value).
BOTTLENECK_WIDTH = 64
BN_EPS = 1e-5
# v7x physical VMEM is 64 MiB -> keep the scoped budget at 32 MiB on all generations.
# (On v5e/v6e this could be raised to 64-96 MiB for even larger tiles.)
VMEM_LIMIT = 32 * 1024 * 1024


def _pick(dim, candidates):
    """First preferred tile size that divides `dim`, else the full dim."""
    for c in candidates:
        if dim % c == 0:
            return c
    return dim


def _pick_row_tile(H, W, max_pixels=512):
    """Largest row tile th < H dividing H with th*W <= max_pixels and 8-aligned pixels.

    Prefers >= 2 row blocks per image (pipeline overlap / megacore); falls back to the
    whole image when no smaller tile qualifies.
    """
    best = None
    for th in range(1, H):
        if H % th == 0 and th * W <= max_pixels and (th * W) % 8 == 0:
            best = th
    return best if best is not None else H


# ------------------------- kernels -------------------------

def conv12_kernel(x_ref, w1_ref, s1_ref, b1_ref, w2_ref, s0_ref, b0_ref,
                  o2_ref, gap_ref, xkw_ref, gsum_ref,
                  *, H, W, Cin, gw, rgw, radix, th):
    """Fused conv1(1x1)+bn1+relu -> grouped 3x3 conv (K-stacked im2col) + bn0 + relu + GAP.

    Grid: (N, H // th).  Per image (i == 0) the whole conv1 output is computed into the
    persistent VMEM scratch `xkw` as three kw-shifted, zero-bordered copies; per row
    block the 9 taps are leading-axis slices of that scratch, concatenated into one
    (th*W, 9*gw) patch and pushed through a single MXU matmul.
    """
    i = pl.program_id(1)
    nb = pl.num_programs(1)
    tm = th * W

    @pl.when(i == 0)
    def _prep():
        # conv1 for the whole image; result lives only in VMEM.
        xm = x_ref[0].reshape(H * W, Cin)
        o1 = jnp.dot(xm, w1_ref[...], preferred_element_type=jnp.float32)
        o1 = jnp.maximum(o1 * s1_ref[...] + b1_ref[...], 0.0).astype(jnp.bfloat16)
        o1 = o1.reshape(H, W, gw)
        # Three kw-shifted, zero-padded copies: later kh/row-block slices are
        # leading-axis slices (no sublane relayout per tap).
        xkw_ref[...] = jnp.zeros_like(xkw_ref)
        xkw_ref[1, 1:H + 1, :, :] = o1
        xkw_ref[0, 1:H + 1, 1:W, :] = o1[:, 0:W - 1, :]
        xkw_ref[2, 1:H + 1, 0:W - 1, :] = o1[:, 1:W, :]
        gsum_ref[...] = jnp.zeros_like(gsum_ref)

    r0 = i * th
    pieces = []
    for kh in range(3):
        for kw in range(3):
            blk = xkw_ref[kw, pl.ds(r0 + kh, th)]          # (th, W, gw), leading-dim slice
            pieces.append(blk.reshape(tm, gw))
    patch = jnp.concatenate(pieces, axis=-1)               # (tm, 9*gw) K-stacked im2col

    y = jnp.dot(patch, w2_ref[...], preferred_element_type=jnp.float32)   # (tm, rgw)
    y = jnp.maximum(y * s0_ref[...] + b0_ref[...], 0.0)
    o2_ref[0] = y.astype(o2_ref.dtype)

    g = y[:, 0:gw]
    for r in range(1, radix):
        g = g + y[:, r * gw:(r + 1) * gw]
    gsum_ref[...] += jnp.sum(g, axis=0, keepdims=True)

    @pl.when(i == nb - 1)
    def _fin():
        gap_ref[0] = gsum_ref[...] * (1.0 / (H * W))


def attention_kernel(gap_ref, w1_ref, b1_ref, w2_ref, b2_ref, o_ref, *, radix, gw):
    """fc1(+folded bn)+relu -> fc2 -> rSoftMax (cardinality == 1). Tiny; single block."""
    h = jnp.dot(gap_ref[...], w1_ref[...],
                preferred_element_type=jnp.float32) + b1_ref[...]
    h = jnp.maximum(h, 0.0)
    logits = jnp.dot(h, w2_ref[...],
                     preferred_element_type=jnp.float32) + b2_ref[...]
    if radix > 1:
        chunks = [logits[:, r * gw:(r + 1) * gw] for r in range(radix)]
        m = chunks[0]
        for c in chunks[1:]:
            m = jnp.maximum(m, c)
        es = [jnp.exp(c - m) for c in chunks]
        denom = es[0]
        for e in es[1:]:
            denom = denom + e
        inv = 1.0 / denom
        for r in range(radix):
            o_ref[:, r * gw:(r + 1) * gw] = es[r] * inv
    else:
        o_ref[...] = jax.nn.sigmoid(logits)


def conv3_kernel(x_ref, a_ref, w_ref, s_ref, b_ref, r_ref, o_ref):
    """out = relu(bn3(x @ (att-scaled stacked w3)) + residual), per (n, pixel, Cout) tile.

    The split attention is folded into the (rgw, tn) weight (one scale per tile, K = rgw)
    instead of a per-pixel multiply.
    """
    w_sc = w_ref[...] * a_ref[0].astype(jnp.bfloat16)                 # (rgw, tn)
    y = jnp.dot(x_ref[0], w_sc, preferred_element_type=jnp.float32)   # (tm, tn)
    y = y * s_ref[...] + b_ref[...] + r_ref[0].astype(jnp.float32)
    o_ref[0] = jnp.maximum(y, 0.0).astype(o_ref.dtype)


# ------------------------- pallas_call wrappers -------------------------

def conv12_bn_relu_gap(x_nhwc, w1, s1, b1, w2s, s0, b0, *, H, W, Cin, gw, rgw, radix):
    N = x_nhwc.shape[0]
    HW = H * W
    # TODO(synk): odd W (7x7 / 14x14 stages) needs a padded/masked im2col path; the
    # in-kernel reshapes assume 8-aligned W.
    assert W % 8 == 0, "conv2 kernel requires W % 8 == 0 (pad spatially upstream)"
    th = _pick_row_tile(H, W)
    nb = H // th
    tm = th * W
    # rough resident-VMEM estimate (bytes)
    est = (2 * H * W * Cin + 3 * (H + 2) * W * gw + 2 * tm * rgw
           + 9 * gw * rgw + Cin * gw) * 2 + tm * 9 * gw * 2 + tm * rgw * 4
    assert est < VMEM_LIMIT, f"conv2 tiles exceed VMEM budget ({est} bytes)"

    kern = functools.partial(conv12_kernel, H=H, W=W, Cin=Cin, gw=gw, rgw=rgw,
                             radix=radix, th=th)
    return pl.pallas_call(
        kern,
        out_shape=(jax.ShapeDtypeStruct((N, HW, rgw), jnp.bfloat16),
                   jax.ShapeDtypeStruct((N, 1, gw), jnp.float32)),
        grid_spec=pltpu.PrefetchScalarGridSpec(
            num_scalar_prefetch=0,
            grid=(N, nb),
            in_specs=[
                pl.BlockSpec((1, H, W, Cin), lambda n, i: (n, 0, 0, 0)),  # resident per n
                pl.BlockSpec((Cin, gw), lambda n, i: (0, 0)),
                pl.BlockSpec((1, gw), lambda n, i: (0, 0)),
                pl.BlockSpec((1, gw), lambda n, i: (0, 0)),
                pl.BlockSpec((9 * gw, rgw), lambda n, i: (0, 0)),
                pl.BlockSpec((1, rgw), lambda n, i: (0, 0)),
                pl.BlockSpec((1, rgw), lambda n, i: (0, 0)),
            ],
            out_specs=(pl.BlockSpec((1, tm, rgw), lambda n, i: (n, i, 0)),
                       pl.BlockSpec((1, 1, gw), lambda n, i: (n, 0, 0))),
            scratch_shapes=[pltpu.VMEM((3, H + 2, W, gw), jnp.bfloat16),
                            pltpu.VMEM((1, gw), jnp.float32)],
        ),
        compiler_params=pltpu.CompilerParams(
            dimension_semantics=("parallel", "arbitrary"),
            vmem_limit_bytes=VMEM_LIMIT),
    )(x_nhwc, w1, s1, b1, w2s, s0, b0)


def attention_weights(gap, wf1, bf1, wf2, bf2, *, radix, gw):
    N = gap.shape[0]
    rgw = radix * gw
    return pl.pallas_call(
        functools.partial(attention_kernel, radix=radix, gw=gw),
        out_shape=jax.ShapeDtypeStruct((N, rgw), jnp.float32),
    )(gap, wf1, bf1, wf2, bf2)


def conv3_attn_bn_add_relu(x3, att, w3s, scale, shift, res):
    N, HW, rgw = x3.shape
    Cout = w3s.shape[1]
    tm = _pick(HW, (512, 256, 128, 64, 32, 16, 8))
    tn = _pick(Cout, (256, 128))
    assert tm % 8 == 0 or tm == HW
    assert tn % 128 == 0 or tn == Cout
    tile_bytes = (tm * rgw + 2 * tm * tn + rgw * tn) * 2
    assert 3 * tile_bytes < VMEM_LIMIT, "conv3 tile exceeds VMEM budget"
    return pl.pallas_call(
        conv3_kernel,
        out_shape=jax.ShapeDtypeStruct((N, HW, Cout), jnp.bfloat16),
        grid_spec=pltpu.PrefetchScalarGridSpec(
            num_scalar_prefetch=0,
            grid=(N, HW // tm, Cout // tn),
            in_specs=[
                pl.BlockSpec((1, tm, rgw), lambda n, i, j: (n, i, 0)),
                pl.BlockSpec((1, rgw, 1), lambda n, i, j: (n, 0, 0)),
                pl.BlockSpec((rgw, tn), lambda n, i, j: (0, j)),
                pl.BlockSpec((1, tn), lambda n, i, j: (0, j)),
                pl.BlockSpec((1, tn), lambda n, i, j: (0, j)),
                pl.BlockSpec((1, tm, tn), lambda n, i, j: (n, i, j)),
            ],
            out_specs=pl.BlockSpec((1, tm, tn), lambda n, i, j: (n, i, j)),
        ),
        compiler_params=pltpu.CompilerParams(
            dimension_semantics=("parallel", "parallel", "parallel"),
            vmem_limit_bytes=VMEM_LIMIT),
    )(x3, att, w3s, scale, shift, res)


# ------------------------- parameter preparation -------------------------

def bn_fold(bn):
    scale = bn["gamma"] / jnp.sqrt(bn["var"] + BN_EPS)
    shift = bn["beta"] - bn["mean"] * scale
    return scale.astype(jnp.float32), shift.astype(jnp.float32)


def prepare_params(params, radix=RADIX, cardinality=CARDINALITY):
    """Fold BN, transpose 1x1 convs, build the K-stacked (9*gw, rgw) block-diagonal
    3x3 weight and the radix-stacked (rgw, Cout) conv3 weight, cast to bf16."""
    gw = params["conv1_w"].shape[0]
    rgw = gw * radix
    groups = cardinality * radix
    cin_g, cout_g = gw // groups, rgw // groups

    prep = {}
    prep["w1"] = params["conv1_w"][:, :, 0, 0].T.astype(jnp.bfloat16)            # (Cin, gw)
    s1, b1 = bn_fold(params["bn1"])
    prep["s1"], prep["b1"] = s1.reshape(1, gw), b1.reshape(1, gw)

    w2 = params["conv2_w"]                                                        # (rgw, cin_g, 3, 3)
    taps = []
    for kh in range(3):
        for kw in range(3):
            mat = jnp.zeros((gw, rgw), jnp.float32)
            for g in range(groups):
                blk = w2[g * cout_g:(g + 1) * cout_g, :, kh, kw].T                # (cin_g, cout_g)
                mat = mat.at[g * cin_g:(g + 1) * cin_g,
                             g * cout_g:(g + 1) * cout_g].set(blk)
            taps.append(mat)
    # TODO(synk): half of w2s is structural zeros (block-diagonal, radix=2); pack per-group
    # K blocks when gw grows large enough for the 3x3 conv to become MXU-bound.
    prep["w2s"] = jnp.concatenate(taps, axis=0).astype(jnp.bfloat16)              # (9*gw, rgw)
    s0, b0 = bn_fold(params["bn0"])
    prep["s0"], prep["b0"] = s0.reshape(1, rgw), b0.reshape(1, rgw)

    s1s, b1s = bn_fold(params["bn1s"])
    wf1 = params["fc1_w"][:, :, 0, 0].T.astype(jnp.float32)                       # (gw, inter)
    prep["wf1"] = wf1 * s1s[None, :]
    prep["bf1"] = (params["fc1_b"].astype(jnp.float32) * s1s + b1s).reshape(1, -1)
    prep["wf2"] = params["fc2_w"][:, :, 0, 0].T.astype(jnp.float32)               # (inter, rgw)
    prep["bf2"] = params["fc2_b"].astype(jnp.float32).reshape(1, -1)

    w3 = params["conv3_w"][:, :, 0, 0].T.astype(jnp.float32)                      # (gw, Cout)
    prep["w3s"] = jnp.concatenate([w3] * radix, axis=0).astype(jnp.bfloat16)      # (rgw, Cout)
    s3, b3 = bn_fold(params["bn3"])
    prep["s3"], prep["b3"] = s3.reshape(1, -1), b3.reshape(1, -1)
    return prep


# ------------------------- Bottleneck forward -------------------------

def bottleneck_forward(x_nchw, prep, *, radix=RADIX):
    N, Cin, H, W = x_nchw.shape
    gw = prep["w1"].shape[1]
    rgw = radix * gw
    Cout = prep["w3s"].shape[1]
    assert Cout == Cin, "downsample=None requires planes*4 == inplanes"

    x_nhwc = jnp.transpose(x_nchw, (0, 2, 3, 1)).astype(jnp.bfloat16)

    # conv1+bn1+relu + grouped 3x3 + bn0 + relu + GAP, fully fused (no o1 / pad in HBM)
    o2, gap = conv12_bn_relu_gap(x_nhwc, prep["w1"], prep["s1"], prep["b1"],
                                 prep["w2s"], prep["s0"], prep["b0"],
                                 H=H, W=W, Cin=Cin, gw=gw, rgw=rgw, radix=radix)
    # o2: (N, H*W, rgw) bf16 ; gap: (N, 1, gw) f32

    # attention weights: fc1(+bn)+relu -> fc2 -> rSoftMax (tiny kernel, untiled)
    att = attention_weights(gap.reshape(N, gw), prep["wf1"], prep["bf1"],
                            prep["wf2"], prep["bf2"], radix=radix, gw=gw)          # (N, rgw)

    # attention folded into stacked conv3 weight + bn3 + residual + relu, bf16 output
    res = x_nhwc.reshape(N, H * W, Cin)
    out = conv3_attn_bn_add_relu(o2, att.reshape(N, rgw, 1), prep["w3s"],
                                 prep["s3"], prep["b3"], res)                      # (N, HW, Cout) bf16
    return jnp.transpose(out.reshape(N, H, W, Cout), (0, 3, 1, 2))                 # NCHW, bf16


# ------------------------- pure-JAX reference (f32) -------------------------

def _bn_ref(x, bn):
    s = bn["gamma"] / jnp.sqrt(bn["var"] + BN_EPS)
    return x * s + (bn["beta"] - bn["mean"] * s)


def reference_forward(x_nchw, params, radix=RADIX, cardinality=CARDINALITY):
    N, Cin, H, W = x_nchw.shape
    gw = params["conv1_w"].shape[0]
    rgw = gw * radix
    groups = cardinality * radix
    cin_g, cout_g = gw // groups, rgw // groups
    x = jnp.transpose(x_nchw, (0, 2, 3, 1)).astype(jnp.float32)                    # NHWC

    o = jnp.einsum("nhwc,oc->nhwo", x, params["conv1_w"][:, :, 0, 0])
    o = jax.nn.relu(_bn_ref(o, params["bn1"]))

    op = jnp.pad(o, ((0, 0), (1, 1), (1, 1), (0, 0)))
    outs = []
    for g in range(groups):
        xi = op[..., g * cin_g:(g + 1) * cin_g]
        wg = params["conv2_w"][g * cout_g:(g + 1) * cout_g]
        acc = jnp.zeros((N, H, W, cout_g), jnp.float32)
        for kh in range(3):
            for kw in range(3):
                acc = acc + jnp.einsum("nhwc,oc->nhwo",
                                       xi[:, kh:kh + H, kw:kw + W, :],
                                       wg[:, :, kh, kw])
        outs.append(acc)
    o2 = jax.nn.relu(_bn_ref(jnp.concatenate(outs, axis=-1), params["bn0"]))

    splits = [o2[..., r * gw:(r + 1) * gw] for r in range(radix)]
    gap = splits[0]
    for s in splits[1:]:
        gap = gap + s
    gap = jnp.mean(gap, axis=(1, 2))                                               # (N, gw)
    g1 = gap @ params["fc1_w"][:, :, 0, 0].T + params["fc1_b"]
    g1 = jax.nn.relu(_bn_ref(g1, params["bn1s"]))
    logits = g1 @ params["fc2_w"][:, :, 0, 0].T + params["fc2_b"]
    if radix > 1:
        att = jax.nn.softmax(logits.reshape(N, radix, gw), axis=1).reshape(N, rgw)
    else:
        att = jax.nn.sigmoid(logits)
    attended = att[:, None, None, 0:gw] * splits[0]
    for r in range(1, radix):
        attended = attended + att[:, None, None, r * gw:(r + 1) * gw] * splits[r]

    o3 = jnp.einsum("nhwc,oc->nhwo", attended, params["conv3_w"][:, :, 0, 0])
    out = jax.nn.relu(_bn_ref(o3, params["bn3"]) + x)
    return jnp.transpose(out, (0, 3, 1, 2))


# ------------------------- deterministic params -------------------------

def init_params(key, inplanes, planes, radix=RADIX, cardinality=CARDINALITY,
                bottleneck_width=BOTTLENECK_WIDTH):
    gw = int(planes * (bottleneck_width / 64.0)) * cardinality
    inter = max(gw * radix // 4, 32)
    groups = cardinality * radix
    keys = jax.random.split(key, 11)

    def w(k, shape, scale=0.1):
        return scale * jax.random.normal(k, shape, jnp.float32)

    def bn(k, c):
        k1, k2, k3, k4 = jax.random.split(k, 4)
        return dict(
            gamma=jax.random.uniform(k1, (c,), jnp.float32, 0.5, 1.5),
            beta=0.1 * jax.random.normal(k2, (c,), jnp.float32),
            mean=0.1 * jax.random.normal(k3, (c,), jnp.float32),
            var=jax.random.uniform(k4, (c,), jnp.float32, 0.5, 1.5),
        )

    return {
        "conv1_w": w(keys[0], (gw, inplanes, 1, 1)),
        "bn1": bn(keys[1], gw),
        "conv2_w": w(keys[2], (gw * radix, gw // groups, 3, 3)),
        "bn0": bn(keys[3], gw * radix),
        "fc1_w": w(keys[4], (inter, gw, 1, 1)),
        "fc1_b": w(keys[5], (inter,)),
        "bn1s": bn(keys[6], inter),
        "fc2_w": w(keys[7], (gw * radix, inter, 1, 1)),
        "fc2_b": w(keys[8], (gw * radix,)),
        "conv3_w": w(keys[9], (planes * 4, gw, 1, 1)),
        "bn3": bn(keys[10], planes * 4),
    }


# ------------------------- main -------------------------

if __name__ == "__main__":
    N, H, W = 2, 16, 16
    planes = 32
    inplanes = planes * 4  # downsample=None: residual add needs matching channel count

    key = jax.random.PRNGKey(0)
    kx, kp = jax.random.split(key)
    x = jax.random.normal(kx, (N, inplanes, H, W), jnp.float32)
    params = init_params(kp, inplanes, planes)
    prep = prepare_params(params)

    fwd = jax.jit(bottleneck_forward)
    out = jax.block_until_ready(fwd(x, prep))

    assert out.shape == (N, planes * 4, H, W), out.shape
    out_f32 = out.astype(jnp.float32)
    assert bool(jnp.all(jnp.isfinite(out_f32)))
    assert bool(jnp.all(out_f32 >= 0.0))  # final ReLU

    ref = reference_forward(x, params)
    assert bool(jnp.allclose(out_f32, ref, atol=0.1, rtol=0.1)), \
        float(jnp.max(jnp.abs(out_f32 - ref)))

    print("KERNEL_OK")
</pallas_src>

<mosaic_0001>
module attributes {stable_mosaic.version = 11 : i64} {
  func.func @conv12_kernel(%arg0: i32, %arg1: i32, %arg2: memref<1x16x16x128xbf16, #tpu.memory_space<vmem>>, %arg3: memref<128x32xbf16, #tpu.memory_space<vmem>>, %arg4: memref<1x32xf32, #tpu.memory_space<vmem>>, %arg5: memref<1x32xf32, #tpu.memory_space<vmem>>, %arg6: memref<288x64xbf16, #tpu.memory_space<vmem>>, %arg7: memref<1x64xf32, #tpu.memory_space<vmem>>, %arg8: memref<1x64xf32, #tpu.memory_space<vmem>>, %arg9: memref<1x128x64xbf16, #tpu.memory_space<vmem>>, %arg10: memref<1x1x32xf32, #tpu.memory_space<vmem>>, %arg11: memref<3x18x16x32xbf16, #tpu.memory_space<vmem>>, %arg12: memref<1x32xf32, #tpu.memory_space<vmem>>) attributes {dimension_semantics = [#tpu.dimension_semantics<parallel>, #tpu.dimension_semantics<arbitrary>], iteration_bounds = array<i64: 2, 2>, scalar_prefetch = 0 : i64, scratch_operands = 2 : i64, tpu.core_type = #tpu.core_type<tc>, window_params = [{transform_indices = @transform_0, window_bounds = array<i64: 1, 16, 16, 128>}, {pipeline_mode = #tpu.pipeline_mode<synchronous>, transform_indices = @transform_1, window_bounds = array<i64: 128, 32>}, {pipeline_mode = #tpu.pipeline_mode<synchronous>, transform_indices = @transform_2, window_bounds = array<i64: 1, 32>}, {pipeline_mode = #tpu.pipeline_mode<synchronous>, transform_indices = @transform_3, window_bounds = array<i64: 1, 32>}, {pipeline_mode = #tpu.pipeline_mode<synchronous>, transform_indices = @transform_4, window_bounds = array<i64: 288, 64>}, {pipeline_mode = #tpu.pipeline_mode<synchronous>, transform_indices = @transform_5, window_bounds = array<i64: 1, 64>}, {pipeline_mode = #tpu.pipeline_mode<synchronous>, transform_indices = @transform_6, window_bounds = array<i64: 1, 64>}, {transform_indices = @transform_7, window_bounds = array<i64: 1, 128, 64>}, {transform_indices = @transform_8, window_bounds = array<i64: 1, 1, 32>}]} {
    %c0_i32 = arith.constant 0 : i32
    %0 = arith.cmpi eq, %arg1, %c0_i32 : i32
    %1 = arith.extui %0 : i1 to i32
    %c0_i32_0 = arith.constant 0 : i32
    %2 = arith.cmpi ne, %1, %c0_i32_0 : i32
    scf.if %2 {
      %c0_49 = arith.constant 0 : index
      %c0_50 = arith.constant 0 : index
      %c0_51 = arith.constant 0 : index
      %c0_52 = arith.constant 0 : index
      %75 = vector.load %arg2[%c0_49, %c0_50, %c0_51, %c0_52] : memref<1x16x16x128xbf16, #tpu.memory_space<vmem>>, vector<1x16x16x128xbf16>
      %76 = vector.shape_cast %75 : vector<1x16x16x128xbf16> to vector<16x16x128xbf16>
      %77 = vector.shape_cast %76 : vector<16x16x128xbf16> to vector<256x128xbf16>
      %c0_53 = arith.constant 0 : index
      %c0_54 = arith.constant 0 : index
      %78 = vector.load %arg3[%c0_53, %c0_54] : memref<128x32xbf16, #tpu.memory_space<vmem>>, vector<128x32xbf16>
      %cst_55 = arith.constant dense<0.000000e+00> : vector<256x32xf32>
      %79 = tpu.matmul %77, %78, %cst_55 {dimension_numbers = #tpu.dot_dimension_numbers<[1], [0], [0], [1], [0, 0, 1, 1], [], []>} : vector<256x128xbf16>, vector<128x32xbf16>, vector<256x32xf32> -> vector<256x32xf32>
      %c0_56 = arith.constant 0 : index
      %c0_57 = arith.constant 0 : index
      %80 = vector.load %arg4[%c0_56, %c0_57] : memref<1x32xf32, #tpu.memory_space<vmem>>, vector<1x32xf32>
      %81 = vector.broadcast %80 : vector<1x32xf32> to vector<256x32xf32>
      %82 = arith.mulf %79, %81 : vector<256x32xf32>
      %c0_58 = arith.constant 0 : index
      %c0_59 = arith.constant 0 : index
      %83 = vector.load %arg5[%c0_58, %c0_59] : memref<1x32xf32, #tpu.memory_space<vmem>>, vector<1x32xf32>
      %84 = vector.broadcast %83 : vector<1x32xf32> to vector<256x32xf32>
      %85 = arith.addf %82, %84 : vector<256x32xf32>
      %cst_60 = arith.constant 0.000000e+00 : f32
      %86 = vector.broadcast %cst_60 : f32 to vector<256x32xf32>
      %87 = arith.maximumf %85, %86 : vector<256x32xf32>
      %88 = arith.truncf %87 : vector<256x32xf32> to vector<256x32xbf16>
      %89 = vector.shape_cast %88 : vector<256x32xbf16> to vector<16x16x32xbf16>
      %cst_61 = arith.constant 0.000000e+00 : bf16
      %90 = vector.broadcast %cst_61 : bf16 to vector<3x18x16x32xbf16>
      %c0_62 = arith.constant 0 : index
      %c0_63 = arith.constant 0 : index
      %c0_64 = arith.constant 0 : index
      %c0_65 = arith.constant 0 : index
      %91 = vector.load %arg11[%c0_62, %c0_63, %c0_64, %c0_65] : memref<3x18x16x32xbf16, #tpu.memory_space<vmem>>, vector<3x18x16x32xbf16>
      tpu.vector_store %arg11[%c0_62, %c0_63, %c0_64, %c0_65], %90 {strides = array<i32>} : memref<3x18x16x32xbf16, #tpu.memory_space<vmem>>, vector<3x18x16x32xbf16>,
      %c1_66 = arith.constant 1 : index
      %c1_67 = arith.constant 1 : index
      %c0_68 = arith.constant 0 : index
      %c0_69 = arith.constant 0 : index
      %92 = vector.load %arg11[%c1_66, %c1_67, %c0_68, %c0_69] : memref<3x18x16x32xbf16, #tpu.memory_space<vmem>>, vector<1x16x16x32xbf16>
      %93 = vector.shape_cast %92 : vector<1x16x16x32xbf16> to vector<16x16x32xbf16>
      %94 = vector.shape_cast %89 : vector<16x16x32xbf16> to vector<1x16x16x32xbf16>
      tpu.vector_store %arg11[%c1_66, %c1_67, %c0_68, %c0_69], %94 {strides = array<i32>} : memref<3x18x16x32xbf16, #tpu.memory_space<vmem>>, vector<1x16x16x32xbf16>,
      %95 = vector.extract_strided_slice %89 {offsets = [0, 0, 0], sizes = [16, 15, 32], strides = [1, 1, 1]} : vector<16x16x32xbf16> to vector<16x15x32xbf16>
      %c0_70 = arith.constant 0 : index
      %c1_71 = arith.constant 1 : index
      %c1_72 = arith.constant 1 : index
      %c0_73 = arith.constant 0 : index
      %96 = vector.load %arg11[%c0_70, %c1_71, %c1_72, %c0_73] : memref<3x18x16x32xbf16, #tpu.memory_space<vmem>>, vector<1x16x15x32xbf16>
      %97 = vector.shape_cast %96 : vector<1x16x15x32xbf16> to vector<16x15x32xbf16>
      %98 = vector.shape_cast %95 : vector<16x15x32xbf16> to vector<1x16x15x32xbf16>
      tpu.vector_store %arg11[%c0_70, %c1_71, %c1_72, %c0_73], %98 {strides = array<i32>} : memref<3x18x16x32xbf16, #tpu.memory_space<vmem>>, vector<1x16x15x32xbf16>,
      %99 = vector.extract_strided_slice %89 {offsets = [0, 1, 0], sizes = [16, 15, 32], strides = [1, 1, 1]} : vector<16x16x32xbf16> to vector<16x15x32xbf16>
      %c2_74 = arith.constant 2 : index
      %c1_75 = arith.constant 1 : index
      %c0_76 = arith.constant 0 : index
      %c0_77 = arith.constant 0 : index
      %100 = vector.load %arg11[%c2_74, %c1_75, %c0_76, %c0_77] : memref<3x18x16x32xbf16, #tpu.memory_space<vmem>>, vector<1x16x15x32xbf16>
      %101 = vector.shape_cast %100 : vector<1x16x15x32xbf16> to vector<16x15x32xbf16>
      %102 = vector.shape_cast %99 : vector<16x15x32xbf16> to vector<1x16x15x32xbf16>
      tpu.vector_store %arg11[%c2_74, %c1_75, %c0_76, %c0_77], %102 {strides = array<i32>} : memref<3x18x16x32xbf16, #tpu.memory_space<vmem>>, vector<1x16x15x32xbf16>,
      %cst_78 = arith.constant 0.000000e+00 : f32
      %103 = vector.broadcast %cst_78 : f32 to vector<1x32xf32>
      %c0_79 = arith.constant 0 : index
      %c0_80 = arith.constant 0 : index
      %104 = vector.load %arg12[%c0_79, %c0_80] : memref<1x32xf32, #tpu.memory_space<vmem>>, vector<1x32xf32>
      tpu.vector_store %arg12[%c0_79, %c0_80], %103 {strides = array<i32>} : memref<1x32xf32, #tpu.memory_space<vmem>>, vector<1x32xf32>,
    } else {
    }
    %c8_i32 = arith.constant 8 : i32
    %3 = arith.muli %arg1, %c8_i32 : i32
    %c0_i32_1 = arith.constant 0 : i32
    %4 = arith.addi %3, %c0_i32_1 : i32
    %c0 = arith.constant 0 : index
    %5 = arith.index_cast %4 : i32 to index
    %c0_2 = arith.constant 0 : index
    %c0_3 = arith.constant 0 : index
    %6 = vector.load %arg11[%c0, %5, %c0_2, %c0_3] : memref<3x18x16x32xbf16, #tpu.memory_space<vmem>>, vector<1x8x16x32xbf16>
    %7 = vector.shape_cast %6 : vector<1x8x16x32xbf16> to vector<8x16x32xbf16>
    %8 = vector.shape_cast %7 : vector<8x16x32xbf16> to vector<128x32xbf16>
    %c0_i32_4 = arith.constant 0 : i32
    %9 = arith.addi %3, %c0_i32_4 : i32
    %c1 = arith.constant 1 : index
    %10 = arith.index_cast %9 : i32 to index
    %c0_5 = arith.constant 0 : index
    %c0_6 = arith.constant 0 : index
    %11 = vector.load %arg11[%c1, %10, %c0_5, %c0_6] : memref<3x18x16x32xbf16, #tpu.memory_space<vmem>>, vector<1x8x16x32xbf16>
    %12 = vector.shape_cast %11 : vector<1x8x16x32xbf16> to vector<8x16x32xbf16>
    %13 = vector.shape_cast %12 : vector<8x16x32xbf16> to vector<128x32xbf16>
    %c0_i32_7 = arith.constant 0 : i32
    %14 = arith.addi %3, %c0_i32_7 : i32
    %c2 = arith.constant 2 : index
    %15 = arith.index_cast %14 : i32 to index
    %c0_8 = arith.constant 0 : index
    %c0_9 = arith.constant 0 : index
    %16 = vector.load %arg11[%c2, %15, %c0_8, %c0_9] : memref<3x18x16x32xbf16, #tpu.memory_space<vmem>>, vector<1x8x16x32xbf16>
    %17 = vector.shape_cast %16 : vector<1x8x16x32xbf16> to vector<8x16x32xbf16>
    %18 = vector.shape_cast %17 : vector<8x16x32xbf16> to vector<128x32xbf16>
    %c1_i32 = arith.constant 1 : i32
    %19 = arith.addi %3, %c1_i32 : i32
    %c0_10 = arith.constant 0 : index
    %20 = arith.index_cast %19 : i32 to index
    %c0_11 = arith.constant 0 : index
    %c0_12 = arith.constant 0 : index
    %21 = vector.load %arg11[%c0_10, %20, %c0_11, %c0_12] : memref<3x18x16x32xbf16, #tpu.memory_space<vmem>>, vector<1x8x16x32xbf16>
    %22 = vector.shape_cast %21 : vector<1x8x16x32xbf16> to vector<8x16x32xbf16>
    %23 = vector.shape_cast %22 : vector<8x16x32xbf16> to vector<128x32xbf16>
    %c1_i32_13 = arith.constant 1 : i32
    %24 = arith.addi %3, %c1_i32_13 : i32
    %c1_14 = arith.constant 1 : index
    %25 = arith.index_cast %24 : i32 to index
    %c0_15 = arith.constant 0 : index
    %c0_16 = arith.constant 0 : index
    %26 = vector.load %arg11[%c1_14, %25, %c0_15, %c0_16] : memref<3x18x16x32xbf16, #tpu.memory_space<vmem>>, vector<1x8x16x32xbf16>
    %27 = vector.shape_cast %26 : vector<1x8x16x32xbf16> to vector<8x16x32xbf16>
    %28 = vector.shape_cast %27 : vector<8x16x32xbf16> to vector<128x32xbf16>
    %c1_i32_17 = arith.constant 1 : i32
    %29 = arith.addi %3, %c1_i32_17 : i32
    %c2_18 = arith.constant 2 : index
    %30 = arith.index_cast %29 : i32 to index
    %c0_19 = arith.constant 0 : index
    %c0_20 = arith.constant 0 : index
    %31 = vector.load %arg11[%c2_18, %30, %c0_19, %c0_20] : memref<3x18x16x32xbf16, #tpu.memory_space<vmem>>, vector<1x8x16x32xbf16>
    %32 = vector.shape_cast %31 : vector<1x8x16x32xbf16> to vector<8x16x32xbf16>
    %33 = vector.shape_cast %32 : vector<8x16x32xbf16> to vector<128x32xbf16>
    %c2_i32 = arith.constant 2 : i32
    %34 = arith.addi %3, %c2_i32 : i32
    %c0_21 = arith.constant 0 : index
    %35 = arith.index_cast %34 : i32 to index
    %c0_22 = arith.constant 0 : index
    %c0_23 = arith.constant 0 : index
    %36 = vector.load %arg11[%c0_21, %35, %c0_22, %c0_23] : memref<3x18x16x32xbf16, #tpu.memory_space<vmem>>, vector<1x8x16x32xbf16>
    %37 = vector.shape_cast %36 : vector<1x8x16x32xbf16> to vector<8x16x32xbf16>
    %38 = vector.shape_cast %37 : vector<8x16x32xbf16> to vector<128x32xbf16>
    %c2_i32_24 = arith.constant 2 : i32
    %39 = arith.addi %3, %c2_i32_24 : i32
    %c1_25 = arith.constant 1 : index
    %40 = arith.index_cast %39 : i32 to index
    %c0_26 = arith.constant 0 : index
    %c0_27 = arith.constant 0 : index
    %41 = vector.load %arg11[%c1_25, %40, %c0_26, %c0_27] : memref<3x18x16x32xbf16, #tpu.memory_space<vmem>>, vector<1x8x16x32xbf16>
    %42 = vector.shape_cast %41 : vector<1x8x16x32xbf16> to vector<8x16x32xbf16>
    %43 = vector.shape_cast %42 : vector<8x16x32xbf16> to vector<128x32xbf16>
    %c2_i32_28 = arith.constant 2 : i32
    %44 = arith.addi %3, %c2_i32_28 : i32
    %c2_29 = arith.constant 2 : index
    %45 = arith.index_cast %44 : i32 to index
    %c0_30 = arith.constant 0 : index
    %c0_31 = arith.constant 0 : index
    %46 = vector.load %arg11[%c2_29, %45, %c0_30, %c0_31] : memref<3x18x16x32xbf16, #tpu.memory_space<vmem>>, vector<1x8x16x32xbf16>
    %47 = vector.shape_cast %46 : vector<1x8x16x32xbf16> to vector<8x16x32xbf16>
    %48 = vector.shape_cast %47 : vector<8x16x32xbf16> to vector<128x32xbf16>
    %49 = tpu.concatenate %8, %13, %18, %23, %28, %33, %38, %43, %48 in 1 : vector<128x32xbf16>, vector<128x32xbf16>, vector<128x32xbf16>, vector<128x32xbf16>, vector<128x32xbf16>, vector<128x32xbf16>, vector<128x32xbf16>, vector<128x32xbf16>, vector<128x32xbf16> -> vector<128x288xbf16>
    %c0_32 = arith.constant 0 : index
    %c0_33 = arith.constant 0 : index
    %50 = vector.load %arg6[%c0_32, %c0_33] : memref<288x64xbf16, #tpu.memory_space<vmem>>, vector<288x64xbf16>
    %cst = arith.constant dense<0.000000e+00> : vector<128x64xf32>
    %51 = tpu.matmul %49, %50, %cst {dimension_numbers = #tpu.dot_dimension_numbers<[1], [0], [0], [1], [0, 0, 1, 1], [], []>} : vector<128x288xbf16>, vector<288x64xbf16>, vector<128x64xf32> -> vector<128x64xf32>
    %c0_34 = arith.constant 0 : index
    %c0_35 = arith.constant 0 : index
    %52 = vector.load %arg7[%c0_34, %c0_35] : memref<1x64xf32, #tpu.memory_space<vmem>>, vector<1x64xf32>
    %53 = vector.broadcast %52 : vector<1x64xf32> to vector<128x64xf32>
    %54 = arith.mulf %51, %53 : vector<128x64xf32>
    %c0_36 = arith.constant 0 : index
    %c0_37 = arith.constant 0 : index
    %55 = vector.load %arg8[%c0_36, %c0_37] : memref<1x64xf32, #tpu.memory_space<vmem>>, vector<1x64xf32>
    %56 = vector.broadcast %55 : vector<1x64xf32> to vector<128x64xf32>
    %57 = arith.addf %54, %56 : vector<128x64xf32>
    %cst_38 = arith.constant 0.000000e+00 : f32
    %58 = vector.broadcast %cst_38 : f32 to vector<128x64xf32>
    %59 = arith.maximumf %57, %58 : vector<128x64xf32>
    %60 = arith.truncf %59 : vector<128x64xf32> to vector<128x64xbf16>
    %c0_39 = arith.constant 0 : index
    %c0_40 = arith.constant 0 : index
    %c0_41 = arith.constant 0 : index
    %61 = vector.load %arg9[%c0_39, %c0_40, %c0_41] : memref<1x128x64xbf16, #tpu.memory_space<vmem>>, vector<1x128x64xbf16>
    %62 = vector.shape_cast %61 : vector<1x128x64xbf16> to vector<128x64xbf16>
    %63 = vector.shape_cast %60 : vector<128x64xbf16> to vector<1x128x64xbf16>
    tpu.vector_store %arg9[%c0_39, %c0_40, %c0_41], %63 {strides = array<i32>} : memref<1x128x64xbf16, #tpu.memory_space<vmem>>, vector<1x128x64xbf16>,
    %64 = vector.extract_strided_slice %59 {offsets = [0, 0], sizes = [128, 32], strides = [1, 1]} : vector<128x64xf32> to vector<128x32xf32>
    %65 = vector.extract_strided_slice %59 {offsets = [0, 32], sizes = [128, 32], strides = [1, 1]} : vector<128x64xf32> to vector<128x32xf32>
    %66 = arith.addf %64, %65 : vector<128x32xf32>
    %c0_42 = arith.constant 0 : index
    %c0_43 = arith.constant 0 : index
    %67 = vector.load %arg12[%c0_42, %c0_43] : memref<1x32xf32, #tpu.memory_space<vmem>>, vector<1x32xf32>
    %cst_44 = arith.constant dense<0.000000e+00> : vector<32xf32>
    %68 = vector.multi_reduction <add>, %66, %cst_44 [0] : vector<128x32xf32> to vector<32xf32>
    %69 = vector.shape_cast %68 : vector<32xf32> to vector<1x32xf32>
    %70 = arith.addf %67, %69 : vector<1x32xf32>
    %c0_45 = arith.constant 0 : index
    %c0_46 = arith.constant 0 : index
    %71 = vector.load %arg12[%c0_45, %c0_46] : memref<1x32xf32, #tpu.memory_space<vmem>>, vector<1x32xf32>
    tpu.vector_store %arg12[%c0_45, %c0_46], %70 {strides = array<i32>} : memref<1x32xf32, #tpu.memory_space<vmem>>, vector<1x32xf32>,
    %c1_i32_47 = arith.constant 1 : i32
    %72 = arith.cmpi eq, %arg1, %c1_i32_47 : i32
    %73 = arith.extui %72 : i1 to i32
    %c0_i32_48 = arith.constant 0 : i32
    %74 = arith.cmpi ne, %73, %c0_i32_48 : i32
    scf.if %74 {
      %c0_49 = arith.constant 0 : index
      %c0_50 = arith.constant 0 : index
      %75 = vector.load %arg12[%c0_49, %c0_50] : memref<1x32xf32, #tpu.memory_space<vmem>>, vector<1x32xf32>
      %cst_51 = arith.constant 3.906250e-03 : f32
      %76 = vector.broadcast %cst_51 : f32 to vector<1x32xf32>
      %77 = arith.mulf %75, %76 : vector<1x32xf32>
      %c0_52 = arith.constant 0 : index
      %c0_53 = arith.constant 0 : index
      %c0_54 = arith.constant 0 : index
      %78 = vector.load %arg10[%c0_52, %c0_53, %c0_54] : memref<1x1x32xf32, #tpu.memory_space<vmem>>, vector<1x1x32xf32>
      %79 = vector.shape_cast %78 : vector<1x1x32xf32> to vector<1x32xf32>
      %80 = vector.shape_cast %77 : vector<1x32xf32> to vector<1x1x32xf32>
      tpu.vector_store %arg10[%c0_52, %c0_53, %c0_54], %80 {strides = array<i32>} : memref<1x1x32xf32, #tpu.memory_space<vmem>>, vector<1x1x32xf32>,
    } else {
    }
    return
  }
  func.func @transform_0(%arg0: i32, %arg1: i32) -> (i32, i32, i32, i32) {
    %c0_i32 = arith.constant 0 : i32
    %c0_i32_0 = arith.constant 0 : i32
    %c0_i32_1 = arith.constant 0 : i32
    %c0_i32_2 = arith.constant 0 : i32
    return %arg0, %c0_i32, %c0_i32_0, %c0_i32_1 : i32, i32, i32, i32
  }
  func.func @transform_1(%arg0: i32, %arg1: i32) -> (i32, i32) {
    %c0_i32 = arith.constant 0 : i32
    %c0_i32_0 = arith.constant 0 : i32
    %c0_i32_1 = arith.constant 0 : i32
    return %c0_i32, %c0_i32_0 : i32, i32
  }
  func.func @transform_2(%arg0: i32, %arg1: i32) -> (i32, i32) {
    %c0_i32 = arith.constant 0 : i32
    %c0_i32_0 = arith.constant 0 : i32
    %c0_i32_1 = arith.constant 0 : i32
    return %c0_i32, %c0_i32_0 : i32, i32
  }
  func.func @transform_3(%arg0: i32, %arg1: i32) -> (i32, i32) {
    %c0_i32 = arith.constant 0 : i32
    %c0_i32_0 = arith.constant 0 : i32
    %c0_i32_1 = arith.constant 0 : i32
    return %c0_i32, %c0_i32_0 : i32, i32
  }
  func.func @transform_4(%arg0: i32, %arg1: i32) -> (i32, i32) {
    %c0_i32 = arith.constant 0 : i32
    %c0_i32_0 = arith.constant 0 : i32
    %c0_i32_1 = arith.constant 0 : i32
    return %c0_i32, %c0_i32_0 : i32, i32
  }
  func.func @transform_5(%arg0: i32, %arg1: i32) -> (i32, i32) {
    %c0_i32 = arith.constant 0 : i32
    %c0_i32_0 = arith.constant 0 : i32
    %c0_i32_1 = arith.constant 0 : i32
    return %c0_i32, %c0_i32_0 : i32, i32
  }
  func.func @transform_6(%arg0: i32, %arg1: i32) -> (i32, i32) {
    %c0_i32 = arith.constant 0 : i32
    %c0_i32_0 = arith.constant 0 : i32
    %c0_i32_1 = arith.constant 0 : i32
    return %c0_i32, %c0_i32_0 : i32, i32
  }
  func.func @transform_7(%arg0: i32, %arg1: i32) -> (i32, i32, i32) {
    %c0_i32 = arith.constant 0 : i32
    %c0_i32_0 = arith.constant 0 : i32
    return %arg0, %arg1, %c0_i32 : i32, i32, i32
  }
  func.func @transform_8(%arg0: i32, %arg1: i32) -> (i32, i32, i32) {
    %c0_i32 = arith.constant 0 : i32
    %c0_i32_0 = arith.constant 0 : i32
    %c0_i32_1 = arith.constant 0 : i32
    return %arg0, %c0_i32, %c0_i32_0 : i32, i32, i32
  }
}

module attributes {stable_mosaic.version = 11 : i64} {
  func.func @attention_kernel(%arg0: memref<2x32xf32, #tpu.memory_space<vmem>>, %arg1: memref<32x32xf32, #tpu.memory_space<vmem>>, %arg2: memref<1x32xf32, #tpu.memory_space<vmem>>, %arg3: memref<32x64xf32, #tpu.memory_space<vmem>>, %arg4: memref<1x64xf32, #tpu.memory_space<vmem>>, %arg5: memref<2x64xf32, #tpu.memory_space<vmem>>) attributes {dimension_semantics = [], scalar_prefetch = 0 : i64, scratch_operands = 0 : i64, tpu.core_type = #tpu.core_type<tc>} {
    %c0 = arith.constant 0 : index
    %c0_0 = arith.constant 0 : index
    %0 = vector.load %arg0[%c0, %c0_0] : memref<2x32xf32, #tpu.memory_space<vmem>>, vector<2x32xf32>
    %c0_1 = arith.constant 0 : index
    %c0_2 = arith.constant 0 : index
    %1 = vector.load %arg1[%c0_1, %c0_2] : memref<32x32xf32, #tpu.memory_space<vmem>>, vector<32x32xf32>
    %cst = arith.constant dense<0.000000e+00> : vector<2x32xf32>
    %2 = tpu.matmul %0, %1, %cst {dimension_numbers = #tpu.dot_dimension_numbers<[1], [0], [0], [1], [0, 0, 1, 1], [], []>} : vector<2x32xf32>, vector<32x32xf32>, vector<2x32xf32> -> vector<2x32xf32>
    %c0_3 = arith.constant 0 : index
    %c0_4 = arith.constant 0 : index
    %3 = vector.load %arg2[%c0_3, %c0_4] : memref<1x32xf32, #tpu.memory_space<vmem>>, vector<1x32xf32>
    %4 = vector.broadcast %3 : vector<1x32xf32> to vector<2x32xf32>
    %5 = arith.addf %2, %4 : vector<2x32xf32>
    %cst_5 = arith.constant 0.000000e+00 : f32
    %6 = vector.broadcast %cst_5 : f32 to vector<2x32xf32>
    %7 = arith.maximumf %5, %6 : vector<2x32xf32>
    %c0_6 = arith.constant 0 : index
    %c0_7 = arith.constant 0 : index
    %8 = vector.load %arg3[%c0_6, %c0_7] : memref<32x64xf32, #tpu.memory_space<vmem>>, vector<32x64xf32>
    %cst_8 = arith.constant dense<0.000000e+00> : vector<2x64xf32>
    %9 = tpu.matmul %7, %8, %cst_8 {dimension_numbers = #tpu.dot_dimension_numbers<[1], [0], [0], [1], [0, 0, 1, 1], [], []>} : vector<2x32xf32>, vector<32x64xf32>, vector<2x64xf32> -> vector<2x64xf32>
    %c0_9 = arith.constant 0 : index
    %c0_10 = arith.constant 0 : index
    %10 = vector.load %arg4[%c0_9, %c0_10] : memref<1x64xf32, #tpu.memory_space<vmem>>, vector<1x64xf32>
    %11 = vector.broadcast %10 : vector<1x64xf32> to vector<2x64xf32>
    %12 = arith.addf %9, %11 : vector<2x64xf32>
    %13 = vector.extract_strided_slice %12 {offsets = [0, 0], sizes = [2, 32], strides = [1, 1]} : vector<2x64xf32> to vector<2x32xf32>
    %14 = vector.extract_strided_slice %12 {offsets = [0, 32], sizes = [2, 32], strides = [1, 1]} : vector<2x64xf32> to vector<2x32xf32>
    %15 = arith.maximumf %13, %14 : vector<2x32xf32>
    %16 = arith.subf %13, %15 : vector<2x32xf32>
    %17 = math.exp %16 : vector<2x32xf32>
    %18 = arith.subf %14, %15 : vector<2x32xf32>
    %19 = math.exp %18 : vector<2x32xf32>
    %20 = arith.addf %17, %19 : vector<2x32xf32>
    %cst_11 = arith.constant 1.000000e+00 : f32
    %21 = vector.broadcast %cst_11 : f32 to vector<2x32xf32>
    %22 = arith.divf %21, %20 : vector<2x32xf32>
    %23 = arith.mulf %17, %22 : vector<2x32xf32>
    %c0_12 = arith.constant 0 : index
    %c0_13 = arith.constant 0 : index
    %24 = vector.load %arg5[%c0_12, %c0_13] : memref<2x64xf32, #tpu.memory_space<vmem>>, vector<2x32xf32>
    tpu.vector_store %arg5[%c0_12, %c0_13], %23 {strides = array<i32>} : memref<2x64xf32, #tpu.memory_space<vmem>>, vector<2x32xf32>,
    %25 = arith.mulf %19, %22 : vector<2x32xf32>
    %c0_14 = arith.constant 0 : index
    %c32 = arith.constant 32 : index
    %26 = vector.load %arg5[%c0_14, %c32] : memref<2x64xf32, #tpu.memory_space<vmem>>, vector<2x32xf32>
    tpu.vector_store %arg5[%c0_14, %c32], %25 {strides = array<i32>} : memref<2x64xf32, #tpu.memory_space<vmem>>, vector<2x32xf32>,
    return
  }
}

module attributes {stable_mosaic.version = 11 : i64} {
  func.func @conv3_kernel(%arg0: i32, %arg1: i32, %arg2: i32, %arg3: memref<1x256x64xbf16, #tpu.memory_space<vmem>>, %arg4: memref<1x64x1xf32, #tpu.memory_space<vmem>>, %arg5: memref<64x128xbf16, #tpu.memory_space<vmem>>, %arg6: memref<1x128xf32, #tpu.memory_space<vmem>>, %arg7: memref<1x128xf32, #tpu.memory_space<vmem>>, %arg8: memref<1x256x128xbf16, #tpu.memory_space<vmem>>, %arg9: memref<1x256x128xbf16, #tpu.memory_space<vmem>>) attributes {dimension_semantics = [#tpu.dimension_semantics<parallel>, #tpu.dimension_semantics<parallel>, #tpu.dimension_semantics<parallel>], iteration_bounds = array<i64: 2, 1, 1>, scalar_prefetch = 0 : i64, scratch_operands = 0 : i64, tpu.core_type = #tpu.core_type<tc>, window_params = [{transform_indices = @transform_0, window_bounds = array<i64: 1, 256, 64>}, {transform_indices = @transform_1, window_bounds = array<i64: 1, 64, 1>}, {transform_indices = @transform_2, window_bounds = array<i64: 64, 128>}, {transform_indices = @transform_3, window_bounds = array<i64: 1, 128>}, {transform_indices = @transform_4, window_bounds = array<i64: 1, 128>}, {transform_indices = @transform_5, window_bounds = array<i64: 1, 256, 128>}, {transform_indices = @transform_6, window_bounds = array<i64: 1, 256, 128>}]} {
    %c0 = arith.constant 0 : index
    %c0_0 = arith.constant 0 : index
    %0 = vector.load %arg5[%c0, %c0_0] : memref<64x128xbf16, #tpu.memory_space<vmem>>, vector<64x128xbf16>
    %c0_1 = arith.constant 0 : index
    %c0_2 = arith.constant 0 : index
    %c0_3 = arith.constant 0 : index
    %1 = vector.load %arg4[%c0_1, %c0_2, %c0_3] : memref<1x64x1xf32, #tpu.memory_space<vmem>>, vector<1x64x1xf32>
    %2 = vector.shape_cast %1 : vector<1x64x1xf32> to vector<64x1xf32>
    %3 = arith.truncf %2 : vector<64x1xf32> to vector<64x1xbf16>
    %4 = vector.broadcast %3 : vector<64x1xbf16> to vector<64x128xbf16>
    %5 = arith.mulf %0, %4 : vector<64x128xbf16>
    %c0_4 = arith.constant 0 : index
    %c0_5 = arith.constant 0 : index
    %c0_6 = arith.constant 0 : index
    %6 = vector.load %arg3[%c0_4, %c0_5, %c0_6] : memref<1x256x64xbf16, #tpu.memory_space<vmem>>, vector<1x256x64xbf16>
    %7 = vector.shape_cast %6 : vector<1x256x64xbf16> to vector<256x64xbf16>
    %cst = arith.constant dense<0.000000e+00> : vector<256x128xf32>
    %8 = tpu.matmul %7, %5, %cst {dimension_numbers = #tpu.dot_dimension_numbers<[1], [0], [0], [1], [0, 0, 1, 1], [], []>} : vector<256x64xbf16>, vector<64x128xbf16>, vector<256x128xf32> -> vector<256x128xf32>
    %c0_7 = arith.constant 0 : index
    %c0_8 = arith.constant 0 : index
    %9 = vector.load %arg6[%c0_7, %c0_8] : memref<1x128xf32, #tpu.memory_space<vmem>>, vector<1x128xf32>
    %10 = vector.broadcast %9 : vector<1x128xf32> to vector<256x128xf32>
    %11 = arith.mulf %8, %10 : vector<256x128xf32>
    %c0_9 = arith.constant 0 : index
    %c0_10 = arith.constant 0 : index
    %12 = vector.load %arg7[%c0_9, %c0_10] : memref<1x128xf32, #tpu.memory_space<vmem>>, vector<1x128xf32>
    %13 = vector.broadcast %12 : vector<1x128xf32> to vector<256x128xf32>
    %14 = arith.addf %11, %13 : vector<256x128xf32>
    %c0_11 = arith.constant 0 : index
    %c0_12 = arith.constant 0 : index
    %c0_13 = arith.constant 0 : index
    %15 = vector.load %arg8[%c0_11, %c0_12, %c0_13] : memref<1x256x128xbf16, #tpu.memory_space<vmem>>, vector<1x256x128xbf16>
    %16 = vector.shape_cast %15 : vector<1x256x128xbf16> to vector<256x128xbf16>
    %17 = arith.extf %16 : vector<256x128xbf16> to vector<256x128xf32>
    %18 = arith.addf %14, %17 : vector<256x128xf32>
    %cst_14 = arith.constant 0.000000e+00 : f32
    %19 = vector.broadcast %cst_14 : f32 to vector<256x128xf32>
    %20 = arith.maximumf %18, %19 : vector<256x128xf32>
    %21 = arith.truncf %20 : vector<256x128xf32> to vector<256x128xbf16>
    %c0_15 = arith.constant 0 : index
    %c0_16 = arith.constant 0 : index
    %c0_17 = arith.constant 0 : index
    %22 = vector.load %arg9[%c0_15, %c0_16, %c0_17] : memref<1x256x128xbf16, #tpu.memory_space<vmem>>, vector<1x256x128xbf16>
    %23 = vector.shape_cast %22 : vector<1x256x128xbf16> to vector<256x128xbf16>
    %24 = vector.shape_cast %21 : vector<256x128xbf16> to vector<1x256x128xbf16>
    tpu.vector_store %arg9[%c0_15, %c0_16, %c0_17], %24 {strides = array<i32>} : memref<1x256x128xbf16, #tpu.memory_space<vmem>>, vector<1x256x128xbf16>,
    return
  }
  func.func @transform_0(%arg0: i32, %arg1: i32, %arg2: i32) -> (i32, i32, i32) {
    %c0_i32 = arith.constant 0 : i32
    %c0_i32_0 = arith.constant 0 : i32
    return %arg0, %arg1, %c0_i32 : i32, i32, i32
  }
  func.func @transform_1(%arg0: i32, %arg1: i32, %arg2: i32) -> (i32, i32, i32) {
    %c0_i32 = arith.constant 0 : i32
    %c0_i32_0 = arith.constant 0 : i32
    %c0_i32_1 = arith.constant 0 : i32
    return %arg0, %c0_i32, %c0_i32_0 : i32, i32, i32
  }
  func.func @transform_2(%arg0: i32, %arg1: i32, %arg2: i32) -> (i32, i32) {
    %c0_i32 = arith.constant 0 : i32
    %c0_i32_0 = arith.constant 0 : i32
    return %c0_i32, %arg2 : i32, i32
  }
  func.func @transform_3(%arg0: i32, %arg1: i32, %arg2: i32) -> (i32, i32) {
    %c0_i32 = arith.constant 0 : i32
    %c0_i32_0 = arith.constant 0 : i32
    return %c0_i32, %arg2 : i32, i32
  }
  func.func @transform_4(%arg0: i32, %arg1: i32, %arg2: i32) -> (i32, i32) {
    %c0_i32 = arith.constant 0 : i32
    %c0_i32_0 = arith.constant 0 : i32
    return %c0_i32, %arg2 : i32, i32
  }
  func.func @transform_5(%arg0: i32, %arg1: i32, %arg2: i32) -> (i32, i32, i32) {
    %c0_i32 = arith.constant 0 : i32
    return %arg0, %arg1, %arg2 : i32, i32, i32
  }
  func.func @transform_6(%arg0: i32, %arg1: i32, %arg2: i32) -> (i32, i32, i32) {
    %c0_i32 = arith.constant 0 : i32
    return %arg0, %arg1, %arg2 : i32, i32, i32
  }
}

</mosaic_0001>

<llo_original>
// kernel: bottleneck_forward.4
$region0: #{bottleneck_forward.4}
  #allocation0 [shape = 'u32[]', space=smem, size = 0x4, offset = 0x4, fixed_abs, tag = 'smem constant byte address 0x4 - core index']
  #allocation1 [shape = 'u32[72,128]{1,0:T(1,128)}', space=vmem, size = 0x9000, scoped, tag = 'internal scratch']
  %s0 = inlined_call_operand.vmem [shape: f32[2,32], index: 0, kind: input, shape index: {}]
  %s1 = inlined_call_operand.vmem [shape: f32[32,32], index: 1, kind: input, shape index: {}]
  %s2 = inlined_call_operand.vmem [shape: f32[1,32], index: 2, kind: input, shape index: {}]
  %s3 = inlined_call_operand.vmem [shape: f32[32,64], index: 3, kind: input, shape index: {}]
  %s4 = inlined_call_operand.vmem [shape: f32[1,64], index: 4, kind: input, shape index: {}]
  %s5 = inlined_call_operand.vmem [shape: f32[2,64], index: 5, kind: output, shape index: {}]
  %s6 = sld [smem:[#allocation0]]
  $region30: #{bottleneck_forward.4} parent=0
    _
  %s8 = ssub.s32 1, %s6
  %s9 = scalar_select 0, %s8, %s6
  // Predicated region
  $region2: #{bottleneck_forward.4} parent=0 // pred_check
    _
  $region3: #{bottleneck_forward.4} parent=0 // pred_check_branch
    %11 = sbr.rel (0) target = $region5
  $region4: #{bottleneck_forward.4} parent=0 // pred_region
    _
  $region5: #{bottleneck_forward.4} parent=0 // pred_fallthru
    _
  // Predicated region
  $region6: #{bottleneck_forward.4} parent=0 // pred_check
    _
  $region7: #{bottleneck_forward.4} parent=0 // pred_check_branch
    %13 = sbr.rel (0) target = $region9
  $region8: #{bottleneck_forward.4} parent=0 // pred_region
    _
  $region9: #{bottleneck_forward.4} parent=0 // pred_fallthru
    _
  // Predicated region
  $region10: #{bottleneck_forward.4} parent=0 // pred_check
    _
  $region11: #{bottleneck_forward.4} parent=0 // pred_check_branch
    %15 = sbr.rel (0) target = $region13
  $region12: #{bottleneck_forward.4} parent=0 // pred_region
    _
  $region13: #{bottleneck_forward.4} parent=0 // pred_fallthru
    _
  // Predicated region
  $region14: #{bottleneck_forward.4} parent=0 // pred_check
    _
  $region15: #{bottleneck_forward.4} parent=0 // pred_check_branch
    %17 = sbr.rel (0) target = $region17
  $region16: #{bottleneck_forward.4} parent=0 // pred_region
    _
  $region17: #{bottleneck_forward.4} parent=0 // pred_fallthru
    _
  // Predicated region
  $region18: #{bottleneck_forward.4} parent=0 // pred_check
    _
  $region19: #{bottleneck_forward.4} parent=0 // pred_check_branch
    %19 = sbr.rel (0) target = $region21
  $region20: #{bottleneck_forward.4} parent=0 // pred_region
    _
  $region21: #{bottleneck_forward.4} parent=0 // pred_fallthru
    _
  %v20 = vld [vmem:[%s0] sm:$0x3]
  %v21 = vld [vmem:[%s1] sm:$0xff]
  %v22 = vld [vmem:[%s1 + $0x8] sm:$0xff]
  %v23 = vld [vmem:[%s1 + $0x10] sm:$0xff]
  %v24 = vld [vmem:[%s1 + $0x18] sm:$0xff]
  %v25 = vld [vmem:[%s2] sm:$0x1]
  %v27 = vperm.slane %v25, 0
  %vm29 = vcmask 261120
  %v31 = vsel %vm29, %v20, 0
  %33 = vmatpush.msra.mxu0 0.0
  %34 = vmatpush.msra.mxu0 0.0
  %35 = vmatpush.msra.mxu0 0.0
  %36 = vmatpush.msra.mxu0 0.0
  %37 = vmatpush.msra.mxu0 0.0
  %38 = vmatpush.msra.mxu0 0.0
  %39 = vmatpush.msra.mxu0 0.0
  %40 = vmatpush.msra.mxu0 0.0
  %41 = vmatpush.msra.mxu0 0.0
  %42 = vmatpush.msra.mxu0 0.0
  %43 = vmatpush.msra.mxu0 0.0
  %44 = vmatpush.msra.mxu0 0.0
  %45 = vmatpush.msra.mxu0 %v24
  %46 = vmatpush.msra.mxu0 %v23
  %47 = vmatpush.msra.mxu0 %v22
  %48 = vmatpush.msra.mxu0 %v21
  %49 = vmatmul.f32.gmra.mxu0 %v31
  %v50 = vpop.f32.mrf.mxu0
  %v51 = vadd.f32 %v27, %v50
  %52 = vdwg.mxu0
  %v53 = vmax.f32 %v51, 0.0
  %v54 = vld [vmem:[%s3] sm:$0xff]
  %v55 = vld [vmem:[%s3 + $0x8] sm:$0xff]
  %v56 = vld [vmem:[%s3 + $0x10] sm:$0xff]
  %v57 = vld [vmem:[%s3 + $0x18] sm:$0xff]
  %v58 = vld [vmem:[%s4] sm:$0x1]
  %v60 = vperm.slane %v58, 0
  %v63 = vsel %vm29, %v53, 0
  %65 = vmatpush.msra.mxu0 0.0
  %66 = vmatpush.msra.mxu0 0.0
  %67 = vmatpush.msra.mxu0 0.0
  %68 = vmatpush.msra.mxu0 0.0
  %69 = vmatpush.msra.mxu0 0.0
  %70 = vmatpush.msra.mxu0 0.0
  %71 = vmatpush.msra.mxu0 0.0
  %72 = vmatpush.msra.mxu0 0.0
  %73 = vmatpush.msra.mxu0 0.0
  %74 = vmatpush.msra.mxu0 0.0
  %75 = vmatpush.msra.mxu0 0.0
  %76 = vmatpush.msra.mxu0 0.0
  %77 = vmatpush.msra.mxu0 %v57
  %78 = vmatpush.msra.mxu0 %v56
  %79 = vmatpush.msra.mxu0 %v55
  %80 = vmatpush.msra.mxu0 %v54
  %81 = vmatmul.f32.gmra.mxu0 %v63
  %v82 = vpop.f32.mrf.mxu0
  %v83 = vadd.f32 %v60, %v82
  %84 = vdwg.mxu0
  %86 = vrot.lane.b32.xlu0 %v83, 96
  %v87 = vpop.permute.xlu0 %86
  %v89 = vmax.f32 %v83, %v87
  %v90 = vsub.f32 %v83, %v89
  %v91 = vmul.f32 %v90, 1.442695
  %v92 = vpow.pop %v91
  %94 = vrot.lane.b32.xlu0 %v89, 32
  %v95 = vpop.permute.xlu0 %94
  %v97 = vsub.f32 %v83, %v95
  %v98 = vmul.f32 %v97, 1.442695
  %v99 = vpow.pop %v98
  %101 = vrot.lane.b32.xlu0 %v99, 96
  %v102 = vpop.permute.xlu0 %101
  %v104 = vadd.f32 %v92, %v102
  %v105 = vrcp.pop %v104
  %v106 = vmul.f32 %v104, %v105
  %v107 = vsub.f32 1.0, %v106
  %v108 = vmul.f32 %v105, %v107
  %v109 = vadd.f32 %v105, %v108
  %vm110 = vweird.f32 %v104
  %vm111 = vweird.f32 %v105
  %vm112 = vmor %vm110, %vm111
  %v113 = vsel %vm112, %v105, %v109
  %v114 = vand.u32 2147483647, %v104
  %vm115 = vcmp.eq.f32.partialorder %v114, 8.507059e+37
  %v116 = vand.u32 %v104, 2147483648
  %v117 = vor.u32 1.1754944e-38, %v116
  %v118 = vsel %vm115, %v117, %v113
  %v119 = vmul.f32 1.0, %v118
  %v120 = vmul.f32 %v92, %v119
  %vm121 = vcmask 254976
  %122 = vst.msk [vmem:[%s5] sm:$0x3] %vm121, %v120
  %124 = vrot.lane.b32.xlu0 %v119, 32
  %v125 = vpop.permute.xlu0 %124
  %v127 = vmul.f32 %v99, %v125
  %vm128 = vcmask 517376
  %129 = vst.msk [vmem:[%s5] sm:$0x3] %vm128, %v127
  // Predicated region
  $region22: #{bottleneck_forward.4} parent=0 // pred_check
    _
  $region23: #{bottleneck_forward.4} parent=0 // pred_check_branch
    %131 = sbr.rel (0) target = $region25
  $region24: #{bottleneck_forward.4} parent=0 // pred_region
    _
  $region25: #{bottleneck_forward.4} parent=0 // pred_fallthru
    _
  // Predicated region
  $region26: #{bottleneck_forward.4} parent=0 // pred_check
    _
  $region27: #{bottleneck_forward.4} parent=0 // pred_check_branch
    %133 = sbr.rel (0) target = $region29
  $region28: #{bottleneck_forward.4} parent=0 // pred_region
    _
  $region29: #{bottleneck_forward.4} parent=0 // pred_fallthru
    _

// kernel: bottleneck_forward.5
$region0: #{bottleneck_forward.5}
  #allocation0 [shape = 'u32[]', space=smem, size = 0x4, offset = 0x4, fixed_abs, tag = 'smem constant byte address 0x4 - core index']
  #allocation1 [shape = 'u32[72,128]{1,0:T(1,128)}', space=vmem, size = 0x9000, scoped, tag = 'internal scratch']
  %s0 = inlined_call_operand.vmem [shape: bf16[2,256,64], index: 0, kind: input, shape index: {}]
  %s1 = inlined_call_operand.vmem [shape: f32[2,64,1], index: 1, kind: input, shape index: {}]
  %s2 = inlined_call_operand.vmem [shape: bf16[64,128], index: 2, kind: input, shape index: {}]
  %s3 = inlined_call_operand.vmem [shape: f32[1,128], index: 3, kind: input, shape index: {}]
  %s4 = inlined_call_operand.vmem [shape: f32[1,128], index: 4, kind: input, shape index: {}]
  %s5 = inlined_call_operand.vmem [shape: bf16[2,256,128], index: 5, kind: input, shape index: {}]
  %s6 = inlined_call_operand.hbm [shape: bf16[2,256,128], index: 6, kind: output, shape index: {}]
  %s7 = sld [smem:[#allocation0]]
  $region57: #{bottleneck_forward.5} parent=0
    _
  %s9 = ssub.s32 1, %s7
  %s10 = scalar_select 0, %s9, %s7
  $region1: #{bottleneck_forward.5} parent=0
    #allocation2 [shape = 'u8[131072]{0}', space=vmem, size = 0x20000, scoped, tag = 'output window, operand 0']
    #allocation3 [shape = 's32[2]{0}', space=sflag, size = 0x8, scoped, tag = 'scoped memory for bottleneck_forward.5']
    %11 = vsyncpa [#allocation3], 0
    %s12 = scalar_lea.sflag [#allocation3], 1
    %13 = vsyncpa %s12, 0
    loop: start=0, step=1, limit=4
    $region2: #{bottleneck_forward.5} parent=1 // loop_pre_header
      _
    $region3: #{bottleneck_forward.5} parent=1 // loop_header
      %s15 = sphi 0, %s19
      %p16 = scmp.ge.s32.totalorder %s15, 4
      %s22 = sphi 0, %s41
      %s23 = sphi 0, %s37
      %s24 = sphi 0, %s33
      %s25 = sphi 0, %s22
      %s26 = sphi 0, %s23
      %s27 = sphi 0, %s24
      %s28 = sphi 0, %s25
      %s29 = sphi 0, %s26
      %s30 = sphi 0, %s27
      %s46 = sphi 0, %s48
      %s49 = sphi 0, %s46
      %s50 = sphi 0, %s49
      %s66 = sphi 0, %s50
      %s72 = sphi 0, %s74
      %s75 = sphi 0, %s72
      %s76 = sphi 0, %s75
      %s92 = sphi 0, %s76
      %s98 = sphi 0, %s100
      %s101 = sphi 0, %s98
      %s102 = sphi 0, %s101
      %s118 = sphi 0, %s102
      %s124 = sphi 0, %s126
      %s127 = sphi 0, %s124
      %s128 = sphi 0, %s127
      %s144 = sphi 0, %s128
      %s150 = sphi 0, %s152
      %s153 = sphi 0, %s150
      %s154 = sphi 0, %s153
      %s170 = sphi 0, %s154
      %s180 = sphi 0, %s182
      %s183 = sphi 0, %s180
      %s184 = sphi 0, %s183
      %s200 = sphi 0, %s184
      %s210 = sphi 0, %s212
      %s213 = sphi 0, %s210
      %s214 = sphi 0, %s213
      %s230 = sphi 0, %s214
    $region4: #{bottleneck_forward.5} parent=1 // loop_header_branch
      %18 = sbr.rel (%p16) target = $region8
    $region5: #{bottleneck_forward.5} parent=1 // loop_body
      %s20 = ssub.s32 %s15, 1
      %s21 = ssub.s32 %s15, 2
      %s31 = sadd.s32 1, %s24
      %p32 = scmp.ge.s32.totalorder %s31, 1
      %s33 = scalar_select %p32, 0, %s31
      %s34 = sadd.s32 1, %s23
      %s35 = scalar_select %p32, %s34, %s23
      %p36 = scmp.ge.s32.totalorder %s35, 1
      %s37 = scalar_select %p36, 0, %s35
      %s38 = sadd.s32 1, %s22
      %s39 = scalar_select %p36, %s38, %s22
      %p40 = scmp.ge.s32.totalorder %s39, 2
      %s41 = scalar_select %p40, 0, %s39
      %s42 = ssub.s32 %s22, %s41
      %s43 = ssub.s32 %s23, %s37
      %s44 = sor.u32 %s42, %s43
      %p45 = scmp.eq.s32.totalorder %s44, 0
      %s47 = sadd.s32 %s46, 1
      %s48 = scalar_select %p45, %s46, %s47
      %p51 = pneg %p45
      %p52 = scmp.eq.s32.totalorder %s15, 1
      %p53 = por %p51, %p52
      %p54 = scmp.ne.s32.totalorder %s46, %s49
      %p55 = scmp.eq.s32.totalorder %s15, 0
      %p56 = por %p54, %p55
      %p57 = scmp.ne.s32.totalorder %s46, %s49
      %p58 = scmp.eq.s32.totalorder %s20, 1
      %p59 = por %p57, %p58
      %p60 = scmp.ne.s32.totalorder %s49, %s50
      %p61 = scmp.eq.s32.totalorder %s20, 0
      %p62 = por %p60, %p61
      %p63 = scmp.ne.s32.totalorder %s49, %s50
      %p64 = scmp.eq.s32.totalorder %s21, 1
      %p65 = por %p63, %p64
      %p67 = scmp.ne.s32.totalorder %s50, %s66
      %p68 = scmp.eq.s32.totalorder %s21, 0
      %p69 = por %p67, %p68
      %s70 = ssub.s32 %s22, %s41
      %p71 = scmp.eq.s32.totalorder %s70, 0
      %s73 = sadd.s32 %s72, 1
      %s74 = scalar_select %p71, %s72, %s73
      %p77 = pneg %p71
      %p78 = scmp.eq.s32.totalorder %s15, 1
      %p79 = por %p77, %p78
      %p80 = scmp.ne.s32.totalorder %s72, %s75
      %p81 = scmp.eq.s32.totalorder %s15, 0
      %p82 = por %p80, %p81
      %p83 = scmp.ne.s32.totalorder %s72, %s75
      %p84 = scmp.eq.s32.totalorder %s20, 1
      %p85 = por %p83, %p84
      %p86 = scmp.ne.s32.totalorder %s75, %s76
      %p87 = scmp.eq.s32.totalorder %s20, 0
      %p88 = por %p86, %p87
      %p89 = scmp.ne.s32.totalorder %s75, %s76
      %p90 = scmp.eq.s32.totalorder %s21, 1
      %p91 = por %p89, %p90
      %p93 = scmp.ne.s32.totalorder %s76, %s92
      %p94 = scmp.eq.s32.totalorder %s21, 0
      %p95 = por %p93, %p94
      %s96 = ssub.s32 %s24, %s33
      %p97 = scmp.eq.s32.totalorder %s96, 0
      %s99 = sadd.s32 %s98, 1
      %s100 = scalar_select %p97, %s98, %s99
      %p103 = pneg %p97
      %p104 = scmp.eq.s32.totalorder %s15, 1
      %p105 = por %p103, %p104
      %p106 = scmp.ne.s32.totalorder %s98, %s101
      %p107 = scmp.eq.s32.totalorder %s15, 0
      %p108 = por %p106, %p107
      %p109 = scmp.ne.s32.totalorder %s98, %s101
      %p110 = scmp.eq.s32.totalorder %s20, 1
      %p111 = por %p109, %p110
      %p112 = scmp.ne.s32.totalorder %s101, %s102
      %p113 = scmp.eq.s32.totalorder %s20, 0
      %p114 = por %p112, %p113
      %p115 = scmp.ne.s32.totalorder %s101, %s102
      %p116 = scmp.eq.s32.totalorder %s21, 1
      %p117 = por %p115, %p116
      %p119 = scmp.ne.s32.totalorder %s102, %s118
      %p120 = scmp.eq.s32.totalorder %s21, 0
      %p121 = por %p119, %p120
      %s122 = ssub.s32 %s24, %s33
      %p123 = scmp.eq.s32.totalorder %s122, 0
      %s125 = sadd.s32 %s124, 1
      %s126 = scalar_select %p123, %s124, %s125
      %p129 = pneg %p123
      %p130 = scmp.eq.s32.totalorder %s15, 1
      %p131 = por %p129, %p130
      %p132 = scmp.ne.s32.totalorder %s124, %s127
      %p133 = scmp.eq.s32.totalorder %s15, 0
      %p134 = por %p132, %p133
      %p135 = scmp.ne.s32.totalorder %s124, %s127
      %p136 = scmp.eq.s32.totalorder %s20, 1
      %p137 = por %p135, %p136
      %p138 = scmp.ne.s32.totalorder %s127, %s128
      %p139 = scmp.eq.s32.totalorder %s20, 0
      %p140 = por %p138, %p139
      %p141 = scmp.ne.s32.totalorder %s127, %s128
      %p142 = scmp.eq.s32.totalorder %s21, 1
      %p143 = por %p141, %p142
      %p145 = scmp.ne.s32.totalorder %s128, %s144
      %p146 = scmp.eq.s32.totalorder %s21, 0
      %p147 = por %p145, %p146
      %s148 = ssub.s32 %s24, %s33
      %p149 = scmp.eq.s32.totalorder %s148, 0
      %s151 = sadd.s32 %s150, 1
      %s152 = scalar_select %p149, %s150, %s151
      %p155 = pneg %p149
      %p156 = scmp.eq.s32.totalorder %s15, 1
      %p157 = por %p155, %p156
      %p158 = scmp.ne.s32.totalorder %s150, %s153
      %p159 = scmp.eq.s32.totalorder %s15, 0
      %p160 = por %p158, %p159
      %p161 = scmp.ne.s32.totalorder %s150, %s153
      %p162 = scmp.eq.s32.totalorder %s20, 1
      %p163 = por %p161, %p162
      %p164 = scmp.ne.s32.totalorder %s153, %s154
      %p165 = scmp.eq.s32.totalorder %s20, 0
      %p166 = por %p164, %p165
      %p167 = scmp.ne.s32.totalorder %s153, %s154
      %p168 = scmp.eq.s32.totalorder %s21, 1
      %p169 = por %p167, %p168
      %p171 = scmp.ne.s32.totalorder %s154, %s170
      %p172 = scmp.eq.s32.totalorder %s21, 0
      %p173 = por %p171, %p172
      %s174 = ssub.s32 %s22, %s41
      %s175 = ssub.s32 %s23, %s37
      %s176 = sor.u32 %s174, %s175
      %s177 = ssub.s32 %s24, %s33
      %s178 = sor.u32 %s176, %s177
      %p179 = scmp.eq.s32.totalorder %s178, 0
      %s181 = sadd.s32 %s180, 1
      %s182 = scalar_select %p179, %s180, %s181
      %p185 = pneg %p179
      %p186 = scmp.eq.s32.totalorder %s15, 1
      %p187 = por %p185, %p186
      %p188 = scmp.ne.s32.totalorder %s180, %s183
      %p189 = scmp.eq.s32.totalorder %s15, 0
      %p190 = por %p188, %p189
      %p191 = scmp.ne.s32.totalorder %s180, %s183
      %p192 = scmp.eq.s32.totalorder %s20, 1
      %p193 = por %p191, %p192
      %p194 = scmp.ne.s32.totalorder %s183, %s184
      %p195 = scmp.eq.s32.totalorder %s20, 0
      %p196 = por %p194, %p195
      %p197 = scmp.ne.s32.totalorder %s183, %s184
      %p198 = scmp.eq.s32.totalorder %s21, 1
      %p199 = por %p197, %p198
      %p201 = scmp.ne.s32.totalorder %s184, %s200
      %p202 = scmp.eq.s32.totalorder %s21, 0
      %p203 = por %p201, %p202
      %s204 = ssub.s32 %s22, %s41
      %s205 = ssub.s32 %s23, %s37
      %s206 = sor.u32 %s204, %s205
      %s207 = ssub.s32 %s24, %s33
      %s208 = sor.u32 %s206, %s207
      %p209 = scmp.eq.s32.totalorder %s208, 0
      %s211 = sadd.s32 %s210, 1
      %s212 = scalar_select %p209, %s210, %s211
      %p215 = pneg %p209
      %p216 = scmp.eq.s32.totalorder %s15, 1
      %p217 = por %p215, %p216
      %p218 = scmp.ne.s32.totalorder %s210, %s213
      %p219 = scmp.eq.s32.totalorder %s15, 0
      %p220 = por %p218, %p219
      %p221 = scmp.ne.s32.totalorder %s210, %s213
      %p222 = scmp.eq.s32.totalorder %s20, 1
      %p223 = por %p221, %p222
      %p224 = scmp.ne.s32.totalorder %s213, %s214
      %p225 = scmp.eq.s32.totalorder %s20, 0
      %p226 = por %p224, %p225
      %p227 = scmp.ne.s32.totalorder %s213, %s214
      %p228 = scmp.eq.s32.totalorder %s21, 1
      %p229 = por %p227, %p228
      %p231 = scmp.ne.s32.totalorder %s214, %s230
      %p232 = scmp.eq.s32.totalorder %s21, 0
      %p233 = por %p231, %p232
      %p234 = scmp.le.s32.totalorder 1, %s15
      %p235 = scmp.lt.s32.totalorder %s15, 3
      %p236 = pnand %p234, %p235
      %p237 = pneg %p236
      // Predicated region
      $region9: #{bottleneck_forward.5} parent=5 // pred_check
        _
      $region10: #{bottleneck_forward.5} parent=5 // pred_check_branch
        %239 = sbr.rel (%p236) target = $region12
      $region11: #{bottleneck_forward.5} parent=5 // pred_region
        %s240 = ssub.s32 %s15, 1
        // Predicated region
        $region13: #{bottleneck_forward.5} parent=11 // pred_check
          %p241 = pneg %p114
        $region14: #{bottleneck_forward.5} parent=11 // pred_check_branch
          %243 = sbr.rel (%p241) target = $region16
        $region15: #{bottleneck_forward.5} parent=11 // pred_region
          %p244 = scmp.lt.s32.totalorder %s27, 0
          %s245 = scalar_select %p244, %s27, 0
          %s246 = smul.addr %s245, 4
          %s247 = scalar_lea.vmem %s2, %s246
        $region16: #{bottleneck_forward.5} parent=11 // pred_fallthru
          _
        // Predicated region
        $region17: #{bottleneck_forward.5} parent=11 // pred_check
          %p248 = pneg %p140
        $region18: #{bottleneck_forward.5} parent=11 // pred_check_branch
          %250 = sbr.rel (%p248) target = $region20
        $region19: #{bottleneck_forward.5} parent=11 // pred_region
          %p251 = scmp.lt.s32.totalorder %s27, 0
          %s252 = scalar_select %p251, %s27, 0
          %s253 = scalar_lea.vmem %s3, %s252
        $region20: #{bottleneck_forward.5} parent=11 // pred_fallthru
          _
        // Predicated region
        $region21: #{bottleneck_forward.5} parent=11 // pred_check
          %p254 = pneg %p166
        $region22: #{bottleneck_forward.5} parent=11 // pred_check_branch
          %256 = sbr.rel (%p254) target = $region24
        $region23: #{bottleneck_forward.5} parent=11 // pred_region
          %p257 = scmp.lt.s32.totalorder %s27, 0
          %s258 = scalar_select %p257, %s27, 0
          %s259 = scalar_lea.vmem %s4, %s258
        $region24: #{bottleneck_forward.5} parent=11 // pred_fallthru
          _
      $region12: #{bottleneck_forward.5} parent=5 // pred_fallthru
        _
      %p260 = scmp.lt.s32.totalorder %s15, 2
      // Predicated region
      $region25: #{bottleneck_forward.5} parent=5 // pred_check
        %p261 = pneg %p260
      $region26: #{bottleneck_forward.5} parent=5 // pred_check_branch
        %263 = sbr.rel (%p261) target = $region28
      $region27: #{bottleneck_forward.5} parent=5 // pred_region
        // Predicated region
        $region29: #{bottleneck_forward.5} parent=27 // pred_check
          %p264 = pneg %p56
        $region30: #{bottleneck_forward.5} parent=27 // pred_check_branch
          %266 = sbr.rel (%p264) target = $region32
        $region31: #{bottleneck_forward.5} parent=27 // pred_region
          %s267 = smul.u32 32, %s23
          %p268 = scmp.lt.s32.totalorder %s22, 1
          %s269 = scalar_select %p268, %s22, 1
          %p270 = scmp.lt.s32.totalorder %s267, 31
          %s271 = scalar_select %p270, %s267, 31
          %s272 = smul.addr %s269, 32
          %s273 = sadd.s32 %s271, %s272
          %s274 = smul.addr %s273, 4
          %s275 = scalar_lea.vmem %s0, %s274
          %s276 = smul.u32 32, %s23
        $region32: #{bottleneck_forward.5} parent=27 // pred_fallthru
          _
        // Predicated region
        $region33: #{bottleneck_forward.5} parent=27 // pred_check
          %p277 = pneg %p82
        $region34: #{bottleneck_forward.5} parent=27 // pred_check_branch
          %279 = sbr.rel (%p277) target = $region36
        $region35: #{bottleneck_forward.5} parent=27 // pred_region
          %p280 = scmp.lt.s32.totalorder %s22, 1
          %s281 = scalar_select %p280, %s22, 1
          %s282 = smul.addr %s281, 8
          %s283 = smul.addr %s282, 8
          %s284 = scalar_lea.vmem %s1, %s283
        $region36: #{bottleneck_forward.5} parent=27 // pred_fallthru
          _
        // Predicated region
        $region37: #{bottleneck_forward.5} parent=27 // pred_check
          %p285 = pneg %p190
        $region38: #{bottleneck_forward.5} parent=27 // pred_check_branch
          %287 = sbr.rel (%p285) target = $region40
        $region39: #{bottleneck_forward.5} parent=27 // pred_region
          %s288 = smul.u32 32, %s23
          %p289 = scmp.lt.s32.totalorder %s22, 1
          %s290 = scalar_select %p289, %s22, 1
          %p291 = scmp.lt.s32.totalorder %s288, 31
          %s292 = scalar_select %p291, %s288, 31
          %p293 = scmp.lt.s32.totalorder %s24, 0
          %s294 = scalar_select %p293, %s24, 0
          %s295 = sadd.s32 %s294, %s292
          %s296 = smul.addr %s290, 32
          %s297 = sadd.s32 %s295, %s296
          %s298 = smul.addr %s297, 4
          %s299 = scalar_lea.vmem %s5, %s298
          %s300 = smul.u32 32, %s23
        $region40: #{bottleneck_forward.5} parent=27 // pred_fallthru
          _
      $region28: #{bottleneck_forward.5} parent=5 // pred_fallthru
        _
      %p301 = scmp.le.s32.totalorder 1, %s15
      %p302 = scmp.lt.s32.totalorder %s15, 3
      %p303 = pnand %p301, %p302
      %p304 = pneg %p303
      // Predicated region
      $region41: #{bottleneck_forward.5} parent=5 // pred_check
        _
      $region42: #{bottleneck_forward.5} parent=5 // pred_check_branch
        %306 = sbr.rel (%p303) target = $region44
      $region43: #{bottleneck_forward.5} parent=5 // pred_region
        %s307 = ssub.s32 %s15, 1
        %s308 = smul.u32 32, %s26
        %p309 = scmp.lt.s32.totalorder %s25, 1
        %s310 = scalar_select %p309, %s25, 1
        %p311 = scmp.lt.s32.totalorder %s308, 31
        %s312 = scalar_select %p311, %s308, 31
        %s313 = smul.addr %s310, 32
        %s314 = sadd.s32 %s312, %s313
        %s315 = smul.addr %s314, 4
        %s316 = scalar_lea.vmem %s0, %s315
        %p317 = pneg %p62
        %p318 = pneg %p59
        %p319 = scmp.lt.s32.totalorder %s25, 1
        %s320 = scalar_select %p319, %s25, 1
        %s321 = smul.addr %s320, 8
        %s322 = smul.addr %s321, 8
        %s323 = scalar_lea.vmem %s1, %s322
        %p324 = pneg %p88
        %p325 = pneg %p85
        %p326 = scmp.lt.s32.totalorder %s27, 0
        %s327 = scalar_select %p326, %s27, 0
        %s328 = smul.addr %s327, 4
        %s329 = scalar_lea.vmem %s2, %s328
        %p330 = pneg %p114
        %p331 = pneg %p111
        %p332 = scmp.lt.s32.totalorder %s27, 0
        %s333 = scalar_select %p332, %s27, 0
        %s334 = scalar_lea.vmem %s3, %s333
        %p335 = pneg %p140
        %p336 = pneg %p137
        %p337 = scmp.lt.s32.totalorder %s27, 0
        %s338 = scalar_select %p337, %s27, 0
        %s339 = scalar_lea.vmem %s4, %s338
        %p340 = pneg %p166
        %p341 = pneg %p163
        %s342 = smul.u32 32, %s26
        %p343 = scmp.lt.s32.totalorder %s25, 1
        %s344 = scalar_select %p343, %s25, 1
        %p345 = scmp.lt.s32.totalorder %s342, 31
        %s346 = scalar_select %p345, %s342, 31
        %p347 = scmp.lt.s32.totalorder %s27, 0
        %s348 = scalar_select %p347, %s27, 0
        %s349 = sadd.s32 %s348, %s346
        %s350 = smul.addr %s344, 32
        %s351 = sadd.s32 %s349, %s350
        %s352 = smul.addr %s351, 4
        %s353 = scalar_lea.vmem %s5, %s352
        %p354 = pneg %p196
        %p355 = pneg %p193
        %p356 = pneg %p226
        %p357 = pneg %p223
        %s358 = sand.u32 %s213, 1
        %s359 = scalar_lea.sflag [#allocation3], %s358
        %s360 = sand.u32 %s213, 1
        %s361 = smul.addr %s360, 128
        %s362 = scalar_lea.vmem [#allocation2], %s361
        %s363 = smul.u32 32, %s26
        %p364 = scmp.lt.s32.totalorder %s25, 1
        %s365 = scalar_select %p364, %s25, 1
        %p366 = scmp.lt.s32.totalorder %s363, 31
        %s367 = scalar_select %p366, %s363, 31
        %s368 = smul.addr %s365, 32
        %s369 = sadd.s32 %s367, %s368
        %s370 = smul.addr %s369, 4
        %s371 = scalar_lea.vmem %s0, %s370
        %s372 = smul.u32 32, %s26
        %p373 = scmp.lt.s32.totalorder %s25, 1
        %s374 = scalar_select %p373, %s25, 1
        %s375 = smul.addr %s374, 8
        %s376 = smul.addr %s375, 8
        %s377 = scalar_lea.vmem %s1, %s376
        %p378 = scmp.lt.s32.totalorder %s27, 0
        %s379 = scalar_select %p378, %s27, 0
        %s380 = smul.addr %s379, 4
        %s381 = scalar_lea.vmem %s2, %s380
        %p382 = scmp.lt.s32.totalorder %s27, 0
        %s383 = scalar_select %p382, %s27, 0
        %s384 = scalar_lea.vmem %s3, %s383
        %p385 = scmp.lt.s32.totalorder %s27, 0
        %s386 = scalar_select %p385, %s27, 0
        %s387 = scalar_lea.vmem %s4, %s386
        %s388 = smul.u32 32, %s26
        %p389 = scmp.lt.s32.totalorder %s25, 1
        %s390 = scalar_select %p389, %s25, 1
        %p391 = scmp.lt.s32.totalorder %s388, 31
        %s392 = scalar_select %p391, %s388, 31
        %p393 = scmp.lt.s32.totalorder %s27, 0
        %s394 = scalar_select %p393, %s27, 0
        %s395 = sadd.s32 %s394, %s392
        %s396 = smul.addr %s390, 32
        %s397 = sadd.s32 %s395, %s396
        %s398 = smul.addr %s397, 4
        %s399 = scalar_lea.vmem %s5, %s398
        %s400 = smul.u32 32, %s26
        %s401 = smul.u32 32, %s26
        %v403 = vld [vmem:[%s381] sm:$0xf]
        %v404 = vld [vmem:[%s381 + $0x4] sm:$0xf]
        %v405 = vld [vmem:[%s381 + $0x8] sm:$0xf]
        %v406 = vld [vmem:[%s381 + $0xc] sm:$0xf]
        %v407 = vld [vmem:[%s381 + $0x10] sm:$0xf]
        %v408 = vld [vmem:[%s381 + $0x14] sm:$0xf]
        %v409 = vld [vmem:[%s381 + $0x18] sm:$0xf]
        %v410 = vld [vmem:[%s381 + $0x1c] sm:$0xf]
        %v411 = vld [vmem:[%s377] sm:$0xff]
        %v412 = vld [vmem:[%s377 + $0x8] sm:$0xff]
        %v413 = vld [vmem:[%s377 + $0x10] sm:$0xff]
        %v414 = vld [vmem:[%s377 + $0x18] sm:$0xff]
        %v415 = vld [vmem:[%s377 + $0x20] sm:$0xff]
        %v416 = vld [vmem:[%s377 + $0x28] sm:$0xff]
        %v417 = vld [vmem:[%s377 + $0x30] sm:$0xff]
        %v418 = vld [vmem:[%s377 + $0x38] sm:$0xff]
        %v419 = vpack.c.bf16 %v411, %v411
        %v420 = vpack.c.bf16 %v412, %v412
        %v421 = vpack.c.bf16 %v413, %v413
        %v422 = vpack.c.bf16 %v414, %v414
        %v423 = vpack.c.bf16 %v415, %v415
        %v424 = vpack.c.bf16 %v416, %v416
        %v425 = vpack.c.bf16 %v417, %v417
        %v426 = vpack.c.bf16 %v418, %v418
        %428 = vset.pattern.permute.xlu0 0
        %429 = vperm.xlu0 %428, %v419
        %v430 = vpop.permute.xlu0 %429
        %v433 = vunpack.c.l.s4 839922192
        %v434 = vunpack.c.0.s8 %v433
        %v435 = vperm.slane %v430, %v434
        %437 = vset.pattern.permute.xlu0 0
        %438 = vperm.xlu0 %437, %v420
        %v439 = vpop.permute.xlu0 %438
        %v442 = vunpack.c.l.s4 839922192
        %v443 = vunpack.c.0.s8 %v442
        %v444 = vperm.slane %v439, %v443
        %446 = vset.pattern.permute.xlu0 0
        %447 = vperm.xlu0 %446, %v421
        %v448 = vpop.permute.xlu0 %447
        %v451 = vunpack.c.l.s4 839922192
        %v452 = vunpack.c.0.s8 %v451
        %v453 = vperm.slane %v448, %v452
        %455 = vset.pattern.permute.xlu0 0
        %456 = vperm.xlu0 %455, %v422
        %v457 = vpop.permute.xlu0 %456
        %v460 = vunpack.c.l.s4 839922192
        %v461 = vunpack.c.0.s8 %v460
        %v462 = vperm.slane %v457, %v461
        %464 = vset.pattern.permute.xlu0 0
        %465 = vperm.xlu0 %464, %v423
        %v466 = vpop.permute.xlu0 %465
        %v469 = vunpack.c.l.s4 839922192
        %v470 = vunpack.c.0.s8 %v469
        %v471 = vperm.slane %v466, %v470
        %473 = vset.pattern.permute.xlu0 0
        %474 = vperm.xlu0 %473, %v424
        %v475 = vpop.permute.xlu0 %474
        %v478 = vunpack.c.l.s4 839922192
        %v479 = vunpack.c.0.s8 %v478
        %v480 = vperm.slane %v475, %v479
        %482 = vset.pattern.permute.xlu0 0
        %483 = vperm.xlu0 %482, %v425
        %v484 = vpop.permute.xlu0 %483
        %v487 = vunpack.c.l.s4 839922192
        %v488 = vunpack.c.0.s8 %v487
        %v489 = vperm.slane %v484, %v488
        %491 = vset.pattern.permute.xlu0 0
        %492 = vperm.xlu0 %491, %v426
        %v493 = vpop.permute.xlu0 %492
        %v496 = vunpack.c.l.s4 839922192
        %v497 = vunpack.c.0.s8 %v496
        %v498 = vperm.slane %v493, %v497
        %v499 = vunpack.c.l.bf16 %v403
        %v500 = vunpack.c.l.bf16 %v404
        %v501 = vunpack.c.l.bf16 %v405
        %v502 = vunpack.c.l.bf16 %v406
        %v503 = vunpack.c.l.bf16 %v407
        %v504 = vunpack.c.l.bf16 %v408
        %v505 = vunpack.c.l.bf16 %v409
        %v506 = vunpack.c.l.bf16 %v410
        %v507 = vunpack.c.l.bf16 %v435
        %v508 = vunpack.c.l.bf16 %v444
        %v509 = vunpack.c.l.bf16 %v453
        %v510 = vunpack.c.l.bf16 %v462
        %v511 = vunpack.c.l.bf16 %v471
        %v512 = vunpack.c.l.bf16 %v480
        %v513 = vunpack.c.l.bf16 %v489
        %v514 = vunpack.c.l.bf16 %v498
        %v515 = vmul.f32 %v499, %v507
        %v516 = vmul.f32 %v500, %v508
        %v517 = vmul.f32 %v501, %v509
        %v518 = vmul.f32 %v502, %v510
        %v519 = vmul.f32 %v503, %v511
        %v520 = vmul.f32 %v504, %v512
        %v521 = vmul.f32 %v505, %v513
        %v522 = vmul.f32 %v506, %v514
        %v523 = vpack.c.bf16 %v516, %v515
        %v524 = vpack.c.bf16 %v518, %v517
        %v525 = vpack.c.bf16 %v520, %v519
        %v526 = vpack.c.bf16 %v522, %v521
        %v527 = vld [vmem:[%s371] sm:$0xf]
        %v528 = vld [vmem:[%s371 + $0x4] sm:$0xf]
        %v529 = vld [vmem:[%s371 + $0x8] sm:$0xf]
        %v530 = vld [vmem:[%s371 + $0xc] sm:$0xf]
        %v531 = vld [vmem:[%s371 + $0x10] sm:$0xf]
        %v532 = vld [vmem:[%s371 + $0x14] sm:$0xf]
        %v533 = vld [vmem:[%s371 + $0x18] sm:$0xf]
        %v534 = vld [vmem:[%s371 + $0x1c] sm:$0xf]
        %v535 = vld [vmem:[%s371 + $0x20] sm:$0xf]
        %v536 = vld [vmem:[%s371 + $0x24] sm:$0xf]
        %v537 = vld [vmem:[%s371 + $0x28] sm:$0xf]
        %v538 = vld [vmem:[%s371 + $0x2c] sm:$0xf]
        %v539 = vld [vmem:[%s371 + $0x30] sm:$0xf]
        %v540 = vld [vmem:[%s371 + $0x34] sm:$0xf]
        %v541 = vld [vmem:[%s371 + $0x38] sm:$0xf]
        %v542 = vld [vmem:[%s371 + $0x3c] sm:$0xf]
        %v543 = vld [vmem:[%s371 + $0x40] sm:$0xf]
        %v544 = vld [vmem:[%s371 + $0x44] sm:$0xf]
        %v545 = vld [vmem:[%s371 + $0x48] sm:$0xf]
        %v546 = vld [vmem:[%s371 + $0x4c] sm:$0xf]
        %v547 = vld [vmem:[%s371 + $0x50] sm:$0xf]
        %v548 = vld [vmem:[%s371 + $0x54] sm:$0xf]
        %v549 = vld [vmem:[%s371 + $0x58] sm:$0xf]
        %v550 = vld [vmem:[%s371 + $0x5c] sm:$0xf]
        %v551 = vld [vmem:[%s371 + $0x60] sm:$0xf]
        %v552 = vld [vmem:[%s371 + $0x64] sm:$0xf]
        %v553 = vld [vmem:[%s371 + $0x68] sm:$0xf]
        %v554 = vld [vmem:[%s371 + $0x6c] sm:$0xf]
        %v555 = vld [vmem:[%s371 + $0x70] sm:$0xf]
        %v556 = vld [vmem:[%s371 + $0x74] sm:$0xf]
        %v557 = vld [vmem:[%s371 + $0x78] sm:$0xf]
        %v558 = vld [vmem:[%s371 + $0x7c] sm:$0xf]
        %v591 = vunpack.c.l.b16 %v527
        %v592 = vunpack.c.l.b16 %v528
        %v593 = vunpack.c.l.b16 %v529
        %v594 = vunpack.c.l.b16 %v530
        %v595 = vunpack.c.l.b16 %v531
        %v596 = vunpack.c.l.b16 %v532
        %v597 = vunpack.c.l.b16 %v533
        %v598 = vunpack.c.l.b16 %v534
        %v599 = vunpack.c.l.b16 %v535
        %v600 = vunpack.c.l.b16 %v536
        %v601 = vunpack.c.l.b16 %v537
        %v602 = vunpack.c.l.b16 %v538
        %v603 = vunpack.c.l.b16 %v539
        %v604 = vunpack.c.l.b16 %v540
        %v605 = vunpack.c.l.b16 %v541
        %v606 = vunpack.c.l.b16 %v542
        %v607 = vunpack.c.l.b16 %v543
        %v608 = vunpack.c.l.b16 %v544
        %v609 = vunpack.c.l.b16 %v545
        %v610 = vunpack.c.l.b16 %v546
        %v611 = vunpack.c.l.b16 %v547
        %v612 = vunpack.c.l.b16 %v548
        %v613 = vunpack.c.l.b16 %v549
        %v614 = vunpack.c.l.b16 %v550
        %v615 = vunpack.c.l.b16 %v551
        %v616 = vunpack.c.l.b16 %v552
        %v617 = vunpack.c.l.b16 %v553
        %v618 = vunpack.c.l.b16 %v554
        %v619 = vunpack.c.l.b16 %v555
        %v620 = vunpack.c.l.b16 %v556
        %v621 = vunpack.c.l.b16 %v557
        %v622 = vunpack.c.l.b16 %v558
        %v623 = vpack.c.b16 %v592, %v591
        %v624 = vpack.c.b16 %v594, %v593
        %v625 = vpack.c.b16 %v596, %v595
        %v626 = vpack.c.b16 %v598, %v597
        %v627 = vpack.c.b16 %v600, %v599
        %v628 = vpack.c.b16 %v602, %v601
        %v629 = vpack.c.b16 %v604, %v603
        %v630 = vpack.c.b16 %v606, %v605
        %v631 = vpack.c.b16 %v608, %v607
        %v632 = vpack.c.b16 %v610, %v609
        %v633 = vpack.c.b16 %v612, %v611
        %v634 = vpack.c.b16 %v614, %v613
        %v635 = vpack.c.b16 %v616, %v615
        %v636 = vpack.c.b16 %v618, %v617
        %v637 = vpack.c.b16 %v620, %v619
        %v638 = vpack.c.b16 %v622, %v621
        %vm639 = vcmask 523264
        %v641 = vsel %vm639, %v623, 0
        %v644 = vsel %vm639, %v624, 0
        %v647 = vsel %vm639, %v625, 0
        %v650 = vsel %vm639, %v626, 0
        %v653 = vsel %vm639, %v627, 0
        %v656 = vsel %vm639, %v628, 0
        %v659 = vsel %vm639, %v629, 0
        %v662 = vsel %vm639, %v630, 0
        %v665 = vsel %vm639, %v631, 0
        %v668 = vsel %vm639, %v632, 0
        %v671 = vsel %vm639, %v633, 0
        %v674 = vsel %vm639, %v634, 0
        %v677 = vsel %vm639, %v635, 0
        %v680 = vsel %vm639, %v636, 0
        %v683 = vsel %vm639, %v637, 0
        %v686 = vsel %vm639, %v638, 0
        %688 = vmatpush.bf16.msra.mxu0 0
        %689 = vmatpush.bf16.msra.mxu0 0
        %690 = vmatpush.bf16.msra.mxu0 0
        %691 = vmatpush.bf16.msra.mxu0 0
        %692 = vmatpush.bf16.msra.mxu0 %v526
        %693 = vmatpush.bf16.msra.mxu0 %v525
        %694 = vmatpush.bf16.msra.mxu0 %v524
        %695 = vmatpush.bf16.msra.mxu0 %v523
        %696 = vmatmul.bf16.gmra.mxu0 %v641
        %v697 = vpop.f32.mrf.mxu0
        %v698 = vadd.f32 0.0, %v697
        %v699 = vpop.f32.mrf.mxu0
        %v700 = vadd.f32 0.0, %v699
        %701 = vmatmul.bf16.gmra.mxu0 %v644
        %v702 = vpop.f32.mrf.mxu0
        %v703 = vadd.f32 0.0, %v702
        %v704 = vpop.f32.mrf.mxu0
        %v705 = vadd.f32 0.0, %v704
        %706 = vmatmul.bf16.gmra.mxu0 %v647
        %v707 = vpop.f32.mrf.mxu0
        %v708 = vadd.f32 0.0, %v707
        %v709 = vpop.f32.mrf.mxu0
        %v710 = vadd.f32 0.0, %v709
        %711 = vmatmul.bf16.gmra.mxu0 %v650
        %v712 = vpop.f32.mrf.mxu0
        %v713 = vadd.f32 0.0, %v712
        %v714 = vpop.f32.mrf.mxu0
        %v715 = vadd.f32 0.0, %v714
        %716 = vmatmul.bf16.gmra.mxu0 %v653
        %v717 = vpop.f32.mrf.mxu0
        %v718 = vadd.f32 0.0, %v717
        %v719 = vpop.f32.mrf.mxu0
        %v720 = vadd.f32 0.0, %v719
        %721 = vmatmul.bf16.gmra.mxu0 %v656
        %v722 = vpop.f32.mrf.mxu0
        %v723 = vadd.f32 0.0, %v722
        %v724 = vpop.f32.mrf.mxu0
        %v725 = vadd.f32 0.0, %v724
        %726 = vmatmul.bf16.gmra.mxu0 %v659
        %v727 = vpop.f32.mrf.mxu0
        %v728 = vadd.f32 0.0, %v727
        %v729 = vpop.f32.mrf.mxu0
        %v730 = vadd.f32 0.0, %v729
        %731 = vmatmul.bf16.gmra.mxu0 %v662
        %v732 = vpop.f32.mrf.mxu0
        %v733 = vadd.f32 0.0, %v732
        %v734 = vpop.f32.mrf.mxu0
        %v735 = vadd.f32 0.0, %v734
        %736 = vmatmul.bf16.gmra.mxu0 %v665
        %v737 = vpop.f32.mrf.mxu0
        %v738 = vadd.f32 0.0, %v737
        %v739 = vpop.f32.mrf.mxu0
        %v740 = vadd.f32 0.0, %v739
        %741 = vmatmul.bf16.gmra.mxu0 %v668
        %v742 = vpop.f32.mrf.mxu0
        %v743 = vadd.f32 0.0, %v742
        %v744 = vpop.f32.mrf.mxu0
        %v745 = vadd.f32 0.0, %v744
        %746 = vmatmul.bf16.gmra.mxu0 %v671
        %v747 = vpop.f32.mrf.mxu0
        %v748 = vadd.f32 0.0, %v747
        %v749 = vpop.f32.mrf.mxu0
        %v750 = vadd.f32 0.0, %v749
        %751 = vmatmul.bf16.gmra.mxu0 %v674
        %v752 = vpop.f32.mrf.mxu0
        %v753 = vadd.f32 0.0, %v752
        %v754 = vpop.f32.mrf.mxu0
        %v755 = vadd.f32 0.0, %v754
        %756 = vmatmul.bf16.gmra.mxu0 %v677
        %v757 = vpop.f32.mrf.mxu0
        %v758 = vadd.f32 0.0, %v757
        %v759 = vpop.f32.mrf.mxu0
        %v760 = vadd.f32 0.0, %v759
        %761 = vmatmul.bf16.gmra.mxu0 %v680
        %v762 = vpop.f32.mrf.mxu0
        %v763 = vadd.f32 0.0, %v762
        %v764 = vpop.f32.mrf.mxu0
        %v765 = vadd.f32 0.0, %v764
        %766 = vmatmul.bf16.gmra.mxu0 %v683
        %v767 = vpop.f32.mrf.mxu0
        %v768 = vadd.f32 0.0, %v767
        %v769 = vpop.f32.mrf.mxu0
        %v770 = vadd.f32 0.0, %v769
        %771 = vmatmul.bf16.gmra.mxu0 %v686
        %v772 = vpop.f32.mrf.mxu0
        %v773 = vadd.f32 0.0, %v772
        %v774 = vpop.f32.mrf.mxu0
        %v775 = vadd.f32 0.0, %v774
        %776 = vdwg.mxu0
        %v777 = vld [vmem:[%s384] sm:$0x1]
        %v779 = vperm.slane %v777, 0
        %v781 = vmul.f32 %v698, %v779
        %v782 = vmul.f32 %v700, %v779
        %v783 = vmul.f32 %v703, %v779
        %v784 = vmul.f32 %v705, %v779
        %v785 = vmul.f32 %v708, %v779
        %v786 = vmul.f32 %v710, %v779
        %v787 = vmul.f32 %v713, %v779
        %v788 = vmul.f32 %v715, %v779
        %v789 = vmul.f32 %v718, %v779
        %v790 = vmul.f32 %v720, %v779
        %v791 = vmul.f32 %v723, %v779
        %v792 = vmul.f32 %v725, %v779
        %v793 = vmul.f32 %v728, %v779
        %v794 = vmul.f32 %v730, %v779
        %v795 = vmul.f32 %v733, %v779
        %v796 = vmul.f32 %v735, %v779
        %v797 = vmul.f32 %v738, %v779
        %v798 = vmul.f32 %v740, %v779
        %v799 = vmul.f32 %v743, %v779
        %v800 = vmul.f32 %v745, %v779
        %v801 = vmul.f32 %v748, %v779
        %v802 = vmul.f32 %v750, %v779
        %v803 = vmul.f32 %v753, %v779
        %v804 = vmul.f32 %v755, %v779
        %v805 = vmul.f32 %v758, %v779
        %v806 = vmul.f32 %v760, %v779
        %v807 = vmul.f32 %v763, %v779
        %v808 = vmul.f32 %v765, %v779
        %v809 = vmul.f32 %v768, %v779
        %v810 = vmul.f32 %v770, %v779
        %v811 = vmul.f32 %v773, %v779
        %v812 = vmul.f32 %v775, %v779
        %v813 = vld [vmem:[%s387] sm:$0x1]
        %v815 = vperm.slane %v813, 0
        %v817 = vadd.f32 %v781, %v815
        %v818 = vadd.f32 %v782, %v815
        %v819 = vadd.f32 %v783, %v815
        %v820 = vadd.f32 %v784, %v815
        %v821 = vadd.f32 %v785, %v815
        %v822 = vadd.f32 %v786, %v815
        %v823 = vadd.f32 %v787, %v815
        %v824 = vadd.f32 %v788, %v815
        %v825 = vadd.f32 %v789, %v815
        %v826 = vadd.f32 %v790, %v815
        %v827 = vadd.f32 %v791, %v815
        %v828 = vadd.f32 %v792, %v815
        %v829 = vadd.f32 %v793, %v815
        %v830 = vadd.f32 %v794, %v815
        %v831 = vadd.f32 %v795, %v815
        %v832 = vadd.f32 %v796, %v815
        %v833 = vadd.f32 %v797, %v815
        %v834 = vadd.f32 %v798, %v815
        %v835 = vadd.f32 %v799, %v815
        %v836 = vadd.f32 %v800, %v815
        %v837 = vadd.f32 %v801, %v815
        %v838 = vadd.f32 %v802, %v815
        %v839 = vadd.f32 %v803, %v815
        %v840 = vadd.f32 %v804, %v815
        %v841 = vadd.f32 %v805, %v815
        %v842 = vadd.f32 %v806, %v815
        %v843 = vadd.f32 %v807, %v815
        %v844 = vadd.f32 %v808, %v815
        %v845 = vadd.f32 %v809, %v815
        %v846 = vadd.f32 %v810, %v815
        %v847 = vadd.f32 %v811, %v815
        %v848 = vadd.f32 %v812, %v815
        %v849 = vld [vmem:[%s399] sm:$0xf]
        %v850 = vld [vmem:[%s399 + $0x4] sm:$0xf]
        %v851 = vld [vmem:[%s399 + $0x8] sm:$0xf]
        %v852 = vld [vmem:[%s399 + $0xc] sm:$0xf]
        %v853 = vld [vmem:[%s399 + $0x10] sm:$0xf]
        %v854 = vld [vmem:[%s399 + $0x14] sm:$0xf]
        %v855 = vld [vmem:[%s399 + $0x18] sm:$0xf]
        %v856 = vld [vmem:[%s399 + $0x1c] sm:$0xf]
        %v857 = vld [vmem:[%s399 + $0x20] sm:$0xf]
        %v858 = vld [vmem:[%s399 + $0x24] sm:$0xf]
        %v859 = vld [vmem:[%s399 + $0x28] sm:$0xf]
        %v860 = vld [vmem:[%s399 + $0x2c] sm:$0xf]
        %v861 = vld [vmem:[%s399 + $0x30] sm:$0xf]
        %v862 = vld [vmem:[%s399 + $0x34] sm:$0xf]
        %v863 = vld [vmem:[%s399 + $0x38] sm:$0xf]
        %v864 = vld [vmem:[%s399 + $0x3c] sm:$0xf]
        %v865 = vld [vmem:[%s399 + $0x40] sm:$0xf]
        %v866 = vld [vmem:[%s399 + $0x44] sm:$0xf]
        %v867 = vld [vmem:[%s399 + $0x48] sm:$0xf]
        %v868 = vld [vmem:[%s399 + $0x4c] sm:$0xf]
        %v869 = vld [vmem:[%s399 + $0x50] sm:$0xf]
        %v870 = vld [vmem:[%s399 + $0x54] sm:$0xf]
        %v871 = vld [vmem:[%s399 + $0x58] sm:$0xf]
        %v872 = vld [vmem:[%s399 + $0x5c] sm:$0xf]
        %v873 = vld [vmem:[%s399 + $0x60] sm:$0xf]
        %v874 = vld [vmem:[%s399 + $0x64] sm:$0xf]
        %v875 = vld [vmem:[%s399 + $0x68] sm:$0xf]
        %v876 = vld [vmem:[%s399 + $0x6c] sm:$0xf]
        %v877 = vld [vmem:[%s399 + $0x70] sm:$0xf]
        %v878 = vld [vmem:[%s399 + $0x74] sm:$0xf]
        %v879 = vld [vmem:[%s399 + $0x78] sm:$0xf]
        %v880 = vld [vmem:[%s399 + $0x7c] sm:$0xf]
        %v881 = vunpack.c.l.bf16 %v849
        %v882 = vunpack.c.l.bf16 %v850
        %v883 = vunpack.c.l.bf16 %v851
        %v884 = vunpack.c.l.bf16 %v852
        %v885 = vunpack.c.l.bf16 %v853
        %v886 = vunpack.c.l.bf16 %v854
        %v887 = vunpack.c.l.bf16 %v855
        %v888 = vunpack.c.l.bf16 %v856
        %v889 = vunpack.c.l.bf16 %v857
        %v890 = vunpack.c.l.bf16 %v858
        %v891 = vunpack.c.l.bf16 %v859
        %v892 = vunpack.c.l.bf16 %v860
        %v893 = vunpack.c.l.bf16 %v861
        %v894 = vunpack.c.l.bf16 %v862
        %v895 = vunpack.c.l.bf16 %v863
        %v896 = vunpack.c.l.bf16 %v864
        %v897 = vunpack.c.l.bf16 %v865
        %v898 = vunpack.c.l.bf16 %v866
        %v899 = vunpack.c.l.bf16 %v867
        %v900 = vunpack.c.l.bf16 %v868
        %v901 = vunpack.c.l.bf16 %v869
        %v902 = vunpack.c.l.bf16 %v870
        %v903 = vunpack.c.l.bf16 %v871
        %v904 = vunpack.c.l.bf16 %v872
        %v905 = vunpack.c.l.bf16 %v873
        %v906 = vunpack.c.l.bf16 %v874
        %v907 = vunpack.c.l.bf16 %v875
        %v908 = vunpack.c.l.bf16 %v876
        %v909 = vunpack.c.l.bf16 %v877
        %v910 = vunpack.c.l.bf16 %v878
        %v911 = vunpack.c.l.bf16 %v879
        %v912 = vunpack.c.l.bf16 %v880
        %v913 = vadd.f32 %v817, %v881
        %v914 = vadd.f32 %v818, %v882
        %v915 = vadd.f32 %v819, %v883
        %v916 = vadd.f32 %v820, %v884
        %v917 = vadd.f32 %v821, %v885
        %v918 = vadd.f32 %v822, %v886
        %v919 = vadd.f32 %v823, %v887
        %v920 = vadd.f32 %v824, %v888
        %v921 = vadd.f32 %v825, %v889
        %v922 = vadd.f32 %v826, %v890
        %v923 = vadd.f32 %v827, %v891
        %v924 = vadd.f32 %v828, %v892
        %v925 = vadd.f32 %v829, %v893
        %v926 = vadd.f32 %v830, %v894
        %v927 = vadd.f32 %v831, %v895
        %v928 = vadd.f32 %v832, %v896
        %v929 = vadd.f32 %v833, %v897
        %v930 = vadd.f32 %v834, %v898
        %v931 = vadd.f32 %v835, %v899
        %v932 = vadd.f32 %v836, %v900
        %v933 = vadd.f32 %v837, %v901
        %v934 = vadd.f32 %v838, %v902
        %v935 = vadd.f32 %v839, %v903
        %v936 = vadd.f32 %v840, %v904
        %v937 = vadd.f32 %v841, %v905
        %v938 = vadd.f32 %v842, %v906
        %v939 = vadd.f32 %v843, %v907
        %v940 = vadd.f32 %v844, %v908
        %v941 = vadd.f32 %v845, %v909
        %v942 = vadd.f32 %v846, %v910
        %v943 = vadd.f32 %v847, %v911
        %v944 = vadd.f32 %v848, %v912
        %v945 = vmax.f32 %v913, 0.0
        %v946 = vmax.f32 %v914, 0.0
        %v947 = vmax.f32 %v915, 0.0
        %v948 = vmax.f32 %v916, 0.0
        %v949 = vmax.f32 %v917, 0.0
        %v950 = vmax.f32 %v918, 0.0
        %v951 = vmax.f32 %v919, 0.0
        %v952 = vmax.f32 %v920, 0.0
        %v953 = vmax.f32 %v921, 0.0
        %v954 = vmax.f32 %v922, 0.0
        %v955 = vmax.f32 %v923, 0.0
        %v956 = vmax.f32 %v924, 0.0
        %v957 = vmax.f32 %v925, 0.0
        %v958 = vmax.f32 %v926, 0.0
        %v959 = vmax.f32 %v927, 0.0
        %v960 = vmax.f32 %v928, 0.0
        %v961 = vmax.f32 %v929, 0.0
        %v962 = vmax.f32 %v930, 0.0
        %v963 = vmax.f32 %v931, 0.0
        %v964 = vmax.f32 %v932, 0.0
        %v965 = vmax.f32 %v933, 0.0
        %v966 = vmax.f32 %v934, 0.0
        %v967 = vmax.f32 %v935, 0.0
        %v968 = vmax.f32 %v936, 0.0
        %v969 = vmax.f32 %v937, 0.0
        %v970 = vmax.f32 %v938, 0.0
        %v971 = vmax.f32 %v939, 0.0
        %v972 = vmax.f32 %v940, 0.0
        %v973 = vmax.f32 %v941, 0.0
        %v974 = vmax.f32 %v942, 0.0
        %v975 = vmax.f32 %v943, 0.0
        %v976 = vmax.f32 %v944, 0.0
        %v977 = vpack.c.bf16 %v945, %v945
        %v978 = vpack.c.bf16 %v946, %v946
        %v979 = vpack.c.bf16 %v947, %v947
        %v980 = vpack.c.bf16 %v948, %v948
        %v981 = vpack.c.bf16 %v949, %v949
        %v982 = vpack.c.bf16 %v950, %v950
        %v983 = vpack.c.bf16 %v951, %v951
        %v984 = vpack.c.bf16 %v952, %v952
        %v985 = vpack.c.bf16 %v953, %v953
        %v986 = vpack.c.bf16 %v954, %v954
        %v987 = vpack.c.bf16 %v955, %v955
        %v988 = vpack.c.bf16 %v956, %v956
        %v989 = vpack.c.bf16 %v957, %v957
        %v990 = vpack.c.bf16 %v958, %v958
        %v991 = vpack.c.bf16 %v959, %v959
        %v992 = vpack.c.bf16 %v960, %v960
        %v993 = vpack.c.bf16 %v961, %v961
        %v994 = vpack.c.bf16 %v962, %v962
        %v995 = vpack.c.bf16 %v963, %v963
        %v996 = vpack.c.bf16 %v964, %v964
        %v997 = vpack.c.bf16 %v965, %v965
        %v998 = vpack.c.bf16 %v966, %v966
        %v999 = vpack.c.bf16 %v967, %v967
        %v1000 = vpack.c.bf16 %v968, %v968
        %v1001 = vpack.c.bf16 %v969, %v969
        %v1002 = vpack.c.bf16 %v970, %v970
        %v1003 = vpack.c.bf16 %v971, %v971
        %v1004 = vpack.c.bf16 %v972, %v972
        %v1005 = vpack.c.bf16 %v973, %v973
        %v1006 = vpack.c.bf16 %v974, %v974
        %v1007 = vpack.c.bf16 %v975, %v975
        %v1008 = vpack.c.bf16 %v976, %v976
        %1009 = vst [vmem:[%s362] sm:$0xf] %v977
        %1010 = vst [vmem:[%s362 + $0x4] sm:$0xf] %v978
        %1011 = vst [vmem:[%s362 + $0x8] sm:$0xf] %v979
        %1012 = vst [vmem:[%s362 + $0xc] sm:$0xf] %v980
        %1013 = vst [vmem:[%s362 + $0x10] sm:$0xf] %v981
        %1014 = vst [vmem:[%s362 + $0x14] sm:$0xf] %v982
        %1015 = vst [vmem:[%s362 + $0x18] sm:$0xf] %v983
        %1016 = vst [vmem:[%s362 + $0x1c] sm:$0xf] %v984
        %1017 = vst [vmem:[%s362 + $0x20] sm:$0xf] %v985
        %1018 = vst [vmem:[%s362 + $0x24] sm:$0xf] %v986
        %1019 = vst [vmem:[%s362 + $0x28] sm:$0xf] %v987
        %1020 = vst [vmem:[%s362 + $0x2c] sm:$0xf] %v988
        %1021 = vst [vmem:[%s362 + $0x30] sm:$0xf] %v989
        %1022 = vst [vmem:[%s362 + $0x34] sm:$0xf] %v990
        %1023 = vst [vmem:[%s362 + $0x38] sm:$0xf] %v991
        %1024 = vst [vmem:[%s362 + $0x3c] sm:$0xf] %v992
        %1025 = vst [vmem:[%s362 + $0x40] sm:$0xf] %v993
        %1026 = vst [vmem:[%s362 + $0x44] sm:$0xf] %v994
        %1027 = vst [vmem:[%s362 + $0x48] sm:$0xf] %v995
        %1028 = vst [vmem:[%s362 + $0x4c] sm:$0xf] %v996
        %1029 = vst [vmem:[%s362 + $0x50] sm:$0xf] %v997
        %1030 = vst [vmem:[%s362 + $0x54] sm:$0xf] %v998
        %1031 = vst [vmem:[%s362 + $0x58] sm:$0xf] %v999
        %1032 = vst [vmem:[%s362 + $0x5c] sm:$0xf] %v1000
        %1033 = vst [vmem:[%s362 + $0x60] sm:$0xf] %v1001
        %1034 = vst [vmem:[%s362 + $0x64] sm:$0xf] %v1002
        %1035 = vst [vmem:[%s362 + $0x68] sm:$0xf] %v1003
        %1036 = vst [vmem:[%s362 + $0x6c] sm:$0xf] %v1004
        %1037 = vst [vmem:[%s362 + $0x70] sm:$0xf] %v1005
        %1038 = vst [vmem:[%s362 + $0x74] sm:$0xf] %v1006
        %1039 = vst [vmem:[%s362 + $0x78] sm:$0xf] %v1007
        %1040 = vst [vmem:[%s362 + $0x7c] sm:$0xf] %v1008
        %s1041 = sand.u32 %s213, 1
        %s1042 = scalar_lea.sflag [#allocation3], %s1041
        %s1043 = sand.u32 %s213, 1
        %s1044 = smul.addr %s1043, 128
        %s1045 = scalar_lea.vmem [#allocation2], %s1044
        // Predicated region
        $region45: #{bottleneck_forward.5} parent=43 // pred_check
          %p1046 = pneg %p223
        $region46: #{bottleneck_forward.5} parent=43 // pred_check_branch
          %1048 = sbr.rel (%p1046) target = $region48
        $region47: #{bottleneck_forward.5} parent=43 // pred_region
          %s1049 = smul.u32 32, %s26
          %1051 = vsyncadd %s1042, 0
          %s1052 = sadd.s32 %s27, %s1049
          %s1053 = smul.addr %s25, 32
          %s1054 = sadd.s32 %s1052, %s1053
          %s1055 = smul.addr %s1054, 4
          %s1056 = scalar_lea.hbm %s6, %s1055
          %s1057 = sshll.u32 %s1045, 4
          %s1058 = int_to_ptr.vmem [resolvable:$true] %s1057
          %s1059 = sshll.u32 %s1056, 4
          %s1060 = int_to_ptr.hbm [resolvable:$true] %s1059
          %1065 = dma.vmem_to_hbm [thread:$0]  %s1058, 2048, %s1060, %s1042, 64, 64, 4
        $region48: #{bottleneck_forward.5} parent=43 // pred_fallthru
          _
      $region44: #{bottleneck_forward.5} parent=5 // pred_fallthru
        _
      %p1066 = scmp.le.s32.totalorder 2, %s15
      // Predicated region
      $region49: #{bottleneck_forward.5} parent=5 // pred_check
        %p1067 = pneg %p1066
      $region50: #{bottleneck_forward.5} parent=5 // pred_check_branch
        %1069 = sbr.rel (%p1067) target = $region52
      $region51: #{bottleneck_forward.5} parent=5 // pred_region
        %s1070 = ssub.s32 %s15, 2
        // Predicated region
        $region53: #{bottleneck_forward.5} parent=51 // pred_check
          %p1071 = pneg %p229
        $region54: #{bottleneck_forward.5} parent=51 // pred_check_branch
          %1073 = sbr.rel (%p1071) target = $region56
        $region55: #{bottleneck_forward.5} parent=51 // pred_region
          %s1074 = sand.u32 %s214, 1
          %s1075 = scalar_lea.sflag [#allocation3], %s1074
          %s1076 = sand.u32 %s214, 1
          %s1077 = smul.addr %s1076, 128
          %s1078 = scalar_lea.vmem [#allocation2], %s1077
          %1080 = dma.done %s1075, 2048
        $region56: #{bottleneck_forward.5} parent=51 // pred_fallthru
          _
      $region52: #{bottleneck_forward.5} parent=5 // pred_fallthru
        _
    $region6: #{bottleneck_forward.5} parent=1 // loop_footer
      %s19 = sadd.s32 1, %s15
    $region7: #{bottleneck_forward.5} parent=1 // loop_footer_branch
      %14 = sbr.rel target = $region3
    $region8: #{bottleneck_forward.5} parent=1 // loop_exit
      _
    %1081 = vsyncpa [#allocation3], 1
    %s1082 = scalar_lea.sflag [#allocation3], 1
    %1083 = vsyncpa %s1082, 1

// kernel: bottleneck_forward.3
$region0: #{bottleneck_forward.3}
  #allocation0 [shape = 'u32[]', space=smem, size = 0x4, offset = 0x4, fixed_abs, tag = 'smem constant byte address 0x4 - core index']
  #allocation1 [shape = 'u32[72,128]{1,0:T(1,128)}', space=vmem, size = 0x9000, scoped, tag = 'internal scratch']
  #allocation2 [shape = 'bf16[3,18,16,32]{3,2,1,0:T(8,128)(2,1)}', space=vmem, size = 0x36000, scoped, tag = 'scratch operand']
  #allocation3 [shape = 'f32[1,32]{1,0:T(1,128)}', space=vmem, size = 0x200, scoped, tag = 'scratch operand']
  %s0 = inlined_call_operand.vmem [shape: bf16[2,16,16,128], index: 0, kind: input, shape index: {}]
  %s1 = inlined_call_operand.vmem [shape: bf16[128,32], index: 1, kind: input, shape index: {}]
  %s2 = inlined_call_operand.vmem [shape: f32[1,32], index: 2, kind: input, shape index: {}]
  %s3 = inlined_call_operand.vmem [shape: f32[1,32], index: 3, kind: input, shape index: {}]
  %s4 = inlined_call_operand.vmem [shape: bf16[288,64], index: 4, kind: input, shape index: {}]
  %s5 = inlined_call_operand.vmem [shape: f32[1,64], index: 5, kind: input, shape index: {}]
  %s6 = inlined_call_operand.vmem [shape: f32[1,64], index: 6, kind: input, shape index: {}]
  %s7 = inlined_call_operand.vmem [shape: bf16[2,256,64], index: 7, kind: output, shape index: {0}]
  %s8 = inlined_call_operand.vmem [shape: f32[2,1,32], index: 8, kind: output, shape index: {1}]
  %9 = xla_tuple %s7, %s8
  %s10 = sld [smem:[#allocation0]]
  $region77: #{bottleneck_forward.3} parent=0
    _
  %s12 = ssub.s32 1, %s10
  %s13 = scalar_select 0, %s12, %s10
  loop: start=0, step=1, limit=6
  $region2: #{bottleneck_forward.3} parent=0 // loop_pre_header
    _
  $region3: #{bottleneck_forward.3} parent=0 // loop_header
    %s15 = sphi 0, %s19
    %p16 = scmp.ge.s32.totalorder %s15, 6
    %s22 = sphi 0, %s34
    %s23 = sphi 0, %s30
    %s24 = sphi 0, %s22
    %s25 = sphi 0, %s23
    %s26 = sphi 0, %s24
    %s27 = sphi 0, %s25
    %s37 = sphi 0, %s39
    %s40 = sphi 0, %s37
    %s41 = sphi 0, %s40
    %s57 = sphi 0, %s41
    %s61 = sphi 0, %s61
    %s63 = sphi 0, %s61
    %s64 = sphi 0, %s63
    %s78 = sphi 0, %s64
    %s82 = sphi 0, %s82
    %s84 = sphi 0, %s82
    %s85 = sphi 0, %s84
    %s99 = sphi 0, %s85
    %s103 = sphi 0, %s103
    %s105 = sphi 0, %s103
    %s106 = sphi 0, %s105
    %s120 = sphi 0, %s106
    %s124 = sphi 0, %s124
    %s126 = sphi 0, %s124
    %s127 = sphi 0, %s126
    %s141 = sphi 0, %s127
    %s145 = sphi 0, %s145
    %s147 = sphi 0, %s145
    %s148 = sphi 0, %s147
    %s162 = sphi 0, %s148
    %s166 = sphi 0, %s166
    %s168 = sphi 0, %s166
    %s169 = sphi 0, %s168
    %s183 = sphi 0, %s169
    %s191 = sphi 0, %s193
    %s194 = sphi 0, %s191
    %s195 = sphi 0, %s194
    %s211 = sphi 0, %s195
    %s217 = sphi 0, %s219
    %s220 = sphi 0, %s217
    %s221 = sphi 0, %s220
    %s237 = sphi 0, %s221
  $region4: #{bottleneck_forward.3} parent=0 // loop_header_branch
    %18 = sbr.rel (%p16) target = $region8
  $region5: #{bottleneck_forward.3} parent=0 // loop_body
    %s20 = ssub.s32 %s15, 1
    %s21 = ssub.s32 %s15, 2
    %s28 = sadd.s32 1, %s23
    %p29 = scmp.ge.s32.totalorder %s28, 2
    %s30 = scalar_select %p29, 0, %s28
    %s31 = sadd.s32 1, %s22
    %s32 = scalar_select %p29, %s31, %s22
    %p33 = scmp.ge.s32.totalorder %s32, 2
    %s34 = scalar_select %p33, 0, %s32
    %s35 = ssub.s32 %s22, %s34
    %p36 = scmp.eq.s32.totalorder %s35, 0
    %s38 = sadd.s32 %s37, 1
    %s39 = scalar_select %p36, %s37, %s38
    %p42 = pneg %p36
    %p43 = scmp.eq.s32.totalorder %s15, 3
    %p44 = por %p42, %p43
    %p45 = scmp.ne.s32.totalorder %s37, %s40
    %p46 = scmp.eq.s32.totalorder %s15, 0
    %p47 = por %p45, %p46
    %p48 = scmp.ne.s32.totalorder %s37, %s40
    %p49 = scmp.eq.s32.totalorder %s20, 3
    %p50 = por %p48, %p49
    %p51 = scmp.ne.s32.totalorder %s40, %s41
    %p52 = scmp.eq.s32.totalorder %s20, 0
    %p53 = por %p51, %p52
    %p54 = scmp.ne.s32.totalorder %s40, %s41
    %p55 = scmp.eq.s32.totalorder %s21, 3
    %p56 = por %p54, %p55
    %p58 = scmp.ne.s32.totalorder %s41, %s57
    %p59 = scmp.eq.s32.totalorder %s21, 0
    %p60 = por %p58, %p59
    %s62 = sadd.s32 %s61, 1
    %p65 = scmp.eq.s32.totalorder %s15, 3
    %p66 = scmp.ne.s32.totalorder %s61, %s63
    %p67 = scmp.eq.s32.totalorder %s15, 0
    %p68 = por %p66, %p67
    %p69 = scmp.ne.s32.totalorder %s61, %s63
    %p70 = scmp.eq.s32.totalorder %s20, 3
    %p71 = por %p69, %p70
    %p72 = scmp.ne.s32.totalorder %s63, %s64
    %p73 = scmp.eq.s32.totalorder %s20, 0
    %p74 = por %p72, %p73
    %p75 = scmp.ne.s32.totalorder %s63, %s64
    %p76 = scmp.eq.s32.totalorder %s21, 3
    %p77 = por %p75, %p76
    %p79 = scmp.ne.s32.totalorder %s64, %s78
    %p80 = scmp.eq.s32.totalorder %s21, 0
    %p81 = por %p79, %p80
    %s83 = sadd.s32 %s82, 1
    %p86 = scmp.eq.s32.totalorder %s15, 3
    %p87 = scmp.ne.s32.totalorder %s82, %s84
    %p88 = scmp.eq.s32.totalorder %s15, 0
    %p89 = por %p87, %p88
    %p90 = scmp.ne.s32.totalorder %s82, %s84
    %p91 = scmp.eq.s32.totalorder %s20, 3
    %p92 = por %p90, %p91
    %p93 = scmp.ne.s32.totalorder %s84, %s85
    %p94 = scmp.eq.s32.totalorder %s20, 0
    %p95 = por %p93, %p94
    %p96 = scmp.ne.s32.totalorder %s84, %s85
    %p97 = scmp.eq.s32.totalorder %s21, 3
    %p98 = por %p96, %p97
    %p100 = scmp.ne.s32.totalorder %s85, %s99
    %p101 = scmp.eq.s32.totalorder %s21, 0
    %p102 = por %p100, %p101
    %s104 = sadd.s32 %s103, 1
    %p107 = scmp.eq.s32.totalorder %s15, 3
    %p108 = scmp.ne.s32.totalorder %s103, %s105
    %p109 = scmp.eq.s32.totalorder %s15, 0
    %p110 = por %p108, %p109
    %p111 = scmp.ne.s32.totalorder %s103, %s105
    %p112 = scmp.eq.s32.totalorder %s20, 3
    %p113 = por %p111, %p112
    %p114 = scmp.ne.s32.totalorder %s105, %s106
    %p115 = scmp.eq.s32.totalorder %s20, 0
    %p116 = por %p114, %p115
    %p117 = scmp.ne.s32.totalorder %s105, %s106
    %p118 = scmp.eq.s32.totalorder %s21, 3
    %p119 = por %p117, %p118
    %p121 = scmp.ne.s32.totalorder %s106, %s120
    %p122 = scmp.eq.s32.totalorder %s21, 0
    %p123 = por %p121, %p122
    %s125 = sadd.s32 %s124, 1
    %p128 = scmp.eq.s32.totalorder %s15, 3
    %p129 = scmp.ne.s32.totalorder %s124, %s126
    %p130 = scmp.eq.s32.totalorder %s15, 0
    %p131 = por %p129, %p130
    %p132 = scmp.ne.s32.totalorder %s124, %s126
    %p133 = scmp.eq.s32.totalorder %s20, 3
    %p134 = por %p132, %p133
    %p135 = scmp.ne.s32.totalorder %s126, %s127
    %p136 = scmp.eq.s32.totalorder %s20, 0
    %p137 = por %p135, %p136
    %p138 = scmp.ne.s32.totalorder %s126, %s127
    %p139 = scmp.eq.s32.totalorder %s21, 3
    %p140 = por %p138, %p139
    %p142 = scmp.ne.s32.totalorder %s127, %s141
    %p143 = scmp.eq.s32.totalorder %s21, 0
    %p144 = por %p142, %p143
    %s146 = sadd.s32 %s145, 1
    %p149 = scmp.eq.s32.totalorder %s15, 3
    %p150 = scmp.ne.s32.totalorder %s145, %s147
    %p151 = scmp.eq.s32.totalorder %s15, 0
    %p152 = por %p150, %p151
    %p153 = scmp.ne.s32.totalorder %s145, %s147
    %p154 = scmp.eq.s32.totalorder %s20, 3
    %p155 = por %p153, %p154
    %p156 = scmp.ne.s32.totalorder %s147, %s148
    %p157 = scmp.eq.s32.totalorder %s20, 0
    %p158 = por %p156, %p157
    %p159 = scmp.ne.s32.totalorder %s147, %s148
    %p160 = scmp.eq.s32.totalorder %s21, 3
    %p161 = por %p159, %p160
    %p163 = scmp.ne.s32.totalorder %s148, %s162
    %p164 = scmp.eq.s32.totalorder %s21, 0
    %p165 = por %p163, %p164
    %s167 = sadd.s32 %s166, 1
    %p170 = scmp.eq.s32.totalorder %s15, 3
    %p171 = scmp.ne.s32.totalorder %s166, %s168
    %p172 = scmp.eq.s32.totalorder %s15, 0
    %p173 = por %p171, %p172
    %p174 = scmp.ne.s32.totalorder %s166, %s168
    %p175 = scmp.eq.s32.totalorder %s20, 3
    %p176 = por %p174, %p175
    %p177 = scmp.ne.s32.totalorder %s168, %s169
    %p178 = scmp.eq.s32.totalorder %s20, 0
    %p179 = por %p177, %p178
    %p180 = scmp.ne.s32.totalorder %s168, %s169
    %p181 = scmp.eq.s32.totalorder %s21, 3
    %p182 = por %p180, %p181
    %p184 = scmp.ne.s32.totalorder %s169, %s183
    %p185 = scmp.eq.s32.totalorder %s21, 0
    %p186 = por %p184, %p185
    %s187 = ssub.s32 %s22, %s34
    %s188 = ssub.s32 %s23, %s30
    %s189 = sor.u32 %s187, %s188
    %p190 = scmp.eq.s32.totalorder %s189, 0
    %s192 = sadd.s32 %s191, 1
    %s193 = scalar_select %p190, %s191, %s192
    %p196 = pneg %p190
    %p197 = scmp.eq.s32.totalorder %s15, 3
    %p198 = por %p196, %p197
    %p199 = scmp.ne.s32.totalorder %s191, %s194
    %p200 = scmp.eq.s32.totalorder %s15, 0
    %p201 = por %p199, %p200
    %p202 = scmp.ne.s32.totalorder %s191, %s194
    %p203 = scmp.eq.s32.totalorder %s20, 3
    %p204 = por %p202, %p203
    %p205 = scmp.ne.s32.totalorder %s194, %s195
    %p206 = scmp.eq.s32.totalorder %s20, 0
    %p207 = por %p205, %p206
    %p208 = scmp.ne.s32.totalorder %s194, %s195
    %p209 = scmp.eq.s32.totalorder %s21, 3
    %p210 = por %p208, %p209
    %p212 = scmp.ne.s32.totalorder %s195, %s211
    %p213 = scmp.eq.s32.totalorder %s21, 0
    %p214 = por %p212, %p213
    %s215 = ssub.s32 %s22, %s34
    %p216 = scmp.eq.s32.totalorder %s215, 0
    %s218 = sadd.s32 %s217, 1
    %s219 = scalar_select %p216, %s217, %s218
    %p222 = pneg %p216
    %p223 = scmp.eq.s32.totalorder %s15, 3
    %p224 = por %p222, %p223
    %p225 = scmp.ne.s32.totalorder %s217, %s220
    %p226 = scmp.eq.s32.totalorder %s15, 0
    %p227 = por %p225, %p226
    %p228 = scmp.ne.s32.totalorder %s217, %s220
    %p229 = scmp.eq.s32.totalorder %s20, 3
    %p230 = por %p228, %p229
    %p231 = scmp.ne.s32.totalorder %s220, %s221
    %p232 = scmp.eq.s32.totalorder %s20, 0
    %p233 = por %p231, %p232
    %p234 = scmp.ne.s32.totalorder %s220, %s221
    %p235 = scmp.eq.s32.totalorder %s21, 3
    %p236 = por %p234, %p235
    %p238 = scmp.ne.s32.totalorder %s221, %s237
    %p239 = scmp.eq.s32.totalorder %s21, 0
    %p240 = por %p238, %p239
    %p241 = scmp.le.s32.totalorder 1, %s15
    %p242 = scmp.lt.s32.totalorder %s15, 5
    %p243 = pnand %p241, %p242
    %p244 = pneg %p243
    // Predicated region
    $region9: #{bottleneck_forward.3} parent=5 // pred_check
      _
    $region10: #{bottleneck_forward.3} parent=5 // pred_check_branch
      %246 = sbr.rel (%p243) target = $region12
    $region11: #{bottleneck_forward.3} parent=5 // pred_region
      %s247 = ssub.s32 %s15, 1
      // Predicated region
      $region13: #{bottleneck_forward.3} parent=11 // pred_check
        %p248 = pneg %p74
      $region14: #{bottleneck_forward.3} parent=11 // pred_check_branch
        %250 = sbr.rel (%p248) target = $region16
      $region15: #{bottleneck_forward.3} parent=11 // pred_region
        _
      $region16: #{bottleneck_forward.3} parent=11 // pred_fallthru
        _
      // Predicated region
      $region17: #{bottleneck_forward.3} parent=11 // pred_check
        %p251 = pneg %p95
      $region18: #{bottleneck_forward.3} parent=11 // pred_check_branch
        %253 = sbr.rel (%p251) target = $region20
      $region19: #{bottleneck_forward.3} parent=11 // pred_region
        _
      $region20: #{bottleneck_forward.3} parent=11 // pred_fallthru
        _
      // Predicated region
      $region21: #{bottleneck_forward.3} parent=11 // pred_check
        %p254 = pneg %p116
      $region22: #{bottleneck_forward.3} parent=11 // pred_check_branch
        %256 = sbr.rel (%p254) target = $region24
      $region23: #{bottleneck_forward.3} parent=11 // pred_region
        _
      $region24: #{bottleneck_forward.3} parent=11 // pred_fallthru
        _
      // Predicated region
      $region25: #{bottleneck_forward.3} parent=11 // pred_check
        %p257 = pneg %p137
      $region26: #{bottleneck_forward.3} parent=11 // pred_check_branch
        %259 = sbr.rel (%p257) target = $region28
      $region27: #{bottleneck_forward.3} parent=11 // pred_region
        _
      $region28: #{bottleneck_forward.3} parent=11 // pred_fallthru
        _
      // Predicated region
      $region29: #{bottleneck_forward.3} parent=11 // pred_check
        %p260 = pneg %p158
      $region30: #{bottleneck_forward.3} parent=11 // pred_check_branch
        %262 = sbr.rel (%p260) target = $region32
      $region31: #{bottleneck_forward.3} parent=11 // pred_region
        _
      $region32: #{bottleneck_forward.3} parent=11 // pred_fallthru
        _
      // Predicated region
      $region33: #{bottleneck_forward.3} parent=11 // pred_check
        %p263 = pneg %p179
      $region34: #{bottleneck_forward.3} parent=11 // pred_check_branch
        %265 = sbr.rel (%p263) target = $region36
      $region35: #{bottleneck_forward.3} parent=11 // pred_region
        _
      $region36: #{bottleneck_forward.3} parent=11 // pred_fallthru
        _
    $region12: #{bottleneck_forward.3} parent=5 // pred_fallthru
      _
    %p266 = scmp.lt.s32.totalorder %s15, 4
    // Predicated region
    $region37: #{bottleneck_forward.3} parent=5 // pred_check
      %p267 = pneg %p266
    $region38: #{bottleneck_forward.3} parent=5 // pred_check_branch
      %269 = sbr.rel (%p267) target = $region40
    $region39: #{bottleneck_forward.3} parent=5 // pred_region
      // Predicated region
      $region41: #{bottleneck_forward.3} parent=39 // pred_check
        %p270 = pneg %p47
      $region42: #{bottleneck_forward.3} parent=39 // pred_check_branch
        %272 = sbr.rel (%p270) target = $region44
      $region43: #{bottleneck_forward.3} parent=39 // pred_region
        %p273 = scmp.lt.s32.totalorder %s22, 1
        %s274 = scalar_select %p273, %s22, 1
        %s275 = smul.addr %s274, 32
        %s276 = smul.addr %s275, 4
        %s277 = scalar_lea.vmem %s0, %s276
      $region44: #{bottleneck_forward.3} parent=39 // pred_fallthru
        _
    $region40: #{bottleneck_forward.3} parent=5 // pred_fallthru
      _
    %p278 = scmp.le.s32.totalorder 1, %s15
    %p279 = scmp.lt.s32.totalorder %s15, 5
    %p280 = pnand %p278, %p279
    %p281 = pneg %p280
    // Predicated region
    $region45: #{bottleneck_forward.3} parent=5 // pred_check
      _
    $region46: #{bottleneck_forward.3} parent=5 // pred_check_branch
      %283 = sbr.rel (%p280) target = $region48
    $region47: #{bottleneck_forward.3} parent=5 // pred_region
      %s284 = ssub.s32 %s15, 1
      %p285 = scmp.lt.s32.totalorder %s24, 1
      %s286 = scalar_select %p285, %s24, 1
      %s287 = smul.addr %s286, 32
      %s288 = smul.addr %s287, 4
      %s289 = scalar_lea.vmem %s0, %s288
      %p290 = pneg %p53
      %p291 = pneg %p50
      %p292 = pneg %p74
      %p293 = pneg %p71
      %p294 = pneg %p95
      %p295 = pneg %p92
      %p296 = pneg %p116
      %p297 = pneg %p113
      %p298 = pneg %p137
      %p299 = pneg %p134
      %p300 = pneg %p158
      %p301 = pneg %p155
      %p302 = pneg %p179
      %p303 = pneg %p176
      %p304 = pneg %p207
      %p305 = pneg %p204
      %s306 = smul.u32 16, %s25
      %p307 = scmp.lt.s32.totalorder %s24, 1
      %s308 = scalar_select %p307, %s24, 1
      %p309 = scmp.lt.s32.totalorder %s306, 31
      %s310 = scalar_select %p309, %s306, 31
      %s311 = smul.addr %s308, 32
      %s312 = sadd.s32 %s310, %s311
      %s313 = smul.addr %s312, 4
      %s314 = scalar_lea.vmem %s7, %s313
      %p315 = pneg %p233
      %p316 = pneg %p230
      %p317 = scmp.lt.s32.totalorder %s24, 1
      %s318 = scalar_select %p317, %s24, 1
      %s319 = scalar_lea.vmem %s8, %s318
      %p320 = scmp.lt.s32.totalorder %s24, 1
      %s321 = scalar_select %p320, %s24, 1
      %s322 = smul.addr %s321, 32
      %s323 = smul.addr %s322, 4
      %s324 = scalar_lea.vmem %s0, %s323
      %s325 = smul.u32 16, %s25
      %p326 = scmp.lt.s32.totalorder %s24, 1
      %s327 = scalar_select %p326, %s24, 1
      %p328 = scmp.lt.s32.totalorder %s325, 31
      %s329 = scalar_select %p328, %s325, 31
      %s330 = smul.addr %s327, 32
      %s331 = sadd.s32 %s329, %s330
      %s332 = smul.addr %s331, 4
      %s333 = scalar_lea.vmem %s7, %s332
      %s334 = smul.u32 16, %s25
      %p335 = scmp.lt.s32.totalorder %s24, 1
      %s336 = scalar_select %p335, %s24, 1
      %s337 = scalar_lea.vmem %s8, %s336
      %p339 = scmp.eq.s32.totalorder %s25, 0
      // Predicated region
      $region49: #{bottleneck_forward.3} parent=47 // pred_check
        %p340 = pneg %p339
      $region50: #{bottleneck_forward.3} parent=47 // pred_check_branch
        %342 = sbr.rel (%p340) target = $region52
      $region51: #{bottleneck_forward.3} parent=47 // pred_region
        %v343 = vld [vmem:[%s324] sm:$0xf]
        %v344 = vld [vmem:[%s324 + $0x4] sm:$0xf]
        %v345 = vld [vmem:[%s324 + $0x8] sm:$0xf]
        %v346 = vld [vmem:[%s324 + $0xc] sm:$0xf]
        %v347 = vld [vmem:[%s324 + $0x10] sm:$0xf]
        %v348 = vld [vmem:[%s324 + $0x14] sm:$0xf]
        %v349 = vld [vmem:[%s324 + $0x18] sm:$0xf]
        %v350 = vld [vmem:[%s324 + $0x1c] sm:$0xf]
        %v351 = vld [vmem:[%s324 + $0x20] sm:$0xf]
        %v352 = vld [vmem:[%s324 + $0x24] sm:$0xf]
        %v353 = vld [vmem:[%s324 + $0x28] sm:$0xf]
        %v354 = vld [vmem:[%s324 + $0x2c] sm:$0xf]
        %v355 = vld [vmem:[%s324 + $0x30] sm:$0xf]
        %v356 = vld [vmem:[%s324 + $0x34] sm:$0xf]
        %v357 = vld [vmem:[%s324 + $0x38] sm:$0xf]
        %v358 = vld [vmem:[%s324 + $0x3c] sm:$0xf]
        %v359 = vld [vmem:[%s324 + $0x40] sm:$0xf]
        %v360 = vld [vmem:[%s324 + $0x44] sm:$0xf]
        %v361 = vld [vmem:[%s324 + $0x48] sm:$0xf]
        %v362 = vld [vmem:[%s324 + $0x4c] sm:$0xf]
        %v363 = vld [vmem:[%s324 + $0x50] sm:$0xf]
        %v364 = vld [vmem:[%s324 + $0x54] sm:$0xf]
        %v365 = vld [vmem:[%s324 + $0x58] sm:$0xf]
        %v366 = vld [vmem:[%s324 + $0x5c] sm:$0xf]
        %v367 = vld [vmem:[%s324 + $0x60] sm:$0xf]
        %v368 = vld [vmem:[%s324 + $0x64] sm:$0xf]
        %v369 = vld [vmem:[%s324 + $0x68] sm:$0xf]
        %v370 = vld [vmem:[%s324 + $0x6c] sm:$0xf]
        %v371 = vld [vmem:[%s324 + $0x70] sm:$0xf]
        %v372 = vld [vmem:[%s324 + $0x74] sm:$0xf]
        %v373 = vld [vmem:[%s324 + $0x78] sm:$0xf]
        %v374 = vld [vmem:[%s324 + $0x7c] sm:$0xf]
        %v375 = vld [vmem:[%s1] sm:$0xf]
        %v376 = vld [vmem:[%s1 + $0x4] sm:$0xf]
        %v377 = vld [vmem:[%s1 + $0x8] sm:$0xf]
        %v378 = vld [vmem:[%s1 + $0xc] sm:$0xf]
        %v379 = vld [vmem:[%s1 + $0x10] sm:$0xf]
        %v380 = vld [vmem:[%s1 + $0x14] sm:$0xf]
        %v381 = vld [vmem:[%s1 + $0x18] sm:$0xf]
        %v382 = vld [vmem:[%s1 + $0x1c] sm:$0xf]
        %v383 = vld [vmem:[%s1 + $0x20] sm:$0xf]
        %v384 = vld [vmem:[%s1 + $0x24] sm:$0xf]
        %v385 = vld [vmem:[%s1 + $0x28] sm:$0xf]
        %v386 = vld [vmem:[%s1 + $0x2c] sm:$0xf]
        %v387 = vld [vmem:[%s1 + $0x30] sm:$0xf]
        %v388 = vld [vmem:[%s1 + $0x34] sm:$0xf]
        %v389 = vld [vmem:[%s1 + $0x38] sm:$0xf]
        %v390 = vld [vmem:[%s1 + $0x3c] sm:$0xf]
        %v423 = vunpack.c.l.b16 %v343
        %v424 = vunpack.c.l.b16 %v344
        %v425 = vunpack.c.l.b16 %v345
        %v426 = vunpack.c.l.b16 %v346
        %v427 = vunpack.c.l.b16 %v347
        %v428 = vunpack.c.l.b16 %v348
        %v429 = vunpack.c.l.b16 %v349
        %v430 = vunpack.c.l.b16 %v350
        %v431 = vunpack.c.l.b16 %v351
        %v432 = vunpack.c.l.b16 %v352
        %v433 = vunpack.c.l.b16 %v353
        %v434 = vunpack.c.l.b16 %v354
        %v435 = vunpack.c.l.b16 %v355
        %v436 = vunpack.c.l.b16 %v356
        %v437 = vunpack.c.l.b16 %v357
        %v438 = vunpack.c.l.b16 %v358
        %v439 = vunpack.c.l.b16 %v359
        %v440 = vunpack.c.l.b16 %v360
        %v441 = vunpack.c.l.b16 %v361
        %v442 = vunpack.c.l.b16 %v362
        %v443 = vunpack.c.l.b16 %v363
        %v444 = vunpack.c.l.b16 %v364
        %v445 = vunpack.c.l.b16 %v365
        %v446 = vunpack.c.l.b16 %v366
        %v447 = vunpack.c.l.b16 %v367
        %v448 = vunpack.c.l.b16 %v368
        %v449 = vunpack.c.l.b16 %v369
        %v450 = vunpack.c.l.b16 %v370
        %v451 = vunpack.c.l.b16 %v371
        %v452 = vunpack.c.l.b16 %v372
        %v453 = vunpack.c.l.b16 %v373
        %v454 = vunpack.c.l.b16 %v374
        %v455 = vpack.c.b16 %v424, %v423
        %v456 = vpack.c.b16 %v426, %v425
        %v457 = vpack.c.b16 %v428, %v427
        %v458 = vpack.c.b16 %v430, %v429
        %v459 = vpack.c.b16 %v432, %v431
        %v460 = vpack.c.b16 %v434, %v433
        %v461 = vpack.c.b16 %v436, %v435
        %v462 = vpack.c.b16 %v438, %v437
        %v463 = vpack.c.b16 %v440, %v439
        %v464 = vpack.c.b16 %v442, %v441
        %v465 = vpack.c.b16 %v444, %v443
        %v466 = vpack.c.b16 %v446, %v445
        %v467 = vpack.c.b16 %v448, %v447
        %v468 = vpack.c.b16 %v450, %v449
        %v469 = vpack.c.b16 %v452, %v451
        %v470 = vpack.c.b16 %v454, %v453
        %v503 = vunpack.c.l.b16 %v375
        %v504 = vunpack.c.l.b16 %v376
        %v505 = vunpack.c.l.b16 %v377
        %v506 = vunpack.c.l.b16 %v378
        %v507 = vunpack.c.l.b16 %v379
        %v508 = vunpack.c.l.b16 %v380
        %v509 = vunpack.c.l.b16 %v381
        %v510 = vunpack.c.l.b16 %v382
        %v511 = vunpack.c.l.b16 %v383
        %v512 = vunpack.c.l.b16 %v384
        %v513 = vunpack.c.l.b16 %v385
        %v514 = vunpack.c.l.b16 %v386
        %v515 = vunpack.c.l.b16 %v387
        %v516 = vunpack.c.l.b16 %v388
        %v517 = vunpack.c.l.b16 %v389
        %v518 = vunpack.c.l.b16 %v390
        %v519 = vpack.c.b16 %v504, %v503
        %v520 = vpack.c.b16 %v506, %v505
        %v521 = vpack.c.b16 %v508, %v507
        %v522 = vpack.c.b16 %v510, %v509
        %v523 = vpack.c.b16 %v512, %v511
        %v524 = vpack.c.b16 %v514, %v513
        %v525 = vpack.c.b16 %v516, %v515
        %v526 = vpack.c.b16 %v518, %v517
        %535 = vmatpush.bf16.msra.mxu0 %v526
        %536 = vmatpush.bf16.msra.mxu0 %v525
        %537 = vmatpush.bf16.msra.mxu0 %v524
        %538 = vmatpush.bf16.msra.mxu0 %v523
        %539 = vmatpush.bf16.msra.mxu0 %v522
        %540 = vmatpush.bf16.msra.mxu0 %v521
        %541 = vmatpush.bf16.msra.mxu0 %v520
        %542 = vmatpush.bf16.msra.mxu0 %v519
        %543 = vmatmul.bf16.gmra.mxu0 %v455
        %v544 = vpop.f32.mrf.mxu0
        %v545 = vadd.f32 0.0, %v544
        %v546 = vpop.f32.mrf.mxu0
        %v547 = vadd.f32 0.0, %v546
        %548 = vmatmul.bf16.gmra.mxu0 %v456
        %v549 = vpop.f32.mrf.mxu0
        %v550 = vadd.f32 0.0, %v549
        %v551 = vpop.f32.mrf.mxu0
        %v552 = vadd.f32 0.0, %v551
        %553 = vmatmul.bf16.gmra.mxu0 %v457
        %v554 = vpop.f32.mrf.mxu0
        %v555 = vadd.f32 0.0, %v554
        %v556 = vpop.f32.mrf.mxu0
        %v557 = vadd.f32 0.0, %v556
        %558 = vmatmul.bf16.gmra.mxu0 %v458
        %v559 = vpop.f32.mrf.mxu0
        %v560 = vadd.f32 0.0, %v559
        %v561 = vpop.f32.mrf.mxu0
        %v562 = vadd.f32 0.0, %v561
        %563 = vmatmul.bf16.gmra.mxu0 %v459
        %v564 = vpop.f32.mrf.mxu0
        %v565 = vadd.f32 0.0, %v564
        %v566 = vpop.f32.mrf.mxu0
        %v567 = vadd.f32 0.0, %v566
        %568 = vmatmul.bf16.gmra.mxu0 %v460
        %v569 = vpop.f32.mrf.mxu0
        %v570 = vadd.f32 0.0, %v569
        %v571 = vpop.f32.mrf.mxu0
        %v572 = vadd.f32 0.0, %v571
        %573 = vmatmul.bf16.gmra.mxu0 %v461
        %v574 = vpop.f32.mrf.mxu0
        %v575 = vadd.f32 0.0, %v574
        %v576 = vpop.f32.mrf.mxu0
        %v577 = vadd.f32 0.0, %v576
        %578 = vmatmul.bf16.gmra.mxu0 %v462
        %v579 = vpop.f32.mrf.mxu0
        %v580 = vadd.f32 0.0, %v579
        %v581 = vpop.f32.mrf.mxu0
        %v582 = vadd.f32 0.0, %v581
        %583 = vmatmul.bf16.gmra.mxu0 %v463
        %v584 = vpop.f32.mrf.mxu0
        %v585 = vadd.f32 0.0, %v584
        %v586 = vpop.f32.mrf.mxu0
        %v587 = vadd.f32 0.0, %v586
        %588 = vmatmul.bf16.gmra.mxu0 %v464
        %v589 = vpop.f32.mrf.mxu0
        %v590 = vadd.f32 0.0, %v589
        %v591 = vpop.f32.mrf.mxu0
        %v592 = vadd.f32 0.0, %v591
        %593 = vmatmul.bf16.gmra.mxu0 %v465
        %v594 = vpop.f32.mrf.mxu0
        %v595 = vadd.f32 0.0, %v594
        %v596 = vpop.f32.mrf.mxu0
        %v597 = vadd.f32 0.0, %v596
        %598 = vmatmul.bf16.gmra.mxu0 %v466
        %v599 = vpop.f32.mrf.mxu0
        %v600 = vadd.f32 0.0, %v599
        %v601 = vpop.f32.mrf.mxu0
        %v602 = vadd.f32 0.0, %v601
        %603 = vmatmul.bf16.gmra.mxu0 %v467
        %v604 = vpop.f32.mrf.mxu0
        %v605 = vadd.f32 0.0, %v604
        %v606 = vpop.f32.mrf.mxu0
        %v607 = vadd.f32 0.0, %v606
        %608 = vmatmul.bf16.gmra.mxu0 %v468
        %v609 = vpop.f32.mrf.mxu0
        %v610 = vadd.f32 0.0, %v609
        %v611 = vpop.f32.mrf.mxu0
        %v612 = vadd.f32 0.0, %v611
        %613 = vmatmul.bf16.gmra.mxu0 %v469
        %v614 = vpop.f32.mrf.mxu0
        %v615 = vadd.f32 0.0, %v614
        %v616 = vpop.f32.mrf.mxu0
        %v617 = vadd.f32 0.0, %v616
        %618 = vmatmul.bf16.gmra.mxu0 %v470
        %v619 = vpop.f32.mrf.mxu0
        %v620 = vadd.f32 0.0, %v619
        %v621 = vpop.f32.mrf.mxu0
        %v622 = vadd.f32 0.0, %v621
        %623 = vdwg.mxu0
        %v624 = vld [vmem:[%s2] sm:$0x1]
        %v626 = vperm.slane %v624, 0
        %v628 = vmul.f32 %v545, %v626
        %v629 = vmul.f32 %v547, %v626
        %v630 = vmul.f32 %v550, %v626
        %v631 = vmul.f32 %v552, %v626
        %v632 = vmul.f32 %v555, %v626
        %v633 = vmul.f32 %v557, %v626
        %v634 = vmul.f32 %v560, %v626
        %v635 = vmul.f32 %v562, %v626
        %v636 = vmul.f32 %v565, %v626
        %v637 = vmul.f32 %v567, %v626
        %v638 = vmul.f32 %v570, %v626
        %v639 = vmul.f32 %v572, %v626
        %v640 = vmul.f32 %v575, %v626
        %v641 = vmul.f32 %v577, %v626
        %v642 = vmul.f32 %v580, %v626
        %v643 = vmul.f32 %v582, %v626
        %v644 = vmul.f32 %v585, %v626
        %v645 = vmul.f32 %v587, %v626
        %v646 = vmul.f32 %v590, %v626
        %v647 = vmul.f32 %v592, %v626
        %v648 = vmul.f32 %v595, %v626
        %v649 = vmul.f32 %v597, %v626
        %v650 = vmul.f32 %v600, %v626
        %v651 = vmul.f32 %v602, %v626
        %v652 = vmul.f32 %v605, %v626
        %v653 = vmul.f32 %v607, %v626
        %v654 = vmul.f32 %v610, %v626
        %v655 = vmul.f32 %v612, %v626
        %v656 = vmul.f32 %v615, %v626
        %v657 = vmul.f32 %v617, %v626
        %v658 = vmul.f32 %v620, %v626
        %v659 = vmul.f32 %v622, %v626
        %v660 = vld [vmem:[%s3] sm:$0x1]
        %v662 = vperm.slane %v660, 0
        %v664 = vadd.f32 %v628, %v662
        %v665 = vadd.f32 %v629, %v662
        %v666 = vadd.f32 %v630, %v662
        %v667 = vadd.f32 %v631, %v662
        %v668 = vadd.f32 %v632, %v662
        %v669 = vadd.f32 %v633, %v662
        %v670 = vadd.f32 %v634, %v662
        %v671 = vadd.f32 %v635, %v662
        %v672 = vadd.f32 %v636, %v662
        %v673 = vadd.f32 %v637, %v662
        %v674 = vadd.f32 %v638, %v662
        %v675 = vadd.f32 %v639, %v662
        %v676 = vadd.f32 %v640, %v662
        %v677 = vadd.f32 %v641, %v662
        %v678 = vadd.f32 %v642, %v662
        %v679 = vadd.f32 %v643, %v662
        %v680 = vadd.f32 %v644, %v662
        %v681 = vadd.f32 %v645, %v662
        %v682 = vadd.f32 %v646, %v662
        %v683 = vadd.f32 %v647, %v662
        %v684 = vadd.f32 %v648, %v662
        %v685 = vadd.f32 %v649, %v662
        %v686 = vadd.f32 %v650, %v662
        %v687 = vadd.f32 %v651, %v662
        %v688 = vadd.f32 %v652, %v662
        %v689 = vadd.f32 %v653, %v662
        %v690 = vadd.f32 %v654, %v662
        %v691 = vadd.f32 %v655, %v662
        %v692 = vadd.f32 %v656, %v662
        %v693 = vadd.f32 %v657, %v662
        %v694 = vadd.f32 %v658, %v662
        %v695 = vadd.f32 %v659, %v662
        %v696 = vmax.f32 %v664, 0.0
        %v697 = vmax.f32 %v665, 0.0
        %v698 = vmax.f32 %v666, 0.0
        %v699 = vmax.f32 %v667, 0.0
        %v700 = vmax.f32 %v668, 0.0
        %v701 = vmax.f32 %v669, 0.0
        %v702 = vmax.f32 %v670, 0.0
        %v703 = vmax.f32 %v671, 0.0
        %v704 = vmax.f32 %v672, 0.0
        %v705 = vmax.f32 %v673, 0.0
        %v706 = vmax.f32 %v674, 0.0
        %v707 = vmax.f32 %v675, 0.0
        %v708 = vmax.f32 %v676, 0.0
        %v709 = vmax.f32 %v677, 0.0
        %v710 = vmax.f32 %v678, 0.0
        %v711 = vmax.f32 %v679, 0.0
        %v712 = vmax.f32 %v680, 0.0
        %v713 = vmax.f32 %v681, 0.0
        %v714 = vmax.f32 %v682, 0.0
        %v715 = vmax.f32 %v683, 0.0
        %v716 = vmax.f32 %v684, 0.0
        %v717 = vmax.f32 %v685, 0.0
        %v718 = vmax.f32 %v686, 0.0
        %v719 = vmax.f32 %v687, 0.0
        %v720 = vmax.f32 %v688, 0.0
        %v721 = vmax.f32 %v689, 0.0
        %v722 = vmax.f32 %v690, 0.0
        %v723 = vmax.f32 %v691, 0.0
        %v724 = vmax.f32 %v692, 0.0
        %v725 = vmax.f32 %v693, 0.0
        %v726 = vmax.f32 %v694, 0.0
        %v727 = vmax.f32 %v695, 0.0
        %v728 = vpack.c.bf16 %v696, %v696
        %v729 = vpack.c.bf16 %v697, %v697
        %v730 = vpack.c.bf16 %v698, %v698
        %v731 = vpack.c.bf16 %v699, %v699
        %v732 = vpack.c.bf16 %v700, %v700
        %v733 = vpack.c.bf16 %v701, %v701
        %v734 = vpack.c.bf16 %v702, %v702
        %v735 = vpack.c.bf16 %v703, %v703
        %v736 = vpack.c.bf16 %v704, %v704
        %v737 = vpack.c.bf16 %v705, %v705
        %v738 = vpack.c.bf16 %v706, %v706
        %v739 = vpack.c.bf16 %v707, %v707
        %v740 = vpack.c.bf16 %v708, %v708
        %v741 = vpack.c.bf16 %v709, %v709
        %v742 = vpack.c.bf16 %v710, %v710
        %v743 = vpack.c.bf16 %v711, %v711
        %v744 = vpack.c.bf16 %v712, %v712
        %v745 = vpack.c.bf16 %v713, %v713
        %v746 = vpack.c.bf16 %v714, %v714
        %v747 = vpack.c.bf16 %v715, %v715
        %v748 = vpack.c.bf16 %v716, %v716
        %v749 = vpack.c.bf16 %v717, %v717
        %v750 = vpack.c.bf16 %v718, %v718
        %v751 = vpack.c.bf16 %v719, %v719
        %v752 = vpack.c.bf16 %v720, %v720
        %v753 = vpack.c.bf16 %v721, %v721
        %v754 = vpack.c.bf16 %v722, %v722
        %v755 = vpack.c.bf16 %v723, %v723
        %v756 = vpack.c.bf16 %v724, %v724
        %v757 = vpack.c.bf16 %v725, %v725
        %v758 = vpack.c.bf16 %v726, %v726
        %v759 = vpack.c.bf16 %v727, %v727
        %vm760 = vcmask 257024
        %761 = vst.msk [vmem:[#allocation2] sm:$0xf] %vm760, 0
        %762 = vst.msk [vmem:[#allocation2 + $0x4] sm:$0xf] %vm760, 0
        %763 = vst.msk [vmem:[#allocation2 + $0x8] sm:$0xf] %vm760, 0
        %764 = vst.msk [vmem:[#allocation2 + $0xc] sm:$0xf] %vm760, 0
        %765 = vst.msk [vmem:[#allocation2 + $0x10] sm:$0xf] %vm760, 0
        %766 = vst.msk [vmem:[#allocation2 + $0x14] sm:$0xf] %vm760, 0
        %767 = vst.msk [vmem:[#allocation2 + $0x18] sm:$0xf] %vm760, 0
        %768 = vst.msk [vmem:[#allocation2 + $0x1c] sm:$0xf] %vm760, 0
        %769 = vst.msk [vmem:[#allocation2 + $0x20] sm:$0xf] %vm760, 0
        %770 = vst.msk [vmem:[#allocation2 + $0x24] sm:$0xf] %vm760, 0
        %771 = vst.msk [vmem:[#allocation2 + $0x28] sm:$0xf] %vm760, 0
        %772 = vst.msk [vmem:[#allocation2 + $0x2c] sm:$0xf] %vm760, 0
        %773 = vst.msk [vmem:[#allocation2 + $0x30] sm:$0xf] %vm760, 0
        %774 = vst.msk [vmem:[#allocation2 + $0x34] sm:$0xf] %vm760, 0
        %775 = vst.msk [vmem:[#allocation2 + $0x38] sm:$0xf] %vm760, 0
        %776 = vst.msk [vmem:[#allocation2 + $0x3c] sm:$0xf] %vm760, 0
        %777 = vst.msk [vmem:[#allocation2 + $0x40] sm:$0xf] %vm760, 0
        %778 = vst.msk [vmem:[#allocation2 + $0x44] sm:$0xf] %vm760, 0
        %779 = vst.msk [vmem:[#allocation2 + $0x48] sm:$0xf] %vm760, 0
        %780 = vst.msk [vmem:[#allocation2 + $0x4c] sm:$0xf] %vm760, 0
        %781 = vst.msk [vmem:[#allocation2 + $0x50] sm:$0xf] %vm760, 0
        %782 = vst.msk [vmem:[#allocation2 + $0x54] sm:$0xf] %vm760, 0
        %783 = vst.msk [vmem:[#allocation2 + $0x58] sm:$0xf] %vm760, 0
        %784 = vst.msk [vmem:[#allocation2 + $0x5c] sm:$0xf] %vm760, 0
        %785 = vst.msk [vmem:[#allocation2 + $0x60] sm:$0xf] %vm760, 0
        %786 = vst.msk [vmem:[#allocation2 + $0x64] sm:$0xf] %vm760, 0
        %787 = vst.msk [vmem:[#allocation2 + $0x68] sm:$0xf] %vm760, 0
        %788 = vst.msk [vmem:[#allocation2 + $0x6c] sm:$0xf] %vm760, 0
        %789 = vst.msk [vmem:[#allocation2 + $0x70] sm:$0xf] %vm760, 0
        %790 = vst.msk [vmem:[#allocation2 + $0x74] sm:$0xf] %vm760, 0
        %791 = vst.msk [vmem:[#allocation2 + $0x78] sm:$0xf] %vm760, 0
        %792 = vst.msk [vmem:[#allocation2 + $0x7c] sm:$0xf] %vm760, 0
        %793 = vst.msk [vmem:[#allocation2 + $0x80] sm:$0xf] %vm760, 0
        %794 = vst.msk [vmem:[#allocation2 + $0x84] sm:$0xf] %vm760, 0
        %795 = vst.msk [vmem:[#allocation2 + $0x88] sm:$0xf] %vm760, 0
        %796 = vst.msk [vmem:[#allocation2 + $0x8c] sm:$0xf] %vm760, 0
        %797 = vst.msk [vmem:[#allocation2 + $0x90] sm:$0xf] %vm760, 0
        %798 = vst.msk [vmem:[#allocation2 + $0x94] sm:$0xf] %vm760, 0
        %799 = vst.msk [vmem:[#allocation2 + $0x98] sm:$0xf] %vm760, 0
        %800 = vst.msk [vmem:[#allocation2 + $0x9c] sm:$0xf] %vm760, 0
        %801 = vst.msk [vmem:[#allocation2 + $0xa0] sm:$0xf] %vm760, 0
        %802 = vst.msk [vmem:[#allocation2 + $0xa4] sm:$0xf] %vm760, 0
        %803 = vst.msk [vmem:[#allocation2 + $0xa8] sm:$0xf] %vm760, 0
        %804 = vst.msk [vmem:[#allocation2 + $0xac] sm:$0xf] %vm760, 0
        %805 = vst.msk [vmem:[#allocation2 + $0xb0] sm:$0xf] %vm760, 0
        %806 = vst.msk [vmem:[#allocation2 + $0xb4] sm:$0xf] %vm760, 0
        %807 = vst.msk [vmem:[#allocation2 + $0xb8] sm:$0xf] %vm760, 0
        %808 = vst.msk [vmem:[#allocation2 + $0xbc] sm:$0xf] %vm760, 0
        %809 = vst.msk [vmem:[#allocation2 + $0xc0] sm:$0xf] %vm760, 0
        %810 = vst.msk [vmem:[#allocation2 + $0xc4] sm:$0xf] %vm760, 0
        %811 = vst.msk [vmem:[#allocation2 + $0xc8] sm:$0xf] %vm760, 0
        %812 = vst.msk [vmem:[#allocation2 + $0xcc] sm:$0xf] %vm760, 0
        %813 = vst.msk [vmem:[#allocation2 + $0xd0] sm:$0xf] %vm760, 0
        %814 = vst.msk [vmem:[#allocation2 + $0xd4] sm:$0xf] %vm760, 0
        %815 = vst.msk [vmem:[#allocation2 + $0xd8] sm:$0xf] %vm760, 0
        %816 = vst.msk [vmem:[#allocation2 + $0xdc] sm:$0xf] %vm760, 0
        %817 = vst.msk [vmem:[#allocation2 + $0xe0] sm:$0xf] %vm760, 0
        %818 = vst.msk [vmem:[#allocation2 + $0xe4] sm:$0xf] %vm760, 0
        %819 = vst.msk [vmem:[#allocation2 + $0xe8] sm:$0xf] %vm760, 0
        %820 = vst.msk [vmem:[#allocation2 + $0xec] sm:$0xf] %vm760, 0
        %821 = vst.msk [vmem:[#allocation2 + $0xf0] sm:$0xf] %vm760, 0
        %822 = vst.msk [vmem:[#allocation2 + $0xf4] sm:$0xf] %vm760, 0
        %823 = vst.msk [vmem:[#allocation2 + $0xf8] sm:$0xf] %vm760, 0
        %824 = vst.msk [vmem:[#allocation2 + $0xfc] sm:$0xf] %vm760, 0
        %825 = vst.msk [vmem:[#allocation2 + $0x100] sm:$0xf] %vm760, 0
        %826 = vst.msk [vmem:[#allocation2 + $0x104] sm:$0xf] %vm760, 0
        %827 = vst.msk [vmem:[#allocation2 + $0x108] sm:$0xf] %vm760, 0
        %828 = vst.msk [vmem:[#allocation2 + $0x10c] sm:$0xf] %vm760, 0
        %829 = vst.msk [vmem:[#allocation2 + $0x110] sm:$0xf] %vm760, 0
        %830 = vst.msk [vmem:[#allocation2 + $0x114] sm:$0xf] %vm760, 0
        %831 = vst.msk [vmem:[#allocation2 + $0x118] sm:$0xf] %vm760, 0
        %832 = vst.msk [vmem:[#allocation2 + $0x11c] sm:$0xf] %vm760, 0
        %833 = vst.msk [vmem:[#allocation2 + $0x120] sm:$0xf] %vm760, 0
        %834 = vst.msk [vmem:[#allocation2 + $0x124] sm:$0xf] %vm760, 0
        %835 = vst.msk [vmem:[#allocation2 + $0x128] sm:$0xf] %vm760, 0
        %836 = vst.msk [vmem:[#allocation2 + $0x12c] sm:$0xf] %vm760, 0
        %837 = vst.msk [vmem:[#allocation2 + $0x130] sm:$0xf] %vm760, 0
        %838 = vst.msk [vmem:[#allocation2 + $0x134] sm:$0xf] %vm760, 0
        %839 = vst.msk [vmem:[#allocation2 + $0x138] sm:$0xf] %vm760, 0
        %840 = vst.msk [vmem:[#allocation2 + $0x13c] sm:$0xf] %vm760, 0
        %841 = vst.msk [vmem:[#allocation2 + $0x140] sm:$0xf] %vm760, 0
        %842 = vst.msk [vmem:[#allocation2 + $0x144] sm:$0xf] %vm760, 0
        %843 = vst.msk [vmem:[#allocation2 + $0x148] sm:$0xf] %vm760, 0
        %844 = vst.msk [vmem:[#allocation2 + $0x14c] sm:$0xf] %vm760, 0
        %845 = vst.msk [vmem:[#allocation2 + $0x150] sm:$0xf] %vm760, 0
        %846 = vst.msk [vmem:[#allocation2 + $0x154] sm:$0xf] %vm760, 0
        %847 = vst.msk [vmem:[#allocation2 + $0x158] sm:$0xf] %vm760, 0
        %848 = vst.msk [vmem:[#allocation2 + $0x15c] sm:$0xf] %vm760, 0
        %849 = vst.msk [vmem:[#allocation2 + $0x160] sm:$0xf] %vm760, 0
        %850 = vst.msk [vmem:[#allocation2 + $0x164] sm:$0xf] %vm760, 0
        %851 = vst.msk [vmem:[#allocation2 + $0x168] sm:$0xf] %vm760, 0
        %852 = vst.msk [vmem:[#allocation2 + $0x16c] sm:$0xf] %vm760, 0
        %853 = vst.msk [vmem:[#allocation2 + $0x170] sm:$0xf] %vm760, 0
        %854 = vst.msk [vmem:[#allocation2 + $0x174] sm:$0xf] %vm760, 0
        %855 = vst.msk [vmem:[#allocation2 + $0x178] sm:$0xf] %vm760, 0
        %856 = vst.msk [vmem:[#allocation2 + $0x17c] sm:$0xf] %vm760, 0
        %857 = vst.msk [vmem:[#allocation2 + $0x180] sm:$0xf] %vm760, 0
        %858 = vst.msk [vmem:[#allocation2 + $0x184] sm:$0xf] %vm760, 0
        %859 = vst.msk [vmem:[#allocation2 + $0x188] sm:$0xf] %vm760, 0
        %860 = vst.msk [vmem:[#allocation2 + $0x18c] sm:$0xf] %vm760, 0
        %861 = vst.msk [vmem:[#allocation2 + $0x190] sm:$0xf] %vm760, 0
        %862 = vst.msk [vmem:[#allocation2 + $0x194] sm:$0xf] %vm760, 0
        %863 = vst.msk [vmem:[#allocation2 + $0x198] sm:$0xf] %vm760, 0
        %864 = vst.msk [vmem:[#allocation2 + $0x19c] sm:$0xf] %vm760, 0
        %865 = vst.msk [vmem:[#allocation2 + $0x1a0] sm:$0xf] %vm760, 0
        %866 = vst.msk [vmem:[#allocation2 + $0x1a4] sm:$0xf] %vm760, 0
        %867 = vst.msk [vmem:[#allocation2 + $0x1a8] sm:$0xf] %vm760, 0
        %868 = vst.msk [vmem:[#allocation2 + $0x1ac] sm:$0xf] %vm760, 0
        %s869 = scalar_lea.vmem [#allocation2], 152
        %870 = vst.msk [vmem:[%s869] sm:$0xf] %vm760, %v728
        %871 = vst.msk [vmem:[%s869 + $0x4] sm:$0xf] %vm760, %v729
        %872 = vst.msk [vmem:[%s869 + $0x8] sm:$0xf] %vm760, %v730
        %873 = vst.msk [vmem:[%s869 + $0xc] sm:$0xf] %vm760, %v731
        %874 = vst.msk [vmem:[%s869 + $0x10] sm:$0xf] %vm760, %v732
        %875 = vst.msk [vmem:[%s869 + $0x14] sm:$0xf] %vm760, %v733
        %876 = vst.msk [vmem:[%s869 + $0x18] sm:$0xf] %vm760, %v734
        %877 = vst.msk [vmem:[%s869 + $0x1c] sm:$0xf] %vm760, %v735
        %878 = vst.msk [vmem:[%s869 + $0x20] sm:$0xf] %vm760, %v736
        %879 = vst.msk [vmem:[%s869 + $0x24] sm:$0xf] %vm760, %v737
        %880 = vst.msk [vmem:[%s869 + $0x28] sm:$0xf] %vm760, %v738
        %881 = vst.msk [vmem:[%s869 + $0x2c] sm:$0xf] %vm760, %v739
        %882 = vst.msk [vmem:[%s869 + $0x30] sm:$0xf] %vm760, %v740
        %883 = vst.msk [vmem:[%s869 + $0x34] sm:$0xf] %vm760, %v741
        %884 = vst.msk [vmem:[%s869 + $0x38] sm:$0xf] %vm760, %v742
        %885 = vst.msk [vmem:[%s869 + $0x3c] sm:$0xf] %vm760, %v743
        %886 = vst.msk [vmem:[%s869 + $0x40] sm:$0xf] %vm760, %v744
        %887 = vst.msk [vmem:[%s869 + $0x44] sm:$0xf] %vm760, %v745
        %888 = vst.msk [vmem:[%s869 + $0x48] sm:$0xf] %vm760, %v746
        %889 = vst.msk [vmem:[%s869 + $0x4c] sm:$0xf] %vm760, %v747
        %890 = vst.msk [vmem:[%s869 + $0x50] sm:$0xf] %vm760, %v748
        %891 = vst.msk [vmem:[%s869 + $0x54] sm:$0xf] %vm760, %v749
        %892 = vst.msk [vmem:[%s869 + $0x58] sm:$0xf] %vm760, %v750
        %893 = vst.msk [vmem:[%s869 + $0x5c] sm:$0xf] %vm760, %v751
        %894 = vst.msk [vmem:[%s869 + $0x60] sm:$0xf] %vm760, %v752
        %895 = vst.msk [vmem:[%s869 + $0x64] sm:$0xf] %vm760, %v753
        %896 = vst.msk [vmem:[%s869 + $0x68] sm:$0xf] %vm760, %v754
        %897 = vst.msk [vmem:[%s869 + $0x6c] sm:$0xf] %vm760, %v755
        %898 = vst.msk [vmem:[%s869 + $0x70] sm:$0xf] %vm760, %v756
        %899 = vst.msk [vmem:[%s869 + $0x74] sm:$0xf] %vm760, %v757
        %900 = vst.msk [vmem:[%s869 + $0x78] sm:$0xf] %vm760, %v758
        %901 = vst.msk [vmem:[%s869 + $0x7c] sm:$0xf] %vm760, %v759
        %vm902 = vsmask.f32 256
        %vm903 = vsmask.f32 4368
        %vm904 = vmor %vm902, %vm903
        %v906 = vshrl.u32 %v728, 16
        %v908 = vrot.slane %v906, 7
        %v909 = vshll.u32 %v728, 16
        %v911 = vor.u32 %v908, %v909
        %v912 = vrot.slane %v908, 4
        %v914 = vshrl.u32 %v729, 16
        %v916 = vrot.slane %v914, 7
        %v917 = vshll.u32 %v729, 16
        %v919 = vor.u32 %v916, %v917
        %v920 = vsel %vm904, %v912, %v919
        %v922 = vshrl.u32 %v730, 16
        %v924 = vrot.slane %v922, 7
        %v925 = vshll.u32 %v730, 16
        %v927 = vor.u32 %v924, %v925
        %v928 = vrot.slane %v924, 4
        %v930 = vshrl.u32 %v731, 16
        %v932 = vrot.slane %v930, 7
        %v933 = vshll.u32 %v731, 16
        %v935 = vor.u32 %v932, %v933
        %v936 = vsel %vm904, %v928, %v935
        %v938 = vshrl.u32 %v732, 16
        %v940 = vrot.slane %v938, 7
        %v941 = vshll.u32 %v732, 16
        %v943 = vor.u32 %v940, %v941
        %v944 = vrot.slane %v940, 4
        %v946 = vshrl.u32 %v733, 16
        %v948 = vrot.slane %v946, 7
        %v949 = vshll.u32 %v733, 16
        %v951 = vor.u32 %v948, %v949
        %v952 = vsel %vm904, %v944, %v951
        %v954 = vshrl.u32 %v734, 16
        %v956 = vrot.slane %v954, 7
        %v957 = vshll.u32 %v734, 16
        %v959 = vor.u32 %v956, %v957
        %v960 = vrot.slane %v956, 4
        %v962 = vshrl.u32 %v735, 16
        %v964 = vrot.slane %v962, 7
        %v965 = vshll.u32 %v735, 16
        %v967 = vor.u32 %v964, %v965
        %v968 = vsel %vm904, %v960, %v967
        %v970 = vshrl.u32 %v736, 16
        %v972 = vrot.slane %v970, 7
        %v973 = vshll.u32 %v736, 16
        %v975 = vor.u32 %v972, %v973
        %v976 = vrot.slane %v972, 4
        %v978 = vshrl.u32 %v737, 16
        %v980 = vrot.slane %v978, 7
        %v981 = vshll.u32 %v737, 16
        %v983 = vor.u32 %v980, %v981
        %v984 = vsel %vm904, %v976, %v983
        %v986 = vshrl.u32 %v738, 16
        %v988 = vrot.slane %v986, 7
        %v989 = vshll.u32 %v738, 16
        %v991 = vor.u32 %v988, %v989
        %v992 = vrot.slane %v988, 4
        %v994 = vshrl.u32 %v739, 16
        %v996 = vrot.slane %v994, 7
        %v997 = vshll.u32 %v739, 16
        %v999 = vor.u32 %v996, %v997
        %v1000 = vsel %vm904, %v992, %v999
        %v1002 = vshrl.u32 %v740, 16
        %v1004 = vrot.slane %v1002, 7
        %v1005 = vshll.u32 %v740, 16
        %v1007 = vor.u32 %v1004, %v1005
        %v1008 = vrot.slane %v1004, 4
        %v1010 = vshrl.u32 %v741, 16
        %v1012 = vrot.slane %v1010, 7
        %v1013 = vshll.u32 %v741, 16
        %v1015 = vor.u32 %v1012, %v1013
        %v1016 = vsel %vm904, %v1008, %v1015
        %v1018 = vshrl.u32 %v742, 16
        %v1020 = vrot.slane %v1018, 7
        %v1021 = vshll.u32 %v742, 16
        %v1023 = vor.u32 %v1020, %v1021
        %v1024 = vrot.slane %v1020, 4
        %v1026 = vshrl.u32 %v743, 16
        %v1028 = vrot.slane %v1026, 7
        %v1029 = vshll.u32 %v743, 16
        %v1031 = vor.u32 %v1028, %v1029
        %v1032 = vsel %vm904, %v1024, %v1031
        %v1034 = vshrl.u32 %v744, 16
        %v1036 = vrot.slane %v1034, 7
        %v1037 = vshll.u32 %v744, 16
        %v1039 = vor.u32 %v1036, %v1037
        %v1040 = vrot.slane %v1036, 4
        %v1042 = vshrl.u32 %v745, 16
        %v1044 = vrot.slane %v1042, 7
        %v1045 = vshll.u32 %v745, 16
        %v1047 = vor.u32 %v1044, %v1045
        %v1048 = vsel %vm904, %v1040, %v1047
        %v1050 = vshrl.u32 %v746, 16
        %v1052 = vrot.slane %v1050, 7
        %v1053 = vshll.u32 %v746, 16
        %v1055 = vor.u32 %v1052, %v1053
        %v1056 = vrot.slane %v1052, 4
        %v1058 = vshrl.u32 %v747, 16
        %v1060 = vrot.slane %v1058, 7
        %v1061 = vshll.u32 %v747, 16
        %v1063 = vor.u32 %v1060, %v1061
        %v1064 = vsel %vm904, %v1056, %v1063
        %v1066 = vshrl.u32 %v748, 16
        %v1068 = vrot.slane %v1066, 7
        %v1069 = vshll.u32 %v748, 16
        %v1071 = vor.u32 %v1068, %v1069
        %v1072 = vrot.slane %v1068, 4
        %v1074 = vshrl.u32 %v749, 16
        %v1076 = vrot.slane %v1074, 7
        %v1077 = vshll.u32 %v749, 16
        %v1079 = vor.u32 %v1076, %v1077
        %v1080 = vsel %vm904, %v1072, %v1079
        %v1082 = vshrl.u32 %v750, 16
        %v1084 = vrot.slane %v1082, 7
        %v1085 = vshll.u32 %v750, 16
        %v1087 = vor.u32 %v1084, %v1085
        %v1088 = vrot.slane %v1084, 4
        %v1090 = vshrl.u32 %v751, 16
        %v1092 = vrot.slane %v1090, 7
        %v1093 = vshll.u32 %v751, 16
        %v1095 = vor.u32 %v1092, %v1093
        %v1096 = vsel %vm904, %v1088, %v1095
        %v1098 = vshrl.u32 %v752, 16
        %v1100 = vrot.slane %v1098, 7
        %v1101 = vshll.u32 %v752, 16
        %v1103 = vor.u32 %v1100, %v1101
        %v1104 = vrot.slane %v1100, 4
        %v1106 = vshrl.u32 %v753, 16
        %v1108 = vrot.slane %v1106, 7
        %v1109 = vshll.u32 %v753, 16
        %v1111 = vor.u32 %v1108, %v1109
        %v1112 = vsel %vm904, %v1104, %v1111
        %v1114 = vshrl.u32 %v754, 16
        %v1116 = vrot.slane %v1114, 7
        %v1117 = vshll.u32 %v754, 16
        %v1119 = vor.u32 %v1116, %v1117
        %v1120 = vrot.slane %v1116, 4
        %v1122 = vshrl.u32 %v755, 16
        %v1124 = vrot.slane %v1122, 7
        %v1125 = vshll.u32 %v755, 16
        %v1127 = vor.u32 %v1124, %v1125
        %v1128 = vsel %vm904, %v1120, %v1127
        %v1130 = vshrl.u32 %v756, 16
        %v1132 = vrot.slane %v1130, 7
        %v1133 = vshll.u32 %v756, 16
        %v1135 = vor.u32 %v1132, %v1133
        %v1136 = vrot.slane %v1132, 4
        %v1138 = vshrl.u32 %v757, 16
        %v1140 = vrot.slane %v1138, 7
        %v1141 = vshll.u32 %v757, 16
        %v1143 = vor.u32 %v1140, %v1141
        %v1144 = vsel %vm904, %v1136, %v1143
        %v1146 = vshrl.u32 %v758, 16
        %v1148 = vrot.slane %v1146, 7
        %v1149 = vshll.u32 %v758, 16
        %v1151 = vor.u32 %v1148, %v1149
        %v1152 = vrot.slane %v1148, 4
        %v1154 = vshrl.u32 %v759, 16
        %v1156 = vrot.slane %v1154, 7
        %v1157 = vshll.u32 %v759, 16
        %v1159 = vor.u32 %v1156, %v1157
        %v1160 = vsel %vm904, %v1152, %v1159
        %s1193 = scalar_lea.vmem [#allocation2], 8
        %vm1194 = vcmask 257024
        %vm1195 = vsmask.f32 7938
        %vm1196 = vmand %vm1194, %vm1195
        %v1197 = vld [vmem:[%s1193] sm:$0xf]
        %v1198 = vsel %vm1196, %v911, %v1197
        %1199 = vst [vmem:[%s1193] sm:$0xf] %v1198
        %1200 = vst.msk [vmem:[%s1193 + $0x4] sm:$0xf] %vm760, %v920
        %v1201 = vld [vmem:[%s1193 + $0x8] sm:$0xf]
        %v1202 = vsel %vm1196, %v927, %v1201
        %1203 = vst [vmem:[%s1193 + $0x8] sm:$0xf] %v1202
        %1204 = vst.msk [vmem:[%s1193 + $0xc] sm:$0xf] %vm760, %v936
        %v1205 = vld [vmem:[%s1193 + $0x10] sm:$0xf]
        %v1206 = vsel %vm1196, %v943, %v1205
        %1207 = vst [vmem:[%s1193 + $0x10] sm:$0xf] %v1206
        %1208 = vst.msk [vmem:[%s1193 + $0x14] sm:$0xf] %vm760, %v952
        %v1209 = vld [vmem:[%s1193 + $0x18] sm:$0xf]
        %v1210 = vsel %vm1196, %v959, %v1209
        %1211 = vst [vmem:[%s1193 + $0x18] sm:$0xf] %v1210
        %1212 = vst.msk [vmem:[%s1193 + $0x1c] sm:$0xf] %vm760, %v968
        %v1213 = vld [vmem:[%s1193 + $0x20] sm:$0xf]
        %v1214 = vsel %vm1196, %v975, %v1213
        %1215 = vst [vmem:[%s1193 + $0x20] sm:$0xf] %v1214
        %1216 = vst.msk [vmem:[%s1193 + $0x24] sm:$0xf] %vm760, %v984
        %v1217 = vld [vmem:[%s1193 + $0x28] sm:$0xf]
        %v1218 = vsel %vm1196, %v991, %v1217
        %1219 = vst [vmem:[%s1193 + $0x28] sm:$0xf] %v1218
        %1220 = vst.msk [vmem:[%s1193 + $0x2c] sm:$0xf] %vm760, %v1000
        %v1221 = vld [vmem:[%s1193 + $0x30] sm:$0xf]
        %v1222 = vsel %vm1196, %v1007, %v1221
        %1223 = vst [vmem:[%s1193 + $0x30] sm:$0xf] %v1222
        %1224 = vst.msk [vmem:[%s1193 + $0x34] sm:$0xf] %vm760, %v1016
        %v1225 = vld [vmem:[%s1193 + $0x38] sm:$0xf]
        %v1226 = vsel %vm1196, %v1023, %v1225
        %1227 = vst [vmem:[%s1193 + $0x38] sm:$0xf] %v1226
        %1228 = vst.msk [vmem:[%s1193 + $0x3c] sm:$0xf] %vm760, %v1032
        %v1229 = vld [vmem:[%s1193 + $0x40] sm:$0xf]
        %v1230 = vsel %vm1196, %v1039, %v1229
        %1231 = vst [vmem:[%s1193 + $0x40] sm:$0xf] %v1230
        %1232 = vst.msk [vmem:[%s1193 + $0x44] sm:$0xf] %vm760, %v1048
        %v1233 = vld [vmem:[%s1193 + $0x48] sm:$0xf]
        %v1234 = vsel %vm1196, %v1055, %v1233
        %1235 = vst [vmem:[%s1193 + $0x48] sm:$0xf] %v1234
        %1236 = vst.msk [vmem:[%s1193 + $0x4c] sm:$0xf] %vm760, %v1064
        %v1237 = vld [vmem:[%s1193 + $0x50] sm:$0xf]
        %v1238 = vsel %vm1196, %v1071, %v1237
        %1239 = vst [vmem:[%s1193 + $0x50] sm:$0xf] %v1238
        %1240 = vst.msk [vmem:[%s1193 + $0x54] sm:$0xf] %vm760, %v1080
        %v1241 = vld [vmem:[%s1193 + $0x58] sm:$0xf]
        %v1242 = vsel %vm1196, %v1087, %v1241
        %1243 = vst [vmem:[%s1193 + $0x58] sm:$0xf] %v1242
        %1244 = vst.msk [vmem:[%s1193 + $0x5c] sm:$0xf] %vm760, %v1096
        %v1245 = vld [vmem:[%s1193 + $0x60] sm:$0xf]
        %v1246 = vsel %vm1196, %v1103, %v1245
        %1247 = vst [vmem:[%s1193 + $0x60] sm:$0xf] %v1246
        %1248 = vst.msk [vmem:[%s1193 + $0x64] sm:$0xf] %vm760, %v1112
        %v1249 = vld [vmem:[%s1193 + $0x68] sm:$0xf]
        %v1250 = vsel %vm1196, %v1119, %v1249
        %1251 = vst [vmem:[%s1193 + $0x68] sm:$0xf] %v1250
        %1252 = vst.msk [vmem:[%s1193 + $0x6c] sm:$0xf] %vm760, %v1128
        %v1253 = vld [vmem:[%s1193 + $0x70] sm:$0xf]
        %v1254 = vsel %vm1196, %v1135, %v1253
        %1255 = vst [vmem:[%s1193 + $0x70] sm:$0xf] %v1254
        %1256 = vst.msk [vmem:[%s1193 + $0x74] sm:$0xf] %vm760, %v1144
        %v1257 = vld [vmem:[%s1193 + $0x78] sm:$0xf]
        %v1258 = vsel %vm1196, %v1151, %v1257
        %1259 = vst [vmem:[%s1193 + $0x78] sm:$0xf] %v1258
        %1260 = vst.msk [vmem:[%s1193 + $0x7c] sm:$0xf] %vm760, %v1160
        %vm1261 = vsmask.f32 3328
        %vm1262 = vsmask.f32 7440
        %vm1263 = vmor %vm1261, %vm1262
        %v1264 = vrot.slane %v906, 4
        %v1265 = vrot.slane %v909, 5
        %v1266 = vor.u32 %v1264, %v1265
        %v1267 = vrot.slane %v1266, 4
        %v1268 = vrot.slane %v917, 5
        %v1269 = vsel %vm1263, %v1267, %v1268
        %v1270 = vrot.slane %v914, 4
        %v1271 = vor.u32 %v1270, %v1268
        %v1272 = vrot.slane %v1271, 4
        %v1273 = vrot.slane %v922, 4
        %v1274 = vrot.slane %v925, 5
        %v1275 = vor.u32 %v1273, %v1274
        %v1276 = vrot.slane %v1275, 4
        %v1277 = vrot.slane %v933, 5
        %v1278 = vsel %vm1263, %v1276, %v1277
        %v1279 = vrot.slane %v930, 4
        %v1280 = vor.u32 %v1279, %v1277
        %v1281 = vrot.slane %v1280, 4
        %v1282 = vrot.slane %v938, 4
        %v1283 = vrot.slane %v941, 5
        %v1284 = vor.u32 %v1282, %v1283
        %v1285 = vrot.slane %v1284, 4
        %v1286 = vrot.slane %v949, 5
        %v1287 = vsel %vm1263, %v1285, %v1286
        %v1288 = vrot.slane %v946, 4
        %v1289 = vor.u32 %v1288, %v1286
        %v1290 = vrot.slane %v1289, 4
        %v1291 = vrot.slane %v954, 4
        %v1292 = vrot.slane %v957, 5
        %v1293 = vor.u32 %v1291, %v1292
        %v1294 = vrot.slane %v1293, 4
        %v1295 = vrot.slane %v965, 5
        %v1296 = vsel %vm1263, %v1294, %v1295
        %v1297 = vrot.slane %v962, 4
        %v1298 = vor.u32 %v1297, %v1295
        %v1299 = vrot.slane %v1298, 4
        %v1300 = vrot.slane %v970, 4
        %v1301 = vrot.slane %v973, 5
        %v1302 = vor.u32 %v1300, %v1301
        %v1303 = vrot.slane %v1302, 4
        %v1304 = vrot.slane %v981, 5
        %v1305 = vsel %vm1263, %v1303, %v1304
        %v1306 = vrot.slane %v978, 4
        %v1307 = vor.u32 %v1306, %v1304
        %v1308 = vrot.slane %v1307, 4
        %v1309 = vrot.slane %v986, 4
        %v1310 = vrot.slane %v989, 5
        %v1311 = vor.u32 %v1309, %v1310
        %v1312 = vrot.slane %v1311, 4
        %v1313 = vrot.slane %v997, 5
        %v1314 = vsel %vm1263, %v1312, %v1313
        %v1315 = vrot.slane %v994, 4
        %v1316 = vor.u32 %v1315, %v1313
        %v1317 = vrot.slane %v1316, 4
        %v1318 = vrot.slane %v1002, 4
        %v1319 = vrot.slane %v1005, 5
        %v1320 = vor.u32 %v1318, %v1319
        %v1321 = vrot.slane %v1320, 4
        %v1322 = vrot.slane %v1013, 5
        %v1323 = vsel %vm1263, %v1321, %v1322
        %v1324 = vrot.slane %v1010, 4
        %v1325 = vor.u32 %v1324, %v1322
        %v1326 = vrot.slane %v1325, 4
        %v1327 = vrot.slane %v1018, 4
        %v1328 = vrot.slane %v1021, 5
        %v1329 = vor.u32 %v1327, %v1328
        %v1330 = vrot.slane %v1329, 4
        %v1331 = vrot.slane %v1029, 5
        %v1332 = vsel %vm1263, %v1330, %v1331
        %v1333 = vrot.slane %v1026, 4
        %v1334 = vor.u32 %v1333, %v1331
        %v1335 = vrot.slane %v1334, 4
        %v1336 = vrot.slane %v1034, 4
        %v1337 = vrot.slane %v1037, 5
        %v1338 = vor.u32 %v1336, %v1337
        %v1339 = vrot.slane %v1338, 4
        %v1340 = vrot.slane %v1045, 5
        %v1341 = vsel %vm1263, %v1339, %v1340
        %v1342 = vrot.slane %v1042, 4
        %v1343 = vor.u32 %v1342, %v1340
        %v1344 = vrot.slane %v1343, 4
        %v1345 = vrot.slane %v1050, 4
        %v1346 = vrot.slane %v1053, 5
        %v1347 = vor.u32 %v1345, %v1346
        %v1348 = vrot.slane %v1347, 4
        %v1349 = vrot.slane %v1061, 5
        %v1350 = vsel %vm1263, %v1348, %v1349
        %v1351 = vrot.slane %v1058, 4
        %v1352 = vor.u32 %v1351, %v1349
        %v1353 = vrot.slane %v1352, 4
        %v1354 = vrot.slane %v1066, 4
        %v1355 = vrot.slane %v1069, 5
        %v1356 = vor.u32 %v1354, %v1355
        %v1357 = vrot.slane %v1356, 4
        %v1358 = vrot.slane %v1077, 5
        %v1359 = vsel %vm1263, %v1357, %v1358
        %v1360 = vrot.slane %v1074, 4
        %v1361 = vor.u32 %v1360, %v1358
        %v1362 = vrot.slane %v1361, 4
        %v1363 = vrot.slane %v1082, 4
        %v1364 = vrot.slane %v1085, 5
        %v1365 = vor.u32 %v1363, %v1364
        %v1366 = vrot.slane %v1365, 4
        %v1367 = vrot.slane %v1093, 5
        %v1368 = vsel %vm1263, %v1366, %v1367
        %v1369 = vrot.slane %v1090, 4
        %v1370 = vor.u32 %v1369, %v1367
        %v1371 = vrot.slane %v1370, 4
        %v1372 = vrot.slane %v1098, 4
        %v1373 = vrot.slane %v1101, 5
        %v1374 = vor.u32 %v1372, %v1373
        %v1375 = vrot.slane %v1374, 4
        %v1376 = vrot.slane %v1109, 5
        %v1377 = vsel %vm1263, %v1375, %v1376
        %v1378 = vrot.slane %v1106, 4
        %v1379 = vor.u32 %v1378, %v1376
        %v1380 = vrot.slane %v1379, 4
        %v1381 = vrot.slane %v1114, 4
        %v1382 = vrot.slane %v1117, 5
        %v1383 = vor.u32 %v1381, %v1382
        %v1384 = vrot.slane %v1383, 4
        %v1385 = vrot.slane %v1125, 5
        %v1386 = vsel %vm1263, %v1384, %v1385
        %v1387 = vrot.slane %v1122, 4
        %v1388 = vor.u32 %v1387, %v1385
        %v1389 = vrot.slane %v1388, 4
        %v1390 = vrot.slane %v1130, 4
        %v1391 = vrot.slane %v1133, 5
        %v1392 = vor.u32 %v1390, %v1391
        %v1393 = vrot.slane %v1392, 4
        %v1394 = vrot.slane %v1141, 5
        %v1395 = vsel %vm1263, %v1393, %v1394
        %v1396 = vrot.slane %v1138, 4
        %v1397 = vor.u32 %v1396, %v1394
        %v1398 = vrot.slane %v1397, 4
        %v1399 = vrot.slane %v1146, 4
        %v1400 = vrot.slane %v1149, 5
        %v1401 = vor.u32 %v1399, %v1400
        %v1402 = vrot.slane %v1401, 4
        %v1403 = vrot.slane %v1157, 5
        %v1404 = vsel %vm1263, %v1402, %v1403
        %v1405 = vrot.slane %v1154, 4
        %v1406 = vor.u32 %v1405, %v1403
        %v1407 = vrot.slane %v1406, 4
        %s1440 = scalar_lea.vmem [#allocation2], 296
        %1441 = vst.msk [vmem:[%s1440] sm:$0xf] %vm760, %v1269
        %vm1442 = vmand %vm1194, %vm1261
        %v1443 = vld [vmem:[%s1440 + $0x4] sm:$0xf]
        %v1444 = vsel %vm1442, %v1272, %v1443
        %1445 = vst [vmem:[%s1440 + $0x4] sm:$0xf] %v1444
        %1446 = vst.msk [vmem:[%s1440 + $0x8] sm:$0xf] %vm760, %v1278
        %v1447 = vld [vmem:[%s1440 + $0xc] sm:$0xf]
        %v1448 = vsel %vm1442, %v1281, %v1447
        %1449 = vst [vmem:[%s1440 + $0xc] sm:$0xf] %v1448
        %1450 = vst.msk [vmem:[%s1440 + $0x10] sm:$0xf] %vm760, %v1287
        %v1451 = vld [vmem:[%s1440 + $0x14] sm:$0xf]
        %v1452 = vsel %vm1442, %v1290, %v1451
        %1453 = vst [vmem:[%s1440 + $0x14] sm:$0xf] %v1452
        %1454 = vst.msk [vmem:[%s1440 + $0x18] sm:$0xf] %vm760, %v1296
        %v1455 = vld [vmem:[%s1440 + $0x1c] sm:$0xf]
        %v1456 = vsel %vm1442, %v1299, %v1455
        %1457 = vst [vmem:[%s1440 + $0x1c] sm:$0xf] %v1456
        %1458 = vst.msk [vmem:[%s1440 + $0x20] sm:$0xf] %vm760, %v1305
        %v1459 = vld [vmem:[%s1440 + $0x24] sm:$0xf]
        %v1460 = vsel %vm1442, %v1308, %v1459
        %1461 = vst [vmem:[%s1440 + $0x24] sm:$0xf] %v1460
        %1462 = vst.msk [vmem:[%s1440 + $0x28] sm:$0xf] %vm760, %v1314
        %v1463 = vld [vmem:[%s1440 + $0x2c] sm:$0xf]
        %v1464 = vsel %vm1442, %v1317, %v1463
        %1465 = vst [vmem:[%s1440 + $0x2c] sm:$0xf] %v1464
        %1466 = vst.msk [vmem:[%s1440 + $0x30] sm:$0xf] %vm760, %v1323
        %v1467 = vld [vmem:[%s1440 + $0x34] sm:$0xf]
        %v1468 = vsel %vm1442, %v1326, %v1467
        %1469 = vst [vmem:[%s1440 + $0x34] sm:$0xf] %v1468
        %1470 = vst.msk [vmem:[%s1440 + $0x38] sm:$0xf] %vm760, %v1332
        %v1471 = vld [vmem:[%s1440 + $0x3c] sm:$0xf]
        %v1472 = vsel %vm1442, %v1335, %v1471
        %1473 = vst [vmem:[%s1440 + $0x3c] sm:$0xf] %v1472
        %1474 = vst.msk [vmem:[%s1440 + $0x40] sm:$0xf] %vm760, %v1341
        %v1475 = vld [vmem:[%s1440 + $0x44] sm:$0xf]
        %v1476 = vsel %vm1442, %v1344, %v1475
        %1477 = vst [vmem:[%s1440 + $0x44] sm:$0xf] %v1476
        %1478 = vst.msk [vmem:[%s1440 + $0x48] sm:$0xf] %vm760, %v1350
        %v1479 = vld [vmem:[%s1440 + $0x4c] sm:$0xf]
        %v1480 = vsel %vm1442, %v1353, %v1479
        %1481 = vst [vmem:[%s1440 + $0x4c] sm:$0xf] %v1480
        %1482 = vst.msk [vmem:[%s1440 + $0x50] sm:$0xf] %vm760, %v1359
        %v1483 = vld [vmem:[%s1440 + $0x54] sm:$0xf]
        %v1484 = vsel %vm1442, %v1362, %v1483
        %1485 = vst [vmem:[%s1440 + $0x54] sm:$0xf] %v1484
        %1486 = vst.msk [vmem:[%s1440 + $0x58] sm:$0xf] %vm760, %v1368
        %v1487 = vld [vmem:[%s1440 + $0x5c] sm:$0xf]
        %v1488 = vsel %vm1442, %v1371, %v1487
        %1489 = vst [vmem:[%s1440 + $0x5c] sm:$0xf] %v1488
        %1490 = vst.msk [vmem:[%s1440 + $0x60] sm:$0xf] %vm760, %v1377
        %v1491 = vld [vmem:[%s1440 + $0x64] sm:$0xf]
        %v1492 = vsel %vm1442, %v1380, %v1491
        %1493 = vst [vmem:[%s1440 + $0x64] sm:$0xf] %v1492
        %1494 = vst.msk [vmem:[%s1440 + $0x68] sm:$0xf] %vm760, %v1386
        %v1495 = vld [vmem:[%s1440 + $0x6c] sm:$0xf]
        %v1496 = vsel %vm1442, %v1389, %v1495
        %1497 = vst [vmem:[%s1440 + $0x6c] sm:$0xf] %v1496
        %1498 = vst.msk [vmem:[%s1440 + $0x70] sm:$0xf] %vm760, %v1395
        %v1499 = vld [vmem:[%s1440 + $0x74] sm:$0xf]
        %v1500 = vsel %vm1442, %v1398, %v1499
        %1501 = vst [vmem:[%s1440 + $0x74] sm:$0xf] %v1500
        %1502 = vst.msk [vmem:[%s1440 + $0x78] sm:$0xf] %vm760, %v1404
        %v1503 = vld [vmem:[%s1440 + $0x7c] sm:$0xf]
        %v1504 = vsel %vm1442, %v1407, %v1503
        %1505 = vst [vmem:[%s1440 + $0x7c] sm:$0xf] %v1504
        %vm1506 = vcmask 253952
        %1507 = vst.msk [vmem:[#allocation3] sm:$0x1] %vm1506, 0.0
      $region52: #{bottleneck_forward.3} parent=47 // pred_fallthru
        _
      %s1508 = smul.u32 %s25, 8
      %s1509 = smul.u32 %s1508, 2
      %s1510 = smul.addr %s1509, 4
      %s1511 = scalar_lea.vmem [#allocation2], %s1510
      %v1512 = vld [vmem:[%s1511] sm:$0xf]
      %v1513 = vld [vmem:[%s1511 + $0x4] sm:$0xf]
      %v1514 = vld [vmem:[%s1511 + $0x8] sm:$0xf]
      %v1515 = vld [vmem:[%s1511 + $0xc] sm:$0xf]
      %v1516 = vld [vmem:[%s1511 + $0x10] sm:$0xf]
      %v1517 = vld [vmem:[%s1511 + $0x14] sm:$0xf]
      %v1518 = vld [vmem:[%s1511 + $0x18] sm:$0xf]
      %v1519 = vld [vmem:[%s1511 + $0x1c] sm:$0xf]
      %v1520 = vld [vmem:[%s1511 + $0x20] sm:$0xf]
      %v1521 = vld [vmem:[%s1511 + $0x24] sm:$0xf]
      %v1522 = vld [vmem:[%s1511 + $0x28] sm:$0xf]
      %v1523 = vld [vmem:[%s1511 + $0x2c] sm:$0xf]
      %v1524 = vld [vmem:[%s1511 + $0x30] sm:$0xf]
      %v1525 = vld [vmem:[%s1511 + $0x34] sm:$0xf]
      %v1526 = vld [vmem:[%s1511 + $0x38] sm:$0xf]
      %v1527 = vld [vmem:[%s1511 + $0x3c] sm:$0xf]
      %s1528 = sadd.s32 %s1509, 36
      %s1529 = smul.addr %s1528, 4
      %s1530 = scalar_lea.vmem [#allocation2], %s1529
      %v1531 = vld [vmem:[%s1530] sm:$0xf]
      %v1532 = vld [vmem:[%s1530 + $0x4] sm:$0xf]
      %v1533 = vld [vmem:[%s1530 + $0x8] sm:$0xf]
      %v1534 = vld [vmem:[%s1530 + $0xc] sm:$0xf]
      %v1535 = vld [vmem:[%s1530 + $0x10] sm:$0xf]
      %v1536 = vld [vmem:[%s1530 + $0x14] sm:$0xf]
      %v1537 = vld [vmem:[%s1530 + $0x18] sm:$0xf]
      %v1538 = vld [vmem:[%s1530 + $0x1c] sm:$0xf]
      %v1539 = vld [vmem:[%s1530 + $0x20] sm:$0xf]
      %v1540 = vld [vmem:[%s1530 + $0x24] sm:$0xf]
      %v1541 = vld [vmem:[%s1530 + $0x28] sm:$0xf]
      %v1542 = vld [vmem:[%s1530 + $0x2c] sm:$0xf]
      %v1543 = vld [vmem:[%s1530 + $0x30] sm:$0xf]
      %v1544 = vld [vmem:[%s1530 + $0x34] sm:$0xf]
      %v1545 = vld [vmem:[%s1530 + $0x38] sm:$0xf]
      %v1546 = vld [vmem:[%s1530 + $0x3c] sm:$0xf]
      %s1547 = sadd.s32 %s1509, 72
      %s1548 = smul.addr %s1547, 4
      %s1549 = scalar_lea.vmem [#allocation2], %s1548
      %v1550 = vld [vmem:[%s1549] sm:$0xf]
      %v1551 = vld [vmem:[%s1549 + $0x4] sm:$0xf]
      %v1552 = vld [vmem:[%s1549 + $0x8] sm:$0xf]
      %v1553 = vld [vmem:[%s1549 + $0xc] sm:$0xf]
      %v1554 = vld [vmem:[%s1549 + $0x10] sm:$0xf]
      %v1555 = vld [vmem:[%s1549 + $0x14] sm:$0xf]
      %v1556 = vld [vmem:[%s1549 + $0x18] sm:$0xf]
      %v1557 = vld [vmem:[%s1549 + $0x1c] sm:$0xf]
      %v1558 = vld [vmem:[%s1549 + $0x20] sm:$0xf]
      %v1559 = vld [vmem:[%s1549 + $0x24] sm:$0xf]
      %v1560 = vld [vmem:[%s1549 + $0x28] sm:$0xf]
      %v1561 = vld [vmem:[%s1549 + $0x2c] sm:$0xf]
      %v1562 = vld [vmem:[%s1549 + $0x30] sm:$0xf]
      %v1563 = vld [vmem:[%s1549 + $0x34] sm:$0xf]
      %v1564 = vld [vmem:[%s1549 + $0x38] sm:$0xf]
      %v1565 = vld [vmem:[%s1549 + $0x3c] sm:$0xf]
      %s1566 = sadd.s32 %s1508, 1
      %s1567 = smul.u32 %s1566, 2
      %s1568 = smul.addr %s1567, 4
      %s1569 = scalar_lea.vmem [#allocation2], %s1568
      %v1570 = vld [vmem:[%s1569] sm:$0xf]
      %v1571 = vld [vmem:[%s1569 + $0x4] sm:$0xf]
      %v1572 = vld [vmem:[%s1569 + $0x8] sm:$0xf]
      %v1573 = vld [vmem:[%s1569 + $0xc] sm:$0xf]
      %v1574 = vld [vmem:[%s1569 + $0x10] sm:$0xf]
      %v1575 = vld [vmem:[%s1569 + $0x14] sm:$0xf]
      %v1576 = vld [vmem:[%s1569 + $0x18] sm:$0xf]
      %v1577 = vld [vmem:[%s1569 + $0x1c] sm:$0xf]
      %v1578 = vld [vmem:[%s1569 + $0x20] sm:$0xf]
      %v1579 = vld [vmem:[%s1569 + $0x24] sm:$0xf]
      %v1580 = vld [vmem:[%s1569 + $0x28] sm:$0xf]
      %v1581 = vld [vmem:[%s1569 + $0x2c] sm:$0xf]
      %v1582 = vld [vmem:[%s1569 + $0x30] sm:$0xf]
      %v1583 = vld [vmem:[%s1569 + $0x34] sm:$0xf]
      %v1584 = vld [vmem:[%s1569 + $0x38] sm:$0xf]
      %v1585 = vld [vmem:[%s1569 + $0x3c] sm:$0xf]
      %s1586 = sadd.s32 %s1567, 36
      %s1587 = smul.addr %s1586, 4
      %s1588 = scalar_lea.vmem [#allocation2], %s1587
      %v1589 = vld [vmem:[%s1588] sm:$0xf]
      %v1590 = vld [vmem:[%s1588 + $0x4] sm:$0xf]
      %v1591 = vld [vmem:[%s1588 + $0x8] sm:$0xf]
      %v1592 = vld [vmem:[%s1588 + $0xc] sm:$0xf]
      %v1593 = vld [vmem:[%s1588 + $0x10] sm:$0xf]
      %v1594 = vld [vmem:[%s1588 + $0x14] sm:$0xf]
      %v1595 = vld [vmem:[%s1588 + $0x18] sm:$0xf]
      %v1596 = vld [vmem:[%s1588 + $0x1c] sm:$0xf]
      %v1597 = vld [vmem:[%s1588 + $0x20] sm:$0xf]
      %v1598 = vld [vmem:[%s1588 + $0x24] sm:$0xf]
      %v1599 = vld [vmem:[%s1588 + $0x28] sm:$0xf]
      %v1600 = vld [vmem:[%s1588 + $0x2c] sm:$0xf]
      %v1601 = vld [vmem:[%s1588 + $0x30] sm:$0xf]
      %v1602 = vld [vmem:[%s1588 + $0x34] sm:$0xf]
      %v1603 = vld [vmem:[%s1588 + $0x38] sm:$0xf]
      %v1604 = vld [vmem:[%s1588 + $0x3c] sm:$0xf]
      %s1605 = sadd.s32 %s1567, 72
      %s1606 = smul.addr %s1605, 4
      %s1607 = scalar_lea.vmem [#allocation2], %s1606
      %v1608 = vld [vmem:[%s1607] sm:$0xf]
      %v1609 = vld [vmem:[%s1607 + $0x4] sm:$0xf]
      %v1610 = vld [vmem:[%s1607 + $0x8] sm:$0xf]
      %v1611 = vld [vmem:[%s1607 + $0xc] sm:$0xf]
      %v1612 = vld [vmem:[%s1607 + $0x10] sm:$0xf]
      %v1613 = vld [vmem:[%s1607 + $0x14] sm:$0xf]
      %v1614 = vld [vmem:[%s1607 + $0x18] sm:$0xf]
      %v1615 = vld [vmem:[%s1607 + $0x1c] sm:$0xf]
      %v1616 = vld [vmem:[%s1607 + $0x20] sm:$0xf]
      %v1617 = vld [vmem:[%s1607 + $0x24] sm:$0xf]
      %v1618 = vld [vmem:[%s1607 + $0x28] sm:$0xf]
      %v1619 = vld [vmem:[%s1607 + $0x2c] sm:$0xf]
      %v1620 = vld [vmem:[%s1607 + $0x30] sm:$0xf]
      %v1621 = vld [vmem:[%s1607 + $0x34] sm:$0xf]
      %v1622 = vld [vmem:[%s1607 + $0x38] sm:$0xf]
      %v1623 = vld [vmem:[%s1607 + $0x3c] sm:$0xf]
      %s1624 = sadd.s32 %s1508, 2
      %s1625 = smul.u32 %s1624, 2
      %s1626 = smul.addr %s1625, 4
      %s1627 = scalar_lea.vmem [#allocation2], %s1626
      %v1628 = vld [vmem:[%s1627] sm:$0xf]
      %v1629 = vld [vmem:[%s1627 + $0x4] sm:$0xf]
      %v1630 = vld [vmem:[%s1627 + $0x8] sm:$0xf]
      %v1631 = vld [vmem:[%s1627 + $0xc] sm:$0xf]
      %v1632 = vld [vmem:[%s1627 + $0x10] sm:$0xf]
      %v1633 = vld [vmem:[%s1627 + $0x14] sm:$0xf]
      %v1634 = vld [vmem:[%s1627 + $0x18] sm:$0xf]
      %v1635 = vld [vmem:[%s1627 + $0x1c] sm:$0xf]
      %v1636 = vld [vmem:[%s1627 + $0x20] sm:$0xf]
      %v1637 = vld [vmem:[%s1627 + $0x24] sm:$0xf]
      %v1638 = vld [vmem:[%s1627 + $0x28] sm:$0xf]
      %v1639 = vld [vmem:[%s1627 + $0x2c] sm:$0xf]
      %v1640 = vld [vmem:[%s1627 + $0x30] sm:$0xf]
      %v1641 = vld [vmem:[%s1627 + $0x34] sm:$0xf]
      %v1642 = vld [vmem:[%s1627 + $0x38] sm:$0xf]
      %v1643 = vld [vmem:[%s1627 + $0x3c] sm:$0xf]
      %s1644 = sadd.s32 %s1625, 36
      %s1645 = smul.addr %s1644, 4
      %s1646 = scalar_lea.vmem [#allocation2], %s1645
      %v1647 = vld [vmem:[%s1646] sm:$0xf]
      %v1648 = vld [vmem:[%s1646 + $0x4] sm:$0xf]
      %v1649 = vld [vmem:[%s1646 + $0x8] sm:$0xf]
      %v1650 = vld [vmem:[%s1646 + $0xc] sm:$0xf]
      %v1651 = vld [vmem:[%s1646 + $0x10] sm:$0xf]
      %v1652 = vld [vmem:[%s1646 + $0x14] sm:$0xf]
      %v1653 = vld [vmem:[%s1646 + $0x18] sm:$0xf]
      %v1654 = vld [vmem:[%s1646 + $0x1c] sm:$0xf]
      %v1655 = vld [vmem:[%s1646 + $0x20] sm:$0xf]
      %v1656 = vld [vmem:[%s1646 + $0x24] sm:$0xf]
      %v1657 = vld [vmem:[%s1646 + $0x28] sm:$0xf]
      %v1658 = vld [vmem:[%s1646 + $0x2c] sm:$0xf]
      %v1659 = vld [vmem:[%s1646 + $0x30] sm:$0xf]
      %v1660 = vld [vmem:[%s1646 + $0x34] sm:$0xf]
      %v1661 = vld [vmem:[%s1646 + $0x38] sm:$0xf]
      %v1662 = vld [vmem:[%s1646 + $0x3c] sm:$0xf]
      %s1663 = sadd.s32 %s1625, 72
      %s1664 = smul.addr %s1663, 4
      %s1665 = scalar_lea.vmem [#allocation2], %s1664
      %v1666 = vld [vmem:[%s1665] sm:$0xf]
      %v1667 = vld [vmem:[%s1665 + $0x4] sm:$0xf]
      %v1668 = vld [vmem:[%s1665 + $0x8] sm:$0xf]
      %v1669 = vld [vmem:[%s1665 + $0xc] sm:$0xf]
      %v1670 = vld [vmem:[%s1665 + $0x10] sm:$0xf]
      %v1671 = vld [vmem:[%s1665 + $0x14] sm:$0xf]
      %v1672 = vld [vmem:[%s1665 + $0x18] sm:$0xf]
      %v1673 = vld [vmem:[%s1665 + $0x1c] sm:$0xf]
      %v1674 = vld [vmem:[%s1665 + $0x20] sm:$0xf]
      %v1675 = vld [vmem:[%s1665 + $0x24] sm:$0xf]
      %v1676 = vld [vmem:[%s1665 + $0x28] sm:$0xf]
      %v1677 = vld [vmem:[%s1665 + $0x2c] sm:$0xf]
      %v1678 = vld [vmem:[%s1665 + $0x30] sm:$0xf]
      %v1679 = vld [vmem:[%s1665 + $0x34] sm:$0xf]
      %v1680 = vld [vmem:[%s1665 + $0x38] sm:$0xf]
      %v1681 = vld [vmem:[%s1665 + $0x3c] sm:$0xf]
      %v1698 = vunpack.c.l.b16 %v1512
      %v1699 = vunpack.c.l.b16 %v1513
      %v1700 = vunpack.c.l.b16 %v1514
      %v1701 = vunpack.c.l.b16 %v1515
      %v1702 = vunpack.c.l.b16 %v1516
      %v1703 = vunpack.c.l.b16 %v1517
      %v1704 = vunpack.c.l.b16 %v1518
      %v1705 = vunpack.c.l.b16 %v1519
      %v1706 = vunpack.c.l.b16 %v1520
      %v1707 = vunpack.c.l.b16 %v1521
      %v1708 = vunpack.c.l.b16 %v1522
      %v1709 = vunpack.c.l.b16 %v1523
      %v1710 = vunpack.c.l.b16 %v1524
      %v1711 = vunpack.c.l.b16 %v1525
      %v1712 = vunpack.c.l.b16 %v1526
      %v1713 = vunpack.c.l.b16 %v1527
      %v1714 = vpack.c.b16 %v1699, %v1698
      %v1715 = vpack.c.b16 %v1701, %v1700
      %v1716 = vpack.c.b16 %v1703, %v1702
      %v1717 = vpack.c.b16 %v1705, %v1704
      %v1718 = vpack.c.b16 %v1707, %v1706
      %v1719 = vpack.c.b16 %v1709, %v1708
      %v1720 = vpack.c.b16 %v1711, %v1710
      %v1721 = vpack.c.b16 %v1713, %v1712
      %v1738 = vunpack.c.l.b16 %v1531
      %v1739 = vunpack.c.l.b16 %v1532
      %v1740 = vunpack.c.l.b16 %v1533
      %v1741 = vunpack.c.l.b16 %v1534
      %v1742 = vunpack.c.l.b16 %v1535
      %v1743 = vunpack.c.l.b16 %v1536
      %v1744 = vunpack.c.l.b16 %v1537
      %v1745 = vunpack.c.l.b16 %v1538
      %v1746 = vunpack.c.l.b16 %v1539
      %v1747 = vunpack.c.l.b16 %v1540
      %v1748 = vunpack.c.l.b16 %v1541
      %v1749 = vunpack.c.l.b16 %v1542
      %v1750 = vunpack.c.l.b16 %v1543
      %v1751 = vunpack.c.l.b16 %v1544
      %v1752 = vunpack.c.l.b16 %v1545
      %v1753 = vunpack.c.l.b16 %v1546
      %v1754 = vpack.c.b16 %v1739, %v1738
      %v1755 = vpack.c.b16 %v1741, %v1740
      %v1756 = vpack.c.b16 %v1743, %v1742
      %v1757 = vpack.c.b16 %v1745, %v1744
      %v1758 = vpack.c.b16 %v1747, %v1746
      %v1759 = vpack.c.b16 %v1749, %v1748
      %v1760 = vpack.c.b16 %v1751, %v1750
      %v1761 = vpack.c.b16 %v1753, %v1752
      %1762 = vrot.lane.b32.xlu0 %v1754, 32
      %v1763 = vpop.permute.xlu0 %1762
      %1764 = vrot.lane.b32.xlu0 %v1755, 32
      %v1765 = vpop.permute.xlu0 %1764
      %1766 = vrot.lane.b32.xlu0 %v1756, 32
      %v1767 = vpop.permute.xlu0 %1766
      %1768 = vrot.lane.b32.xlu0 %v1757, 32
      %v1769 = vpop.permute.xlu0 %1768
      %1770 = vrot.lane.b32.xlu0 %v1758, 32
      %v1771 = vpop.permute.xlu0 %1770
      %1772 = vrot.lane.b32.xlu0 %v1759, 32
      %v1773 = vpop.permute.xlu0 %1772
      %1774 = vrot.lane.b32.xlu0 %v1760, 32
      %v1775 = vpop.permute.xlu0 %1774
      %1776 = vrot.lane.b32.xlu0 %v1761, 32
      %v1777 = vpop.permute.xlu0 %1776
      %v1794 = vunpack.c.l.b16 %v1550
      %v1795 = vunpack.c.l.b16 %v1551
      %v1796 = vunpack.c.l.b16 %v1552
      %v1797 = vunpack.c.l.b16 %v1553
      %v1798 = vunpack.c.l.b16 %v1554
      %v1799 = vunpack.c.l.b16 %v1555
      %v1800 = vunpack.c.l.b16 %v1556
      %v1801 = vunpack.c.l.b16 %v1557
      %v1802 = vunpack.c.l.b16 %v1558
      %v1803 = vunpack.c.l.b16 %v1559
      %v1804 = vunpack.c.l.b16 %v1560
      %v1805 = vunpack.c.l.b16 %v1561
      %v1806 = vunpack.c.l.b16 %v1562
      %v1807 = vunpack.c.l.b16 %v1563
      %v1808 = vunpack.c.l.b16 %v1564
      %v1809 = vunpack.c.l.b16 %v1565
      %v1810 = vpack.c.b16 %v1795, %v1794
      %v1811 = vpack.c.b16 %v1797, %v1796
      %v1812 = vpack.c.b16 %v1799, %v1798
      %v1813 = vpack.c.b16 %v1801, %v1800
      %v1814 = vpack.c.b16 %v1803, %v1802
      %v1815 = vpack.c.b16 %v1805, %v1804
      %v1816 = vpack.c.b16 %v1807, %v1806
      %v1817 = vpack.c.b16 %v1809, %v1808
      %1818 = vrot.lane.b32.xlu0 %v1810, 64
      %v1819 = vpop.permute.xlu0 %1818
      %1820 = vrot.lane.b32.xlu0 %v1811, 64
      %v1821 = vpop.permute.xlu0 %1820
      %1822 = vrot.lane.b32.xlu0 %v1812, 64
      %v1823 = vpop.permute.xlu0 %1822
      %1824 = vrot.lane.b32.xlu0 %v1813, 64
      %v1825 = vpop.permute.xlu0 %1824
      %1826 = vrot.lane.b32.xlu0 %v1814, 64
      %v1827 = vpop.permute.xlu0 %1826
      %1828 = vrot.lane.b32.xlu0 %v1815, 64
      %v1829 = vpop.permute.xlu0 %1828
      %1830 = vrot.lane.b32.xlu0 %v1816, 64
      %v1831 = vpop.permute.xlu0 %1830
      %1832 = vrot.lane.b32.xlu0 %v1817, 64
      %v1833 = vpop.permute.xlu0 %1832
      %v1850 = vunpack.c.l.b16 %v1570
      %v1851 = vunpack.c.l.b16 %v1571
      %v1852 = vunpack.c.l.b16 %v1572
      %v1853 = vunpack.c.l.b16 %v1573
      %v1854 = vunpack.c.l.b16 %v1574
      %v1855 = vunpack.c.l.b16 %v1575
      %v1856 = vunpack.c.l.b16 %v1576
      %v1857 = vunpack.c.l.b16 %v1577
      %v1858 = vunpack.c.l.b16 %v1578
      %v1859 = vunpack.c.l.b16 %v1579
      %v1860 = vunpack.c.l.b16 %v1580
      %v1861 = vunpack.c.l.b16 %v1581
      %v1862 = vunpack.c.l.b16 %v1582
      %v1863 = vunpack.c.l.b16 %v1583
      %v1864 = vunpack.c.l.b16 %v1584
      %v1865 = vunpack.c.l.b16 %v1585
      %v1866 = vpack.c.b16 %v1851, %v1850
      %v1867 = vpack.c.b16 %v1853, %v1852
      %v1868 = vpack.c.b16 %v1855, %v1854
      %v1869 = vpack.c.b16 %v1857, %v1856
      %v1870 = vpack.c.b16 %v1859, %v1858
      %v1871 = vpack.c.b16 %v1861, %v1860
      %v1872 = vpack.c.b16 %v1863, %v1862
      %v1873 = vpack.c.b16 %v1865, %v1864
      %1874 = vrot.lane.b32.xlu0 %v1866, 96
      %v1875 = vpop.permute.xlu0 %1874
      %1876 = vrot.lane.b32.xlu0 %v1867, 96
      %v1877 = vpop.permute.xlu0 %1876
      %1878 = vrot.lane.b32.xlu0 %v1868, 96
      %v1879 = vpop.permute.xlu0 %1878
      %1880 = vrot.lane.b32.xlu0 %v1869, 96
      %v1881 = vpop.permute.xlu0 %1880
      %1882 = vrot.lane.b32.xlu0 %v1870, 96
      %v1883 = vpop.permute.xlu0 %1882
      %1884 = vrot.lane.b32.xlu0 %v1871, 96
      %v1885 = vpop.permute.xlu0 %1884
      %1886 = vrot.lane.b32.xlu0 %v1872, 96
      %v1887 = vpop.permute.xlu0 %1886
      %1888 = vrot.lane.b32.xlu0 %v1873, 96
      %v1889 = vpop.permute.xlu0 %1888
      %v1906 = vunpack.c.l.b16 %v1589
      %v1907 = vunpack.c.l.b16 %v1590
      %v1908 = vunpack.c.l.b16 %v1591
      %v1909 = vunpack.c.l.b16 %v1592
      %v1910 = vunpack.c.l.b16 %v1593
      %v1911 = vunpack.c.l.b16 %v1594
      %v1912 = vunpack.c.l.b16 %v1595
      %v1913 = vunpack.c.l.b16 %v1596
      %v1914 = vunpack.c.l.b16 %v1597
      %v1915 = vunpack.c.l.b16 %v1598
      %v1916 = vunpack.c.l.b16 %v1599
      %v1917 = vunpack.c.l.b16 %v1600
      %v1918 = vunpack.c.l.b16 %v1601
      %v1919 = vunpack.c.l.b16 %v1602
      %v1920 = vunpack.c.l.b16 %v1603
      %v1921 = vunpack.c.l.b16 %v1604
      %v1922 = vpack.c.b16 %v1907, %v1906
      %v1923 = vpack.c.b16 %v1909, %v1908
      %v1924 = vpack.c.b16 %v1911, %v1910
      %v1925 = vpack.c.b16 %v1913, %v1912
      %v1926 = vpack.c.b16 %v1915, %v1914
      %v1927 = vpack.c.b16 %v1917, %v1916
      %v1928 = vpack.c.b16 %v1919, %v1918
      %v1929 = vpack.c.b16 %v1921, %v1920
      %v1946 = vunpack.c.l.b16 %v1608
      %v1947 = vunpack.c.l.b16 %v1609
      %v1948 = vunpack.c.l.b16 %v1610
      %v1949 = vunpack.c.l.b16 %v1611
      %v1950 = vunpack.c.l.b16 %v1612
      %v1951 = vunpack.c.l.b16 %v1613
      %v1952 = vunpack.c.l.b16 %v1614
      %v1953 = vunpack.c.l.b16 %v1615
      %v1954 = vunpack.c.l.b16 %v1616
      %v1955 = vunpack.c.l.b16 %v1617
      %v1956 = vunpack.c.l.b16 %v1618
      %v1957 = vunpack.c.l.b16 %v1619
      %v1958 = vunpack.c.l.b16 %v1620
      %v1959 = vunpack.c.l.b16 %v1621
      %v1960 = vunpack.c.l.b16 %v1622
      %v1961 = vunpack.c.l.b16 %v1623
      %v1962 = vpack.c.b16 %v1947, %v1946
      %v1963 = vpack.c.b16 %v1949, %v1948
      %v1964 = vpack.c.b16 %v1951, %v1950
      %v1965 = vpack.c.b16 %v1953, %v1952
      %v1966 = vpack.c.b16 %v1955, %v1954
      %v1967 = vpack.c.b16 %v1957, %v1956
      %v1968 = vpack.c.b16 %v1959, %v1958
      %v1969 = vpack.c.b16 %v1961, %v1960
      %1970 = vrot.lane.b32.xlu0 %v1962, 32
      %v1971 = vpop.permute.xlu0 %1970
      %1972 = vrot.lane.b32.xlu0 %v1963, 32
      %v1973 = vpop.permute.xlu0 %1972
      %1974 = vrot.lane.b32.xlu0 %v1964, 32
      %v1975 = vpop.permute.xlu0 %1974
      %1976 = vrot.lane.b32.xlu0 %v1965, 32
      %v1977 = vpop.permute.xlu0 %1976
      %1978 = vrot.lane.b32.xlu0 %v1966, 32
      %v1979 = vpop.permute.xlu0 %1978
      %1980 = vrot.lane.b32.xlu0 %v1967, 32
      %v1981 = vpop.permute.xlu0 %1980
      %1982 = vrot.lane.b32.xlu0 %v1968, 32
      %v1983 = vpop.permute.xlu0 %1982
      %1984 = vrot.lane.b32.xlu0 %v1969, 32
      %v1985 = vpop.permute.xlu0 %1984
      %v2002 = vunpack.c.l.b16 %v1628
      %v2003 = vunpack.c.l.b16 %v1629
      %v2004 = vunpack.c.l.b16 %v1630
      %v2005 = vunpack.c.l.b16 %v1631
      %v2006 = vunpack.c.l.b16 %v1632
      %v2007 = vunpack.c.l.b16 %v1633
      %v2008 = vunpack.c.l.b16 %v1634
      %v2009 = vunpack.c.l.b16 %v1635
      %v2010 = vunpack.c.l.b16 %v1636
      %v2011 = vunpack.c.l.b16 %v1637
      %v2012 = vunpack.c.l.b16 %v1638
      %v2013 = vunpack.c.l.b16 %v1639
      %v2014 = vunpack.c.l.b16 %v1640
      %v2015 = vunpack.c.l.b16 %v1641
      %v2016 = vunpack.c.l.b16 %v1642
      %v2017 = vunpack.c.l.b16 %v1643
      %v2018 = vpack.c.b16 %v2003, %v2002
      %v2019 = vpack.c.b16 %v2005, %v2004
      %v2020 = vpack.c.b16 %v2007, %v2006
      %v2021 = vpack.c.b16 %v2009, %v2008
      %v2022 = vpack.c.b16 %v2011, %v2010
      %v2023 = vpack.c.b16 %v2013, %v2012
      %v2024 = vpack.c.b16 %v2015, %v2014
      %v2025 = vpack.c.b16 %v2017, %v2016
      %2026 = vrot.lane.b32.xlu0 %v2018, 64
      %v2027 = vpop.permute.xlu0 %2026
      %2028 = vrot.lane.b32.xlu0 %v2019, 64
      %v2029 = vpop.permute.xlu0 %2028
      %2030 = vrot.lane.b32.xlu0 %v2020, 64
      %v2031 = vpop.permute.xlu0 %2030
      %2032 = vrot.lane.b32.xlu0 %v2021, 64
      %v2033 = vpop.permute.xlu0 %2032
      %2034 = vrot.lane.b32.xlu0 %v2022, 64
      %v2035 = vpop.permute.xlu0 %2034
      %2036 = vrot.lane.b32.xlu0 %v2023, 64
      %v2037 = vpop.permute.xlu0 %2036
      %2038 = vrot.lane.b32.xlu0 %v2024, 64
      %v2039 = vpop.permute.xlu0 %2038
      %2040 = vrot.lane.b32.xlu0 %v2025, 64
      %v2041 = vpop.permute.xlu0 %2040
      %v2058 = vunpack.c.l.b16 %v1647
      %v2059 = vunpack.c.l.b16 %v1648
      %v2060 = vunpack.c.l.b16 %v1649
      %v2061 = vunpack.c.l.b16 %v1650
      %v2062 = vunpack.c.l.b16 %v1651
      %v2063 = vunpack.c.l.b16 %v1652
      %v2064 = vunpack.c.l.b16 %v1653
      %v2065 = vunpack.c.l.b16 %v1654
      %v2066 = vunpack.c.l.b16 %v1655
      %v2067 = vunpack.c.l.b16 %v1656
      %v2068 = vunpack.c.l.b16 %v1657
      %v2069 = vunpack.c.l.b16 %v1658
      %v2070 = vunpack.c.l.b16 %v1659
      %v2071 = vunpack.c.l.b16 %v1660
      %v2072 = vunpack.c.l.b16 %v1661
      %v2073 = vunpack.c.l.b16 %v1662
      %v2074 = vpack.c.b16 %v2059, %v2058
      %v2075 = vpack.c.b16 %v2061, %v2060
      %v2076 = vpack.c.b16 %v2063, %v2062
      %v2077 = vpack.c.b16 %v2065, %v2064
      %v2078 = vpack.c.b16 %v2067, %v2066
      %v2079 = vpack.c.b16 %v2069, %v2068
      %v2080 = vpack.c.b16 %v2071, %v2070
      %v2081 = vpack.c.b16 %v2073, %v2072
      %2082 = vrot.lane.b32.xlu0 %v2074, 96
      %v2083 = vpop.permute.xlu0 %2082
      %2084 = vrot.lane.b32.xlu0 %v2075, 96
      %v2085 = vpop.permute.xlu0 %2084
      %2086 = vrot.lane.b32.xlu0 %v2076, 96
      %v2087 = vpop.permute.xlu0 %2086
      %2088 = vrot.lane.b32.xlu0 %v2077, 96
      %v2089 = vpop.permute.xlu0 %2088
      %2090 = vrot.lane.b32.xlu0 %v2078, 96
      %v2091 = vpop.permute.xlu0 %2090
      %2092 = vrot.lane.b32.xlu0 %v2079, 96
      %v2093 = vpop.permute.xlu0 %2092
      %2094 = vrot.lane.b32.xlu0 %v2080, 96
      %v2095 = vpop.permute.xlu0 %2094
      %2096 = vrot.lane.b32.xlu0 %v2081, 96
      %v2097 = vpop.permute.xlu0 %2096
      %v2114 = vunpack.c.l.b16 %v1666
      %v2115 = vunpack.c.l.b16 %v1667
      %v2116 = vunpack.c.l.b16 %v1668
      %v2117 = vunpack.c.l.b16 %v1669
      %v2118 = vunpack.c.l.b16 %v1670
      %v2119 = vunpack.c.l.b16 %v1671
      %v2120 = vunpack.c.l.b16 %v1672
      %v2121 = vunpack.c.l.b16 %v1673
      %v2122 = vunpack.c.l.b16 %v1674
      %v2123 = vunpack.c.l.b16 %v1675
      %v2124 = vunpack.c.l.b16 %v1676
      %v2125 = vunpack.c.l.b16 %v1677
      %v2126 = vunpack.c.l.b16 %v1678
      %v2127 = vunpack.c.l.b16 %v1679
      %v2128 = vunpack.c.l.b16 %v1680
      %v2129 = vunpack.c.l.b16 %v1681
      %v2130 = vpack.c.b16 %v2115, %v2114
      %v2131 = vpack.c.b16 %v2117, %v2116
      %v2132 = vpack.c.b16 %v2119, %v2118
      %v2133 = vpack.c.b16 %v2121, %v2120
      %v2134 = vpack.c.b16 %v2123, %v2122
      %v2135 = vpack.c.b16 %v2125, %v2124
      %v2136 = vpack.c.b16 %v2127, %v2126
      %v2137 = vpack.c.b16 %v2129, %v2128
      %vm2138 = vcmask 261120
      %v2141 = vsel %vm2138, %v1714, %v1763
      %v2144 = vsel %vm2138, %v1715, %v1765
      %v2147 = vsel %vm2138, %v1716, %v1767
      %v2150 = vsel %vm2138, %v1717, %v1769
      %v2153 = vsel %vm2138, %v1718, %v1771
      %v2156 = vsel %vm2138, %v1719, %v1773
      %v2159 = vsel %vm2138, %v1720, %v1775
      %v2162 = vsel %vm2138, %v1721, %v1777
      %vm2163 = vcmask 523264
      %v2165 = vsel %vm2163, %v2141, %v1819
      %v2167 = vsel %vm2163, %v2144, %v1821
      %v2169 = vsel %vm2163, %v2147, %v1823
      %v2171 = vsel %vm2163, %v2150, %v1825
      %v2173 = vsel %vm2163, %v2153, %v1827
      %v2175 = vsel %vm2163, %v2156, %v1829
      %v2177 = vsel %vm2163, %v2159, %v1831
      %v2179 = vsel %vm2163, %v2162, %v1833
      %vm2180 = vcmask 785408
      %v2182 = vsel %vm2180, %v2165, %v1875
      %v2185 = vsel %vm2180, %v2167, %v1877
      %v2188 = vsel %vm2180, %v2169, %v1879
      %v2191 = vsel %vm2180, %v2171, %v1881
      %v2194 = vsel %vm2180, %v2173, %v1883
      %v2197 = vsel %vm2180, %v2175, %v1885
      %v2200 = vsel %vm2180, %v2177, %v1887
      %v2203 = vsel %vm2180, %v2179, %v1889
      %v2207 = vsel %vm2138, %v1922, %v1971
      %v2210 = vsel %vm2138, %v1923, %v1973
      %v2213 = vsel %vm2138, %v1924, %v1975
      %v2216 = vsel %vm2138, %v1925, %v1977
      %v2219 = vsel %vm2138, %v1926, %v1979
      %v2222 = vsel %vm2138, %v1927, %v1981
      %v2225 = vsel %vm2138, %v1928, %v1983
      %v2228 = vsel %vm2138, %v1929, %v1985
      %v2230 = vsel %vm2163, %v2207, %v2027
      %v2232 = vsel %vm2163, %v2210, %v2029
      %v2234 = vsel %vm2163, %v2213, %v2031
      %v2236 = vsel %vm2163, %v2216, %v2033
      %v2238 = vsel %vm2163, %v2219, %v2035
      %v2240 = vsel %vm2163, %v2222, %v2037
      %v2242 = vsel %vm2163, %v2225, %v2039
      %v2244 = vsel %vm2163, %v2228, %v2041
      %v2246 = vsel %vm2180, %v2230, %v2083
      %v2249 = vsel %vm2180, %v2232, %v2085
      %v2252 = vsel %vm2180, %v2234, %v2087
      %v2255 = vsel %vm2180, %v2236, %v2089
      %v2258 = vsel %vm2180, %v2238, %v2091
      %v2261 = vsel %vm2180, %v2240, %v2093
      %v2264 = vsel %vm2180, %v2242, %v2095
      %v2267 = vsel %vm2180, %v2244, %v2097
      %v2269 = vld [vmem:[%s4] sm:$0xf]
      %v2270 = vld [vmem:[%s4 + $0x4] sm:$0xf]
      %v2271 = vld [vmem:[%s4 + $0x8] sm:$0xf]
      %v2272 = vld [vmem:[%s4 + $0xc] sm:$0xf]
      %v2273 = vld [vmem:[%s4 + $0x10] sm:$0xf]
      %v2274 = vld [vmem:[%s4 + $0x14] sm:$0xf]
      %v2275 = vld [vmem:[%s4 + $0x18] sm:$0xf]
      %v2276 = vld [vmem:[%s4 + $0x1c] sm:$0xf]
      %v2277 = vld [vmem:[%s4 + $0x20] sm:$0xf]
      %v2278 = vld [vmem:[%s4 + $0x24] sm:$0xf]
      %v2279 = vld [vmem:[%s4 + $0x28] sm:$0xf]
      %v2280 = vld [vmem:[%s4 + $0x2c] sm:$0xf]
      %v2281 = vld [vmem:[%s4 + $0x30] sm:$0xf]
      %v2282 = vld [vmem:[%s4 + $0x34] sm:$0xf]
      %v2283 = vld [vmem:[%s4 + $0x38] sm:$0xf]
      %v2284 = vld [vmem:[%s4 + $0x3c] sm:$0xf]
      %v2285 = vld [vmem:[%s4 + $0x40] sm:$0xf]
      %v2286 = vld [vmem:[%s4 + $0x44] sm:$0xf]
      %v2287 = vld [vmem:[%s4 + $0x48] sm:$0xf]
      %v2288 = vld [vmem:[%s4 + $0x4c] sm:$0xf]
      %v2289 = vld [vmem:[%s4 + $0x50] sm:$0xf]
      %v2290 = vld [vmem:[%s4 + $0x54] sm:$0xf]
      %v2291 = vld [vmem:[%s4 + $0x58] sm:$0xf]
      %v2292 = vld [vmem:[%s4 + $0x5c] sm:$0xf]
      %v2293 = vld [vmem:[%s4 + $0x60] sm:$0xf]
      %v2294 = vld [vmem:[%s4 + $0x64] sm:$0xf]
      %v2295 = vld [vmem:[%s4 + $0x68] sm:$0xf]
      %v2296 = vld [vmem:[%s4 + $0x6c] sm:$0xf]
      %v2297 = vld [vmem:[%s4 + $0x70] sm:$0xf]
      %v2298 = vld [vmem:[%s4 + $0x74] sm:$0xf]
      %v2299 = vld [vmem:[%s4 + $0x78] sm:$0xf]
      %v2300 = vld [vmem:[%s4 + $0x7c] sm:$0xf]
      %v2301 = vld [vmem:[%s4 + $0x80] sm:$0xf]
      %v2302 = vld [vmem:[%s4 + $0x84] sm:$0xf]
      %v2303 = vld [vmem:[%s4 + $0x88] sm:$0xf]
      %v2304 = vld [vmem:[%s4 + $0x8c] sm:$0xf]
      %v2341 = vunpack.c.l.b16 %v2269
      %v2342 = vunpack.c.l.b16 %v2270
      %v2343 = vunpack.c.l.b16 %v2271
      %v2344 = vunpack.c.l.b16 %v2272
      %v2345 = vunpack.c.l.b16 %v2273
      %v2346 = vunpack.c.l.b16 %v2274
      %v2347 = vunpack.c.l.b16 %v2275
      %v2348 = vunpack.c.l.b16 %v2276
      %v2349 = vunpack.c.l.b16 %v2277
      %v2350 = vunpack.c.l.b16 %v2278
      %v2351 = vunpack.c.l.b16 %v2279
      %v2352 = vunpack.c.l.b16 %v2280
      %v2353 = vunpack.c.l.b16 %v2281
      %v2354 = vunpack.c.l.b16 %v2282
      %v2355 = vunpack.c.l.b16 %v2283
      %v2356 = vunpack.c.l.b16 %v2284
      %v2357 = vunpack.c.l.b16 %v2285
      %v2358 = vunpack.c.l.b16 %v2286
      %v2359 = vunpack.c.l.b16 %v2287
      %v2360 = vunpack.c.l.b16 %v2288
      %v2361 = vunpack.c.l.b16 %v2289
      %v2362 = vunpack.c.l.b16 %v2290
      %v2363 = vunpack.c.l.b16 %v2291
      %v2364 = vunpack.c.l.b16 %v2292
      %v2365 = vunpack.c.l.b16 %v2293
      %v2366 = vunpack.c.l.b16 %v2294
      %v2367 = vunpack.c.l.b16 %v2295
      %v2368 = vunpack.c.l.b16 %v2296
      %v2369 = vunpack.c.l.b16 %v2297
      %v2370 = vunpack.c.l.b16 %v2298
      %v2371 = vunpack.c.l.b16 %v2299
      %v2372 = vunpack.c.l.b16 %v2300
      %v2373 = vunpack.c.l.b16 %v2301
      %v2374 = vunpack.c.l.b16 %v2302
      %v2375 = vunpack.c.l.b16 %v2303
      %v2376 = vunpack.c.l.b16 %v2304
      %v2377 = vpack.c.b16 %v2342, %v2341
      %v2378 = vpack.c.b16 %v2344, %v2343
      %v2379 = vpack.c.b16 %v2346, %v2345
      %v2380 = vpack.c.b16 %v2348, %v2347
      %v2381 = vpack.c.b16 %v2350, %v2349
      %v2382 = vpack.c.b16 %v2352, %v2351
      %v2383 = vpack.c.b16 %v2354, %v2353
      %v2384 = vpack.c.b16 %v2356, %v2355
      %v2385 = vpack.c.b16 %v2358, %v2357
      %v2386 = vpack.c.b16 %v2360, %v2359
      %v2387 = vpack.c.b16 %v2362, %v2361
      %v2388 = vpack.c.b16 %v2364, %v2363
      %v2389 = vpack.c.b16 %v2366, %v2365
      %v2390 = vpack.c.b16 %v2368, %v2367
      %v2391 = vpack.c.b16 %v2370, %v2369
      %v2392 = vpack.c.b16 %v2372, %v2371
      %v2393 = vpack.c.b16 %v2374, %v2373
      %v2394 = vpack.c.b16 %v2376, %v2375
      %v2414 = vsel %vm2138, %v2130, 0
      %v2417 = vsel %vm2138, %v2131, 0
      %v2420 = vsel %vm2138, %v2132, 0
      %v2423 = vsel %vm2138, %v2133, 0
      %v2426 = vsel %vm2138, %v2134, 0
      %v2429 = vsel %vm2138, %v2135, 0
      %v2432 = vsel %vm2138, %v2136, 0
      %v2435 = vsel %vm2138, %v2137, 0
      %2437 = vmatpush.bf16.msra.mxu0 %v2384
      %2438 = vmatpush.bf16.msra.mxu0 %v2383
      %2439 = vmatpush.bf16.msra.mxu0 %v2382
      %2440 = vmatpush.bf16.msra.mxu0 %v2381
      %2441 = vmatpush.bf16.msra.mxu0 %v2380
      %2442 = vmatpush.bf16.msra.mxu0 %v2379
      %2443 = vmatpush.bf16.msra.mxu0 %v2378
      %2444 = vmatpush.bf16.msra.mxu0 %v2377
      %2445 = vmatmul.bf16.gmra.mxu0 %v2182
      %v2446 = vpop.f32.mrf.mxu0
      %v2447 = vadd.f32 0.0, %v2446
      %v2448 = vpop.f32.mrf.mxu0
      %v2449 = vadd.f32 0.0, %v2448
      %2450 = vmatmul.bf16.gmra.mxu0 %v2185
      %v2451 = vpop.f32.mrf.mxu0
      %v2452 = vadd.f32 0.0, %v2451
      %v2453 = vpop.f32.mrf.mxu0
      %v2454 = vadd.f32 0.0, %v2453
      %2455 = vmatmul.bf16.gmra.mxu0 %v2188
      %v2456 = vpop.f32.mrf.mxu0
      %v2457 = vadd.f32 0.0, %v2456
      %v2458 = vpop.f32.mrf.mxu0
      %v2459 = vadd.f32 0.0, %v2458
      %2460 = vmatmul.bf16.gmra.mxu0 %v2191
      %v2461 = vpop.f32.mrf.mxu0
      %v2462 = vadd.f32 0.0, %v2461
      %v2463 = vpop.f32.mrf.mxu0
      %v2464 = vadd.f32 0.0, %v2463
      %2465 = vmatmul.bf16.gmra.mxu0 %v2194
      %v2466 = vpop.f32.mrf.mxu0
      %v2467 = vadd.f32 0.0, %v2466
      %v2468 = vpop.f32.mrf.mxu0
      %v2469 = vadd.f32 0.0, %v2468
      %2470 = vmatmul.bf16.gmra.mxu0 %v2197
      %v2471 = vpop.f32.mrf.mxu0
      %v2472 = vadd.f32 0.0, %v2471
      %v2473 = vpop.f32.mrf.mxu0
      %v2474 = vadd.f32 0.0, %v2473
      %2475 = vmatmul.bf16.gmra.mxu0 %v2200
      %v2476 = vpop.f32.mrf.mxu0
      %v2477 = vadd.f32 0.0, %v2476
      %v2478 = vpop.f32.mrf.mxu0
      %v2479 = vadd.f32 0.0, %v2478
      %2480 = vmatmul.bf16.gmra.mxu0 %v2203
      %v2481 = vpop.f32.mrf.mxu0
      %v2482 = vadd.f32 0.0, %v2481
      %v2483 = vpop.f32.mrf.mxu0
      %v2484 = vadd.f32 0.0, %v2483
      %2485 = vdwg.mxu0
      %2486 = vmatpush.bf16.msra.mxu0 %v2392
      %2487 = vmatpush.bf16.msra.mxu0 %v2391
      %2488 = vmatpush.bf16.msra.mxu0 %v2390
      %2489 = vmatpush.bf16.msra.mxu0 %v2389
      %2490 = vmatpush.bf16.msra.mxu0 %v2388
      %2491 = vmatpush.bf16.msra.mxu0 %v2387
      %2492 = vmatpush.bf16.msra.mxu0 %v2386
      %2493 = vmatpush.bf16.msra.mxu0 %v2385
      %2494 = vmatmul.bf16.gmra.mxu0 %v2246
      %v2495 = vpop.f32.mrf.mxu0
      %v2496 = vadd.f32 %v2447, %v2495
      %v2497 = vpop.f32.mrf.mxu0
      %v2498 = vadd.f32 %v2449, %v2497
      %2499 = vmatmul.bf16.gmra.mxu0 %v2249
      %v2500 = vpop.f32.mrf.mxu0
      %v2501 = vadd.f32 %v2452, %v2500
      %v2502 = vpop.f32.mrf.mxu0
      %v2503 = vadd.f32 %v2454, %v2502
      %2504 = vmatmul.bf16.gmra.mxu0 %v2252
      %v2505 = vpop.f32.mrf.mxu0
      %v2506 = vadd.f32 %v2457, %v2505
      %v2507 = vpop.f32.mrf.mxu0
      %v2508 = vadd.f32 %v2459, %v2507
      %2509 = vmatmul.bf16.gmra.mxu0 %v2255
      %v2510 = vpop.f32.mrf.mxu0
      %v2511 = vadd.f32 %v2462, %v2510
      %v2512 = vpop.f32.mrf.mxu0
      %v2513 = vadd.f32 %v2464, %v2512
      %2514 = vmatmul.bf16.gmra.mxu0 %v2258
      %v2515 = vpop.f32.mrf.mxu0
      %v2516 = vadd.f32 %v2467, %v2515
      %v2517 = vpop.f32.mrf.mxu0
      %v2518 = vadd.f32 %v2469, %v2517
      %2519 = vmatmul.bf16.gmra.mxu0 %v2261
      %v2520 = vpop.f32.mrf.mxu0
      %v2521 = vadd.f32 %v2472, %v2520
      %v2522 = vpop.f32.mrf.mxu0
      %v2523 = vadd.f32 %v2474, %v2522
      %2524 = vmatmul.bf16.gmra.mxu0 %v2264
      %v2525 = vpop.f32.mrf.mxu0
      %v2526 = vadd.f32 %v2477, %v2525
      %v2527 = vpop.f32.mrf.mxu0
      %v2528 = vadd.f32 %v2479, %v2527
      %2529 = vmatmul.bf16.gmra.mxu0 %v2267
      %v2530 = vpop.f32.mrf.mxu0
      %v2531 = vadd.f32 %v2482, %v2530
      %v2532 = vpop.f32.mrf.mxu0
      %v2533 = vadd.f32 %v2484, %v2532
      %2534 = vdwg.mxu0
      %2535 = vmatpush.bf16.msra.mxu0 0
      %2536 = vmatpush.bf16.msra.mxu0 0
      %2537 = vmatpush.bf16.msra.mxu0 0
      %2538 = vmatpush.bf16.msra.mxu0 0
      %2539 = vmatpush.bf16.msra.mxu0 0
      %2540 = vmatpush.bf16.msra.mxu0 0
      %2541 = vmatpush.bf16.msra.mxu0 %v2394
      %2542 = vmatpush.bf16.msra.mxu0 %v2393
      %2543 = vmatmul.bf16.gmra.mxu0 %v2414
      %v2544 = vpop.f32.mrf.mxu0
      %v2545 = vadd.f32 %v2496, %v2544
      %v2546 = vpop.f32.mrf.mxu0
      %v2547 = vadd.f32 %v2498, %v2546
      %2548 = vmatmul.bf16.gmra.mxu0 %v2417
      %v2549 = vpop.f32.mrf.mxu0
      %v2550 = vadd.f32 %v2501, %v2549
      %v2551 = vpop.f32.mrf.mxu0
      %v2552 = vadd.f32 %v2503, %v2551
      %2553 = vmatmul.bf16.gmra.mxu0 %v2420
      %v2554 = vpop.f32.mrf.mxu0
      %v2555 = vadd.f32 %v2506, %v2554
      %v2556 = vpop.f32.mrf.mxu0
      %v2557 = vadd.f32 %v2508, %v2556
      %2558 = vmatmul.bf16.gmra.mxu0 %v2423
      %v2559 = vpop.f32.mrf.mxu0
      %v2560 = vadd.f32 %v2511, %v2559
      %v2561 = vpop.f32.mrf.mxu0
      %v2562 = vadd.f32 %v2513, %v2561
      %2563 = vmatmul.bf16.gmra.mxu0 %v2426
      %v2564 = vpop.f32.mrf.mxu0
      %v2565 = vadd.f32 %v2516, %v2564
      %v2566 = vpop.f32.mrf.mxu0
      %v2567 = vadd.f32 %v2518, %v2566
      %2568 = vmatmul.bf16.gmra.mxu0 %v2429
      %v2569 = vpop.f32.mrf.mxu0
      %v2570 = vadd.f32 %v2521, %v2569
      %v2571 = vpop.f32.mrf.mxu0
      %v2572 = vadd.f32 %v2523, %v2571
      %2573 = vmatmul.bf16.gmra.mxu0 %v2432
      %v2574 = vpop.f32.mrf.mxu0
      %v2575 = vadd.f32 %v2526, %v2574
      %v2576 = vpop.f32.mrf.mxu0
      %v2577 = vadd.f32 %v2528, %v2576
      %2578 = vmatmul.bf16.gmra.mxu0 %v2435
      %v2579 = vpop.f32.mrf.mxu0
      %v2580 = vadd.f32 %v2531, %v2579
      %v2581 = vpop.f32.mrf.mxu0
      %v2582 = vadd.f32 %v2533, %v2581
      %2583 = vdwg.mxu0
      %v2584 = vld [vmem:[%s5] sm:$0x1]
      %v2586 = vperm.slane %v2584, 0
      %v2588 = vmul.f32 %v2545, %v2586
      %v2589 = vmul.f32 %v2547, %v2586
      %v2590 = vmul.f32 %v2550, %v2586
      %v2591 = vmul.f32 %v2552, %v2586
      %v2592 = vmul.f32 %v2555, %v2586
      %v2593 = vmul.f32 %v2557, %v2586
      %v2594 = vmul.f32 %v2560, %v2586
      %v2595 = vmul.f32 %v2562, %v2586
      %v2596 = vmul.f32 %v2565, %v2586
      %v2597 = vmul.f32 %v2567, %v2586
      %v2598 = vmul.f32 %v2570, %v2586
      %v2599 = vmul.f32 %v2572, %v2586
      %v2600 = vmul.f32 %v2575, %v2586
      %v2601 = vmul.f32 %v2577, %v2586
      %v2602 = vmul.f32 %v2580, %v2586
      %v2603 = vmul.f32 %v2582, %v2586
      %v2604 = vld [vmem:[%s6] sm:$0x1]
      %v2606 = vperm.slane %v2604, 0
      %v2608 = vadd.f32 %v2588, %v2606
      %v2609 = vadd.f32 %v2589, %v2606
      %v2610 = vadd.f32 %v2590, %v2606
      %v2611 = vadd.f32 %v2591, %v2606
      %v2612 = vadd.f32 %v2592, %v2606
      %v2613 = vadd.f32 %v2593, %v2606
      %v2614 = vadd.f32 %v2594, %v2606
      %v2615 = vadd.f32 %v2595, %v2606
      %v2616 = vadd.f32 %v2596, %v2606
      %v2617 = vadd.f32 %v2597, %v2606
      %v2618 = vadd.f32 %v2598, %v2606
      %v2619 = vadd.f32 %v2599, %v2606
      %v2620 = vadd.f32 %v2600, %v2606
      %v2621 = vadd.f32 %v2601, %v2606
      %v2622 = vadd.f32 %v2602, %v2606
      %v2623 = vadd.f32 %v2603, %v2606
      %v2624 = vmax.f32 %v2608, 0.0
      %v2625 = vmax.f32 %v2609, 0.0
      %v2626 = vmax.f32 %v2610, 0.0
      %v2627 = vmax.f32 %v2611, 0.0
      %v2628 = vmax.f32 %v2612, 0.0
      %v2629 = vmax.f32 %v2613, 0.0
      %v2630 = vmax.f32 %v2614, 0.0
      %v2631 = vmax.f32 %v2615, 0.0
      %v2632 = vmax.f32 %v2616, 0.0
      %v2633 = vmax.f32 %v2617, 0.0
      %v2634 = vmax.f32 %v2618, 0.0
      %v2635 = vmax.f32 %v2619, 0.0
      %v2636 = vmax.f32 %v2620, 0.0
      %v2637 = vmax.f32 %v2621, 0.0
      %v2638 = vmax.f32 %v2622, 0.0
      %v2639 = vmax.f32 %v2623, 0.0
      %v2640 = vpack.c.bf16 %v2624, %v2624
      %v2641 = vpack.c.bf16 %v2625, %v2625
      %v2642 = vpack.c.bf16 %v2626, %v2626
      %v2643 = vpack.c.bf16 %v2627, %v2627
      %v2644 = vpack.c.bf16 %v2628, %v2628
      %v2645 = vpack.c.bf16 %v2629, %v2629
      %v2646 = vpack.c.bf16 %v2630, %v2630
      %v2647 = vpack.c.bf16 %v2631, %v2631
      %v2648 = vpack.c.bf16 %v2632, %v2632
      %v2649 = vpack.c.bf16 %v2633, %v2633
      %v2650 = vpack.c.bf16 %v2634, %v2634
      %v2651 = vpack.c.bf16 %v2635, %v2635
      %v2652 = vpack.c.bf16 %v2636, %v2636
      %v2653 = vpack.c.bf16 %v2637, %v2637
      %v2654 = vpack.c.bf16 %v2638, %v2638
      %v2655 = vpack.c.bf16 %v2639, %v2639
      %vm2656 = vcmask 519168
      %2657 = vst.msk [vmem:[%s333] sm:$0xf] %vm2656, %v2640
      %2658 = vst.msk [vmem:[%s333 + $0x4] sm:$0xf] %vm2656, %v2641
      %2659 = vst.msk [vmem:[%s333 + $0x8] sm:$0xf] %vm2656, %v2642
      %2660 = vst.msk [vmem:[%s333 + $0xc] sm:$0xf] %vm2656, %v2643
      %2661 = vst.msk [vmem:[%s333 + $0x10] sm:$0xf] %vm2656, %v2644
      %2662 = vst.msk [vmem:[%s333 + $0x14] sm:$0xf] %vm2656, %v2645
      %2663 = vst.msk [vmem:[%s333 + $0x18] sm:$0xf] %vm2656, %v2646
      %2664 = vst.msk [vmem:[%s333 + $0x1c] sm:$0xf] %vm2656, %v2647
      %2665 = vst.msk [vmem:[%s333 + $0x20] sm:$0xf] %vm2656, %v2648
      %2666 = vst.msk [vmem:[%s333 + $0x24] sm:$0xf] %vm2656, %v2649
      %2667 = vst.msk [vmem:[%s333 + $0x28] sm:$0xf] %vm2656, %v2650
      %2668 = vst.msk [vmem:[%s333 + $0x2c] sm:$0xf] %vm2656, %v2651
      %2669 = vst.msk [vmem:[%s333 + $0x30] sm:$0xf] %vm2656, %v2652
      %2670 = vst.msk [vmem:[%s333 + $0x34] sm:$0xf] %vm2656, %v2653
      %2671 = vst.msk [vmem:[%s333 + $0x38] sm:$0xf] %vm2656, %v2654
      %2672 = vst.msk [vmem:[%s333 + $0x3c] sm:$0xf] %vm2656, %v2655
      %2689 = vrot.lane.b32.xlu0 %v2624, 96
      %v2690 = vpop.permute.xlu0 %2689
      %2691 = vrot.lane.b32.xlu0 %v2625, 96
      %v2692 = vpop.permute.xlu0 %2691
      %2693 = vrot.lane.b32.xlu0 %v2626, 96
      %v2694 = vpop.permute.xlu0 %2693
      %2695 = vrot.lane.b32.xlu0 %v2627, 96
      %v2696 = vpop.permute.xlu0 %2695
      %2697 = vrot.lane.b32.xlu0 %v2628, 96
      %v2698 = vpop.permute.xlu0 %2697
      %2699 = vrot.lane.b32.xlu0 %v2629, 96
      %v2700 = vpop.permute.xlu0 %2699
      %2701 = vrot.lane.b32.xlu0 %v2630, 96
      %v2702 = vpop.permute.xlu0 %2701
      %2703 = vrot.lane.b32.xlu0 %v2631, 96
      %v2704 = vpop.permute.xlu0 %2703
      %2705 = vrot.lane.b32.xlu0 %v2632, 96
      %v2706 = vpop.permute.xlu0 %2705
      %2707 = vrot.lane.b32.xlu0 %v2633, 96
      %v2708 = vpop.permute.xlu0 %2707
      %2709 = vrot.lane.b32.xlu0 %v2634, 96
      %v2710 = vpop.permute.xlu0 %2709
      %2711 = vrot.lane.b32.xlu0 %v2635, 96
      %v2712 = vpop.permute.xlu0 %2711
      %2713 = vrot.lane.b32.xlu0 %v2636, 96
      %v2714 = vpop.permute.xlu0 %2713
      %2715 = vrot.lane.b32.xlu0 %v2637, 96
      %v2716 = vpop.permute.xlu0 %2715
      %2717 = vrot.lane.b32.xlu0 %v2638, 96
      %v2718 = vpop.permute.xlu0 %2717
      %2719 = vrot.lane.b32.xlu0 %v2639, 96
      %v2720 = vpop.permute.xlu0 %2719
      %v2737 = vadd.f32 %v2624, %v2690
      %v2738 = vadd.f32 %v2625, %v2692
      %v2739 = vadd.f32 %v2626, %v2694
      %v2740 = vadd.f32 %v2627, %v2696
      %v2741 = vadd.f32 %v2628, %v2698
      %v2742 = vadd.f32 %v2629, %v2700
      %v2743 = vadd.f32 %v2630, %v2702
      %v2744 = vadd.f32 %v2631, %v2704
      %v2745 = vadd.f32 %v2632, %v2706
      %v2746 = vadd.f32 %v2633, %v2708
      %v2747 = vadd.f32 %v2634, %v2710
      %v2748 = vadd.f32 %v2635, %v2712
      %v2749 = vadd.f32 %v2636, %v2714
      %v2750 = vadd.f32 %v2637, %v2716
      %v2751 = vadd.f32 %v2638, %v2718
      %v2752 = vadd.f32 %v2639, %v2720
      %v2753 = vld [vmem:[#allocation3] sm:$0x1]
      %v2754 = vsel %vm2138, %v2737, 0.0
      %v2755 = vsel %vm2138, %v2738, 0.0
      %v2756 = vadd.f32 %v2754, %v2755
      %v2757 = vsel %vm2138, %v2739, 0.0
      %v2758 = vadd.f32 %v2756, %v2757
      %v2759 = vsel %vm2138, %v2740, 0.0
      %v2760 = vadd.f32 %v2758, %v2759
      %v2761 = vsel %vm2138, %v2741, 0.0
      %v2762 = vadd.f32 %v2760, %v2761
      %v2763 = vsel %vm2138, %v2742, 0.0
      %v2764 = vadd.f32 %v2762, %v2763
      %v2765 = vsel %vm2138, %v2743, 0.0
      %v2766 = vadd.f32 %v2764, %v2765
      %v2767 = vsel %vm2138, %v2744, 0.0
      %v2768 = vadd.f32 %v2766, %v2767
      %v2769 = vsel %vm2138, %v2745, 0.0
      %v2770 = vadd.f32 %v2768, %v2769
      %v2771 = vsel %vm2138, %v2746, 0.0
      %v2772 = vadd.f32 %v2770, %v2771
      %v2773 = vsel %vm2138, %v2747, 0.0
      %v2774 = vadd.f32 %v2772, %v2773
      %v2775 = vsel %vm2138, %v2748, 0.0
      %v2776 = vadd.f32 %v2774, %v2775
      %v2777 = vsel %vm2138, %v2749, 0.0
      %v2778 = vadd.f32 %v2776, %v2777
      %v2779 = vsel %vm2138, %v2750, 0.0
      %v2780 = vadd.f32 %v2778, %v2779
      %v2781 = vsel %vm2138, %v2751, 0.0
      %v2782 = vadd.f32 %v2780, %v2781
      %v2783 = vsel %vm2138, %v2752, 0.0
      %v2784 = vadd.f32 %v2782, %v2783
      %v2785 = vrot.slane %v2784, 4
      %v2786 = vadd.f32 %v2784, %v2785
      %v2787 = vrot.slane %v2786, 2
      %v2788 = vadd.f32 %v2786, %v2787
      %v2789 = vrot.slane %v2788, 1
      %v2790 = vadd.f32 %v2788, %v2789
      %v2791 = vadd.f32 %v2753, %v2790
      %vm2792 = vcmask 253952
      %2793 = vst.msk [vmem:[#allocation3] sm:$0x1] %vm2792, %v2791
      %p2794 = scmp.eq.s32.totalorder %s25, 1
      // Predicated region
      $region53: #{bottleneck_forward.3} parent=47 // pred_check
        %p2795 = pneg %p2794
      $region54: #{bottleneck_forward.3} parent=47 // pred_check_branch
        %2797 = sbr.rel (%p2795) target = $region56
      $region55: #{bottleneck_forward.3} parent=47 // pred_region
        %v2798 = vld [vmem:[#allocation3] sm:$0x1]
        %v2799 = vmul.f32 %v2798, 0.00390625
        %2800 = vst.msk [vmem:[%s337] sm:$0x1] %vm2792, %v2799
      $region56: #{bottleneck_forward.3} parent=47 // pred_fallthru
        _
      %s2801 = smul.u32 16, %s25
      %p2802 = scmp.lt.s32.totalorder %s24, 1
      %s2803 = scalar_select %p2802, %s24, 1
      %p2804 = scmp.lt.s32.totalorder %s2801, 31
      %s2805 = scalar_select %p2804, %s2801, 31
      %s2806 = smul.addr %s2803, 32
      %s2807 = sadd.s32 %s2805, %s2806
      %s2808 = smul.addr %s2807, 4
      %s2809 = scalar_lea.vmem %s7, %s2808
      %p2810 = scmp.lt.s32.totalorder %s24, 1
      %s2811 = scalar_select %p2810, %s24, 1
      %s2812 = scalar_lea.vmem %s8, %s2811
      // Predicated region
      $region57: #{bottleneck_forward.3} parent=47 // pred_check
        %p2813 = pneg %p204
      $region58: #{bottleneck_forward.3} parent=47 // pred_check_branch
        %2815 = sbr.rel (%p2813) target = $region60
      $region59: #{bottleneck_forward.3} parent=47 // pred_region
        %s2816 = smul.u32 16, %s25
      $region60: #{bottleneck_forward.3} parent=47 // pred_fallthru
        _
      // Predicated region
      $region61: #{bottleneck_forward.3} parent=47 // pred_check
        %p2817 = pneg %p230
      $region62: #{bottleneck_forward.3} parent=47 // pred_check_branch
        %2819 = sbr.rel (%p2817) target = $region64
      $region63: #{bottleneck_forward.3} parent=47 // pred_region
        _
      $region64: #{bottleneck_forward.3} parent=47 // pred_fallthru
        _
    $region48: #{bottleneck_forward.3} parent=5 // pred_fallthru
      _
    %p2820 = scmp.le.s32.totalorder 2, %s15
    // Predicated region
    $region65: #{bottleneck_forward.3} parent=5 // pred_check
      %p2821 = pneg %p2820
    $region66: #{bottleneck_forward.3} parent=5 // pred_check_branch
      %2823 = sbr.rel (%p2821) target = $region68
    $region67: #{bottleneck_forward.3} parent=5 // pred_region
      %s2824 = ssub.s32 %s15, 2
      // Predicated region
      $region69: #{bottleneck_forward.3} parent=67 // pred_check
        %p2825 = pneg %p210
      $region70: #{bottleneck_forward.3} parent=67 // pred_check_branch
        %2827 = sbr.rel (%p2825) target = $region72
      $region71: #{bottleneck_forward.3} parent=67 // pred_region
        %s2828 = smul.u32 16, %s27
        %p2829 = scmp.lt.s32.totalorder %s26, 1
        %s2830 = scalar_select %p2829, %s26, 1
        %p2831 = scmp.lt.s32.totalorder %s2828, 31
        %s2832 = scalar_select %p2831, %s2828, 31
        %s2833 = smul.addr %s2830, 32
        %s2834 = sadd.s32 %s2832, %s2833
        %s2835 = smul.addr %s2834, 4
        %s2836 = scalar_lea.vmem %s7, %s2835
      $region72: #{bottleneck_forward.3} parent=67 // pred_fallthru
        _
      // Predicated region
      $region73: #{bottleneck_forward.3} parent=67 // pred_check
        %p2837 = pneg %p236
      $region74: #{bottleneck_forward.3} parent=67 // pred_check_branch
        %2839 = sbr.rel (%p2837) target = $region76
      $region75: #{bottleneck_forward.3} parent=67 // pred_region
        %p2840 = scmp.lt.s32.totalorder %s26, 1
        %s2841 = scalar_select %p2840, %s26, 1
        %s2842 = scalar_lea.vmem %s8, %s2841
      $region76: #{bottleneck_forward.3} parent=67 // pred_fallthru
        _
    $region68: #{bottleneck_forward.3} parent=5 // pred_fallthru
      _
  $region6: #{bottleneck_forward.3} parent=0 // loop_footer
    %s19 = sadd.s32 1, %s15
  $region7: #{bottleneck_forward.3} parent=0 // loop_footer_branch
    %14 = sbr.rel target = $region3
  $region8: #{bottleneck_forward.3} parent=0 // loop_exit
    _

</llo_original>
